<compile_context>
chip_gen: v7x
topology: tpu7x:2x2x1
jax: 0.10.0
libtpu: 0.0.40
codegen_flags: <defaults>
</compile_context>

<pallas_src>
import math
import numpy as np

import jax
import jax.numpy as jnp
from jax.experimental import pallas as pl
from jax.experimental.pallas import tpu as pltpu

# Keep f32 matmuls at full precision both inside and outside the kernels so the
# Pallas path and the plain-JAX reference agree tightly.
jax.config.update("jax_default_matmul_precision", "highest")


# ----------------------------------------------------------------------------
# Spec helper (verbatim semantics of models/MCTEM.py::get_frequency_modes)
# ----------------------------------------------------------------------------
def get_frequency_modes(seq_len, modes=None, mode_select_method="random"):
    modes = min(modes, seq_len // 2)
    if mode_select_method == "random":
        index = list(range(0, seq_len // 2))
        np.random.shuffle(index)
        index = index[:modes]
    else:
        index = list(range(0, modes))
    index.sort()
    return index


def _round_up(v, m):
    return ((v + m - 1) // m) * m


# ----------------------------------------------------------------------------
# Tiled matmul + bias (+ optional ReLU) Pallas kernel
# ----------------------------------------------------------------------------
def _make_linear_kernel(activation):
    def kernel(x_ref, w_ref, b_ref, o_ref, acc_ref):
        @pl.when(pl.program_id(2) == 0)
        def _init():
            acc_ref[...] = jnp.zeros_like(acc_ref)

        acc_ref[...] += jnp.dot(
            x_ref[...], w_ref[...], preferred_element_type=jnp.float32
        )

        @pl.when(pl.program_id(2) == pl.num_programs(2) - 1)
        def _finalize():
            y = acc_ref[...] + b_ref[...].astype(jnp.float32)
            if activation == "relu":
                y = jnp.maximum(y, 0.0)
            o_ref[...] = y.astype(o_ref.dtype)

    return kernel


def pallas_linear(x, w, b, activation=None, tm=256, tn=256, tk=512):
    """y = act(x @ w + b); x:(R,K), w:(K,N), b:(N,)."""
    R, K = x.shape
    K2, N = w.shape
    assert K == K2 and b.shape == (N,)

    # Pad: rows to sublane multiple (8), K and N to lane multiple (128).
    Rp = _round_up(R, 8)
    Kp = _round_up(K, 128)
    Np = _round_up(N, 128)
    tm = min(tm, Rp)
    tn = min(tn, Np)
    tk = min(tk, Kp)
    Rp = _round_up(Rp, tm)
    Kp = _round_up(Kp, tk)
    Np = _round_up(Np, tn)

    xp = jnp.pad(x, ((0, Rp - R), (0, Kp - K)))
    wp = jnp.pad(w, ((0, Kp - K), (0, Np - N)))
    bp = jnp.pad(b, (0, Np - N)).reshape(1, Np)

    grid = (Rp // tm, Np // tn, Kp // tk)
    bytes_accessed = (xp.size + wp.size + bp.size + Rp * Np) * x.dtype.itemsize

    out = pl.pallas_call(
        _make_linear_kernel(activation),
        out_shape=jax.ShapeDtypeStruct((Rp, Np), x.dtype),
        grid=grid,
        in_specs=[
            pl.BlockSpec((tm, tk), lambda i, j, k: (i, k)),
            pl.BlockSpec((tk, tn), lambda i, j, k: (k, j)),
            pl.BlockSpec((1, tn), lambda i, j, k: (0, j)),
        ],
        out_specs=pl.BlockSpec((tm, tn), lambda i, j, k: (i, j)),
        scratch_shapes=[pltpu.VMEM((tm, tn), jnp.float32)],
        compiler_params=pltpu.CompilerParams(
            dimension_semantics=("parallel", "parallel", "arbitrary"),
            vmem_limit_bytes=32 * 1024 * 1024,
        ),
        cost_estimate=pl.CostEstimate(
            flops=2 * R * K * N,
            transcendentals=0,
            bytes_accessed=int(bytes_accessed),
        ),
    )(xp, wp, bp)
    return out[:R, :N]


# ----------------------------------------------------------------------------
# Residual + LayerNorm Pallas kernel (fused add + normalize + affine)
# ----------------------------------------------------------------------------
def _make_add_ln_kernel(eps):
    def kernel(x_ref, r_ref, g_ref, b_ref, o_ref):
        x = x_ref[...].astype(jnp.float32) + r_ref[...].astype(jnp.float32)
        mu = jnp.mean(x, axis=-1, keepdims=True)
        xc = x - mu
        var = jnp.mean(xc * xc, axis=-1, keepdims=True)
        y = xc * jax.lax.rsqrt(var + eps)
        y = y * g_ref[...].astype(jnp.float32) + b_ref[...].astype(jnp.float32)
        o_ref[...] = y.astype(o_ref.dtype)

    return kernel


def pallas_add_layernorm(x, res, gamma, beta, eps=1e-5, tm=256):
    R, D = x.shape
    Rp = _round_up(R, 8)
    tm = min(tm, Rp)
    Rp = _round_up(Rp, tm)
    xp = jnp.pad(x, ((0, Rp - R), (0, 0)))
    rp = jnp.pad(res, ((0, Rp - R), (0, 0)))
    g2 = gamma.reshape(1, D)
    b2 = beta.reshape(1, D)

    out = pl.pallas_call(
        _make_add_ln_kernel(float(eps)),
        out_shape=jax.ShapeDtypeStruct((Rp, D), x.dtype),
        grid=(Rp // tm,),
        in_specs=[
            pl.BlockSpec((tm, D), lambda i: (i, 0)),
            pl.BlockSpec((tm, D), lambda i: (i, 0)),
            pl.BlockSpec((1, D), lambda i: (0, 0)),
            pl.BlockSpec((1, D), lambda i: (0, 0)),
        ],
        out_specs=pl.BlockSpec((tm, D), lambda i: (i, 0)),
        compiler_params=pltpu.CompilerParams(dimension_semantics=("parallel",)),
    )(xp, rp, g2, b2)
    return out[:R, :]


# ----------------------------------------------------------------------------
# Channel-axis rfft mode-select and scatter+irfft kernels (DFT coefficients
# baked in as trace-time constants; channel/mode axes are the leading ref axes).
# ----------------------------------------------------------------------------
def make_dft_matrices(nvar, index):
    idx = np.asarray(index, dtype=np.int64)
    L = len(index)
    c = np.arange(nvar, dtype=np.float64)

    # forward:  Re X[k] =  sum_c x[c] cos(2*pi*k*c/n); Im X[k] = -sum_c x[c] sin(.)
    ang = 2.0 * np.pi * np.outer(c, idx) / nvar          # (nvar, L)
    Fr = np.cos(ang).astype(np.float32)
    Fi = (-np.sin(ang)).astype(np.float32)

    # inverse (irfft with Hermitian symmetry; only the selected bins nonzero):
    #   y[c] = (1/n) sum_k w_k (Re X[k] cos - Im X[k] sin),
    #   w_k = 1 for DC/Nyquist, 2 otherwise (imag of DC/Nyquist is dropped).
    w = np.full((L,), 2.0)
    w[idx == 0] = 1.0
    if nvar % 2 == 0:
        w[idx == nvar // 2] = 1.0
    ang2 = 2.0 * np.pi * np.outer(idx, c) / nvar          # (L, nvar)
    Gr = (w[:, None] * np.cos(ang2) / nvar).astype(np.float32)
    Gi = np.where(
        w[:, None] == 2.0, -w[:, None] * np.sin(ang2) / nvar, 0.0
    ).astype(np.float32)
    return Fr, Fi, Gr, Gi


def _make_dft_select_kernel(Fr, Fi):
    nvar, L = Fr.shape

    def kernel(x_ref, out_ref):
        # x_ref: (nvar, TM, D) -> out_ref: (2, L, TM, D); out[0]=Re, out[1]=Im.
        # k-outer loop keeps only two live (TM, D) accumulators at a time.
        for k in range(L):
            xc = x_ref[0].astype(jnp.float32)
            r = float(Fr[0, k]) * xc
            ii = float(Fi[0, k]) * xc
            for c in range(1, nvar):
                xc = x_ref[c].astype(jnp.float32)
                r = r + float(Fr[c, k]) * xc
                ii = ii + float(Fi[c, k]) * xc
            out_ref[0, k] = r.astype(out_ref.dtype)
            out_ref[1, k] = ii.astype(out_ref.dtype)

    return kernel


def dft_select(x_cm, Fr, Fi, tm=256):
    """x_cm: (nvar, M, D) -> stacked (2, L, M, D) selected real/imag bins."""
    nvar, M, D = x_cm.shape
    L = Fr.shape[1]
    Mp = _round_up(M, 8)
    tm = min(tm, Mp)
    Mp = _round_up(Mp, tm)
    xp = jnp.pad(x_cm, ((0, 0), (0, Mp - M), (0, 0)))

    out = pl.pallas_call(
        _make_dft_select_kernel(Fr, Fi),
        out_shape=jax.ShapeDtypeStruct((2, L, Mp, D), x_cm.dtype),
        grid=(Mp // tm,),
        in_specs=[pl.BlockSpec((nvar, tm, D), lambda i: (0, i, 0))],
        out_specs=pl.BlockSpec((2, L, tm, D), lambda i: (0, 0, i, 0)),
        compiler_params=pltpu.CompilerParams(dimension_semantics=("parallel",)),
    )(xp)
    return out[:, :, :M, :]


def _make_dft_inverse_kernel(Gr, Gi):
    L, nvar = Gr.shape

    def kernel(ri_ref, y_ref):
        # ri_ref: (2, L, TM, D) (0=Re, 1=Im) -> y_ref: (nvar, TM, D)
        for c in range(nvar):
            acc = float(Gr[0, c]) * ri_ref[0, 0].astype(jnp.float32) + float(
                Gi[0, c]
            ) * ri_ref[1, 0].astype(jnp.float32)
            for k in range(1, L):
                acc = (
                    acc
                    + float(Gr[k, c]) * ri_ref[0, k].astype(jnp.float32)
                    + float(Gi[k, c]) * ri_ref[1, k].astype(jnp.float32)
                )
            y_ref[c] = acc.astype(y_ref.dtype)

    return kernel


def dft_inverse(ri_cm, Gr, Gi, tm=256):
    """ri_cm: (2, L, M, D) -> irfft(n=nvar) over the channel axis: (nvar, M, D)."""
    _, L, M, D = ri_cm.shape
    nvar = Gr.shape[1]
    Mp = _round_up(M, 8)
    tm = min(tm, Mp)
    Mp = _round_up(Mp, tm)
    rip = jnp.pad(ri_cm, ((0, 0), (0, 0), (0, Mp - M), (0, 0)))

    y = pl.pallas_call(
        _make_dft_inverse_kernel(Gr, Gi),
        out_shape=jax.ShapeDtypeStruct((nvar, Mp, D), ri_cm.dtype),
        grid=(Mp // tm,),
        in_specs=[pl.BlockSpec((2, L, tm, D), lambda i: (0, 0, i, 0))],
        out_specs=pl.BlockSpec((nvar, tm, D), lambda i: (0, i, 0)),
        compiler_params=pltpu.CompilerParams(dimension_semantics=("parallel",)),
    )(rip)
    return y[:, :M, :]


# ----------------------------------------------------------------------------
# Encoder layer (assumed post-norm MHSA + ReLU FFN); heavy matmuls in Pallas.
# Runs ONCE over the stacked (real, imag) input -> 2x M rows per matmul.
# ----------------------------------------------------------------------------
def encoder_layer_pallas(x_st, p, n_heads):
    # x_st: (2, L, M, D); stack axis 0 = (real, imag), L = selected modes.
    two, L, M, D = x_st.shape
    H = n_heads
    dh = D // H
    xf = x_st.reshape(two * L * M, D)

    # Fused QKV projection (lane-dense 3*D output columns).
    qkv = pallas_linear(xf, p["wqkv"], p["bqkv"])
    q, k, v = jnp.split(qkv, 3, axis=-1)
    q = q.reshape(two, L, M, H, dh)
    k = k.reshape(two, L, M, H, dh)
    v = v.reshape(two, L, M, H, dh)

    # Attention over the tiny selected-mode axis (L ~ modes): plain-JAX glue.
    scale = 1.0 / math.sqrt(float(dh))
    s = jnp.einsum("slmhd,skmhd->smhlk", q, k) * scale
    a = jax.nn.softmax(s, axis=-1)
    o = jnp.einsum("smhlk,skmhd->slmhd", a, v).reshape(two * L * M, D)

    o = pallas_linear(o, p["wo"], p["bo"])
    x1 = pallas_add_layernorm(xf, o, p["ln1_g"], p["ln1_b"])

    h = pallas_linear(x1, p["w1"], p["b1"], activation="relu")
    f = pallas_linear(h, p["w2"], p["b2"])
    x2 = pallas_add_layernorm(x1, f, p["ln2_g"], p["ln2_b"])
    return x2.reshape(two, L, M, D)


def cem_forward(x, p, n_heads, index):
    """CEM.forward: x (B, n_vars, seq_len, d_model) -> same shape."""
    B, nvar, S, D = x.shape
    M = B * S

    # permute(0,2,1,3) + reshape(B*S, nvar, D), kept channel-major for kernels.
    x_cm = jnp.transpose(x, (1, 0, 2, 3)).reshape(nvar, M, D)

    Fr, Fi, Gr, Gi = make_dft_matrices(nvar, index)
    ri_cm = dft_select(x_cm, Fr, Fi)               # rfft(dim=channel), stacked re/im
    enc = encoder_layer_pallas(ri_cm, p, n_heads)  # one EncoderLayer pass (re & im)
    y_cm = dft_inverse(enc, Gr, Gi)                # scatter + irfft(n=nvar)

    y = y_cm.reshape(nvar, B, S, D).transpose(1, 0, 2, 3)
    return y


# ----------------------------------------------------------------------------
# Plain-JAX reference (uses jnp.fft, separate real/imag encoder calls)
# ----------------------------------------------------------------------------
def _layer_norm_ref(x, g, b, eps=1e-5):
    mu = jnp.mean(x, axis=-1, keepdims=True)
    xc = x - mu
    var = jnp.mean(xc * xc, axis=-1, keepdims=True)
    return xc / jnp.sqrt(var + eps) * g + b


def encoder_layer_ref(x, p, n_heads):
    M, L, D = x.shape
    H = n_heads
    dh = D // H
    xf = x.reshape(M * L, D)
    qkv = xf @ p["wqkv"] + p["bqkv"]
    q, k, v = jnp.split(qkv, 3, axis=-1)
    q = q.reshape(M, L, H, dh)
    k = k.reshape(M, L, H, dh)
    v = v.reshape(M, L, H, dh)
    scale = 1.0 / (float(dh) ** 0.5)
    s = jnp.einsum("mlhd,mkhd->mhlk", q, k) * scale
    a = jax.nn.softmax(s, axis=-1)
    o = jnp.einsum("mhlk,mkhd->mlhd", a, v).reshape(M * L, D)
    o = o @ p["wo"] + p["bo"]
    x1 = _layer_norm_ref(xf + o, p["ln1_g"], p["ln1_b"])
    f = jnp.maximum(x1 @ p["w1"] + p["b1"], 0.0) @ p["w2"] + p["b2"]
    x2 = _layer_norm_ref(x1 + f, p["ln2_g"], p["ln2_b"])
    return x2.reshape(M, L, D)


def cem_reference(x, p, n_heads, index):
    B, nvar, S, D = x.shape
    xr = jnp.transpose(x, (0, 2, 1, 3)).reshape(B * S, nvar, D)
    x_ft = jnp.fft.rfft(xr, axis=1)
    idx = jnp.asarray(index)
    r_in = jnp.real(x_ft)[:, idx, :]
    i_in = jnp.imag(x_ft)[:, idx, :]
    r = encoder_layer_ref(r_in, p, n_heads)
    i = encoder_layer_ref(i_in, p, n_heads)
    n_freq = nvar // 2 + 1
    y_re = jnp.zeros((B * S, n_freq, D), jnp.float32).at[:, idx, :].set(r)
    y_im = jnp.zeros((B * S, n_freq, D), jnp.float32).at[:, idx, :].set(i)
    y_ft = y_re + 1j * y_im
    y = jnp.fft.irfft(y_ft, n=nvar, axis=1)
    return y.reshape(B, S, nvar, D).transpose(0, 2, 1, 3)


# ----------------------------------------------------------------------------
if __name__ == "__main__":
    B, nvar, S, D = 2, 8, 8, 32
    n_heads = 4
    d_ff = 4 * D
    modes = 2

    np.random.seed(0)
    index = get_frequency_modes(nvar + 1, modes=modes, mode_select_method="random")

    key = jax.random.PRNGKey(0)
    ks = jax.random.split(key, 9)

    def uinit(k, shape, fan_in):
        bound = 1.0 / float(np.sqrt(fan_in))
        return jax.random.uniform(k, shape, jnp.float32, -bound, bound)

    params = {
        "wqkv": uinit(ks[0], (D, 3 * D), D),
        "bqkv": uinit(ks[1], (3 * D,), D),
        "wo": uinit(ks[2], (D, D), D),
        "bo": uinit(ks[3], (D,), D),
        "w1": uinit(ks[4], (D, d_ff), D),
        "b1": uinit(ks[5], (d_ff,), D),
        "w2": uinit(ks[6], (d_ff, D), d_ff),
        "b2": uinit(ks[7], (D,), d_ff),
        "ln1_g": jnp.ones((D,), jnp.float32),
        "ln1_b": jnp.zeros((D,), jnp.float32),
        "ln2_g": jnp.ones((D,), jnp.float32),
        "ln2_b": jnp.zeros((D,), jnp.float32),
    }

    x = jax.random.normal(ks[8], (B, nvar, S, D), dtype=jnp.float32)

    fwd = jax.jit(lambda xx, pp: cem_forward(xx, pp, n_heads, index))
    y = jax.block_until_ready(fwd(x, params))
    assert y.shape == (B, nvar, S, D)

    y_ref = cem_reference(x, params, n_heads, index)
    err = float(jnp.max(jnp.abs(y - y_ref)))
    assert err < 2e-2, f"max abs error vs reference = {err}"

    print("KERNEL_OK")
</pallas_src>

<mosaic_0001>
module attributes {stable_mosaic.version = 11 : i64} {
  func.func @kernel(%arg0: i32, %arg1: memref<8x16x32xf32, #tpu.memory_space<vmem>>, %arg2: memref<2x2x16x32xf32, #tpu.memory_space<vmem>>) attributes {dimension_semantics = [#tpu.dimension_semantics<parallel>], iteration_bounds = array<i64: 1>, scalar_prefetch = 0 : i64, scratch_operands = 0 : i64, tpu.core_type = #tpu.core_type<tc>, window_params = [{transform_indices = @transform_0, window_bounds = array<i64: 8, 16, 32>}, {transform_indices = @transform_1, window_bounds = array<i64: 2, 2, 16, 32>}]} {
    %c0 = arith.constant 0 : index
    %c0_0 = arith.constant 0 : index
    %c0_1 = arith.constant 0 : index
    %0 = vector.load %arg1[%c0, %c0_0, %c0_1] : memref<8x16x32xf32, #tpu.memory_space<vmem>>, vector<1x16x32xf32>
    %1 = vector.shape_cast %0 : vector<1x16x32xf32> to vector<16x32xf32>
    %cst = arith.constant 1.000000e+00 : f32
    %2 = vector.broadcast %cst : f32 to vector<16x32xf32>
    %3 = arith.mulf %2, %1 : vector<16x32xf32>
    %cst_2 = arith.constant -0.000000e+00 : f32
    %4 = vector.broadcast %cst_2 : f32 to vector<16x32xf32>
    %5 = arith.mulf %4, %1 : vector<16x32xf32>
    %c1 = arith.constant 1 : index
    %c0_3 = arith.constant 0 : index
    %c0_4 = arith.constant 0 : index
    %6 = vector.load %arg1[%c1, %c0_3, %c0_4] : memref<8x16x32xf32, #tpu.memory_space<vmem>>, vector<1x16x32xf32>
    %7 = vector.shape_cast %6 : vector<1x16x32xf32> to vector<16x32xf32>
    %cst_5 = arith.constant 6.12323426E-17 : f32
    %8 = vector.broadcast %cst_5 : f32 to vector<16x32xf32>
    %9 = arith.mulf %8, %7 : vector<16x32xf32>
    %10 = arith.addf %3, %9 : vector<16x32xf32>
    %cst_6 = arith.constant -1.000000e+00 : f32
    %11 = vector.broadcast %cst_6 : f32 to vector<16x32xf32>
    %12 = arith.mulf %11, %7 : vector<16x32xf32>
    %13 = arith.addf %5, %12 : vector<16x32xf32>
    %c2 = arith.constant 2 : index
    %c0_7 = arith.constant 0 : index
    %c0_8 = arith.constant 0 : index
    %14 = vector.load %arg1[%c2, %c0_7, %c0_8] : memref<8x16x32xf32, #tpu.memory_space<vmem>>, vector<1x16x32xf32>
    %15 = vector.shape_cast %14 : vector<1x16x32xf32> to vector<16x32xf32>
    %cst_9 = arith.constant -1.000000e+00 : f32
    %16 = vector.broadcast %cst_9 : f32 to vector<16x32xf32>
    %17 = arith.mulf %16, %15 : vector<16x32xf32>
    %18 = arith.addf %10, %17 : vector<16x32xf32>
    %cst_10 = arith.constant -1.22464685E-16 : f32
    %19 = vector.broadcast %cst_10 : f32 to vector<16x32xf32>
    %20 = arith.mulf %19, %15 : vector<16x32xf32>
    %21 = arith.addf %13, %20 : vector<16x32xf32>
    %c3 = arith.constant 3 : index
    %c0_11 = arith.constant 0 : index
    %c0_12 = arith.constant 0 : index
    %22 = vector.load %arg1[%c3, %c0_11, %c0_12] : memref<8x16x32xf32, #tpu.memory_space<vmem>>, vector<1x16x32xf32>
    %23 = vector.shape_cast %22 : vector<1x16x32xf32> to vector<16x32xf32>
    %cst_13 = arith.constant -1.83697015E-16 : f32
    %24 = vector.broadcast %cst_13 : f32 to vector<16x32xf32>
    %25 = arith.mulf %24, %23 : vector<16x32xf32>
    %26 = arith.addf %18, %25 : vector<16x32xf32>
    %cst_14 = arith.constant 1.000000e+00 : f32
    %27 = vector.broadcast %cst_14 : f32 to vector<16x32xf32>
    %28 = arith.mulf %27, %23 : vector<16x32xf32>
    %29 = arith.addf %21, %28 : vector<16x32xf32>
    %c4 = arith.constant 4 : index
    %c0_15 = arith.constant 0 : index
    %c0_16 = arith.constant 0 : index
    %30 = vector.load %arg1[%c4, %c0_15, %c0_16] : memref<8x16x32xf32, #tpu.memory_space<vmem>>, vector<1x16x32xf32>
    %31 = vector.shape_cast %30 : vector<1x16x32xf32> to vector<16x32xf32>
    %cst_17 = arith.constant 1.000000e+00 : f32
    %32 = vector.broadcast %cst_17 : f32 to vector<16x32xf32>
    %33 = arith.mulf %32, %31 : vector<16x32xf32>
    %34 = arith.addf %26, %33 : vector<16x32xf32>
    %cst_18 = arith.constant 2.44929371E-16 : f32
    %35 = vector.broadcast %cst_18 : f32 to vector<16x32xf32>
    %36 = arith.mulf %35, %31 : vector<16x32xf32>
    %37 = arith.addf %29, %36 : vector<16x32xf32>
    %c5 = arith.constant 5 : index
    %c0_19 = arith.constant 0 : index
    %c0_20 = arith.constant 0 : index
    %38 = vector.load %arg1[%c5, %c0_19, %c0_20] : memref<8x16x32xf32, #tpu.memory_space<vmem>>, vector<1x16x32xf32>
    %39 = vector.shape_cast %38 : vector<1x16x32xf32> to vector<16x32xf32>
    %cst_21 = arith.constant 3.061617E-16 : f32
    %40 = vector.broadcast %cst_21 : f32 to vector<16x32xf32>
    %41 = arith.mulf %40, %39 : vector<16x32xf32>
    %42 = arith.addf %34, %41 : vector<16x32xf32>
    %cst_22 = arith.constant -1.000000e+00 : f32
    %43 = vector.broadcast %cst_22 : f32 to vector<16x32xf32>
    %44 = arith.mulf %43, %39 : vector<16x32xf32>
    %45 = arith.addf %37, %44 : vector<16x32xf32>
    %c6 = arith.constant 6 : index
    %c0_23 = arith.constant 0 : index
    %c0_24 = arith.constant 0 : index
    %46 = vector.load %arg1[%c6, %c0_23, %c0_24] : memref<8x16x32xf32, #tpu.memory_space<vmem>>, vector<1x16x32xf32>
    %47 = vector.shape_cast %46 : vector<1x16x32xf32> to vector<16x32xf32>
    %cst_25 = arith.constant -1.000000e+00 : f32
    %48 = vector.broadcast %cst_25 : f32 to vector<16x32xf32>
    %49 = arith.mulf %48, %47 : vector<16x32xf32>
    %50 = arith.addf %42, %49 : vector<16x32xf32>
    %cst_26 = arith.constant -3.67394029E-16 : f32
    %51 = vector.broadcast %cst_26 : f32 to vector<16x32xf32>
    %52 = arith.mulf %51, %47 : vector<16x32xf32>
    %53 = arith.addf %45, %52 : vector<16x32xf32>
    %c7 = arith.constant 7 : index
    %c0_27 = arith.constant 0 : index
    %c0_28 = arith.constant 0 : index
    %54 = vector.load %arg1[%c7, %c0_27, %c0_28] : memref<8x16x32xf32, #tpu.memory_space<vmem>>, vector<1x16x32xf32>
    %55 = vector.shape_cast %54 : vector<1x16x32xf32> to vector<16x32xf32>
    %cst_29 = arith.constant -4.28626385E-16 : f32
    %56 = vector.broadcast %cst_29 : f32 to vector<16x32xf32>
    %57 = arith.mulf %56, %55 : vector<16x32xf32>
    %58 = arith.addf %50, %57 : vector<16x32xf32>
    %cst_30 = arith.constant 1.000000e+00 : f32
    %59 = vector.broadcast %cst_30 : f32 to vector<16x32xf32>
    %60 = arith.mulf %59, %55 : vector<16x32xf32>
    %61 = arith.addf %53, %60 : vector<16x32xf32>
    %c0_31 = arith.constant 0 : index
    %c0_32 = arith.constant 0 : index
    %c0_33 = arith.constant 0 : index
    %c0_34 = arith.constant 0 : index
    %62 = vector.load %arg2[%c0_31, %c0_32, %c0_33, %c0_34] : memref<2x2x16x32xf32, #tpu.memory_space<vmem>>, vector<1x1x16x32xf32>
    %63 = vector.shape_cast %62 : vector<1x1x16x32xf32> to vector<16x32xf32>
    %64 = vector.shape_cast %58 : vector<16x32xf32> to vector<1x1x16x32xf32>
    tpu.vector_store %arg2[%c0_31, %c0_32, %c0_33, %c0_34], %64 {strides = array<i32>} : memref<2x2x16x32xf32, #tpu.memory_space<vmem>>, vector<1x1x16x32xf32>,
    %c1_35 = arith.constant 1 : index
    %c0_36 = arith.constant 0 : index
    %c0_37 = arith.constant 0 : index
    %c0_38 = arith.constant 0 : index
    %65 = vector.load %arg2[%c1_35, %c0_36, %c0_37, %c0_38] : memref<2x2x16x32xf32, #tpu.memory_space<vmem>>, vector<1x1x16x32xf32>
    %66 = vector.shape_cast %65 : vector<1x1x16x32xf32> to vector<16x32xf32>
    %67 = vector.shape_cast %61 : vector<16x32xf32> to vector<1x1x16x32xf32>
    tpu.vector_store %arg2[%c1_35, %c0_36, %c0_37, %c0_38], %67 {strides = array<i32>} : memref<2x2x16x32xf32, #tpu.memory_space<vmem>>, vector<1x1x16x32xf32>,
    %c0_39 = arith.constant 0 : index
    %c0_40 = arith.constant 0 : index
    %c0_41 = arith.constant 0 : index
    %68 = vector.load %arg1[%c0_39, %c0_40, %c0_41] : memref<8x16x32xf32, #tpu.memory_space<vmem>>, vector<1x16x32xf32>
    %69 = vector.shape_cast %68 : vector<1x16x32xf32> to vector<16x32xf32>
    %cst_42 = arith.constant 1.000000e+00 : f32
    %70 = vector.broadcast %cst_42 : f32 to vector<16x32xf32>
    %71 = arith.mulf %70, %69 : vector<16x32xf32>
    %cst_43 = arith.constant -0.000000e+00 : f32
    %72 = vector.broadcast %cst_43 : f32 to vector<16x32xf32>
    %73 = arith.mulf %72, %69 : vector<16x32xf32>
    %c1_44 = arith.constant 1 : index
    %c0_45 = arith.constant 0 : index
    %c0_46 = arith.constant 0 : index
    %74 = vector.load %arg1[%c1_44, %c0_45, %c0_46] : memref<8x16x32xf32, #tpu.memory_space<vmem>>, vector<1x16x32xf32>
    %75 = vector.shape_cast %74 : vector<1x16x32xf32> to vector<16x32xf32>
    %cst_47 = arith.constant -0.707106769 : f32
    %76 = vector.broadcast %cst_47 : f32 to vector<16x32xf32>
    %77 = arith.mulf %76, %75 : vector<16x32xf32>
    %78 = arith.addf %71, %77 : vector<16x32xf32>
    %cst_48 = arith.constant -0.707106769 : f32
    %79 = vector.broadcast %cst_48 : f32 to vector<16x32xf32>
    %80 = arith.mulf %79, %75 : vector<16x32xf32>
    %81 = arith.addf %73, %80 : vector<16x32xf32>
    %c2_49 = arith.constant 2 : index
    %c0_50 = arith.constant 0 : index
    %c0_51 = arith.constant 0 : index
    %82 = vector.load %arg1[%c2_49, %c0_50, %c0_51] : memref<8x16x32xf32, #tpu.memory_space<vmem>>, vector<1x16x32xf32>
    %83 = vector.shape_cast %82 : vector<1x16x32xf32> to vector<16x32xf32>
    %cst_52 = arith.constant -1.83697015E-16 : f32
    %84 = vector.broadcast %cst_52 : f32 to vector<16x32xf32>
    %85 = arith.mulf %84, %83 : vector<16x32xf32>
    %86 = arith.addf %78, %85 : vector<16x32xf32>
    %cst_53 = arith.constant 1.000000e+00 : f32
    %87 = vector.broadcast %cst_53 : f32 to vector<16x32xf32>
    %88 = arith.mulf %87, %83 : vector<16x32xf32>
    %89 = arith.addf %81, %88 : vector<16x32xf32>
    %c3_54 = arith.constant 3 : index
    %c0_55 = arith.constant 0 : index
    %c0_56 = arith.constant 0 : index
    %90 = vector.load %arg1[%c3_54, %c0_55, %c0_56] : memref<8x16x32xf32, #tpu.memory_space<vmem>>, vector<1x16x32xf32>
    %91 = vector.shape_cast %90 : vector<1x16x32xf32> to vector<16x32xf32>
    %cst_57 = arith.constant 0.707106769 : f32
    %92 = vector.broadcast %cst_57 : f32 to vector<16x32xf32>
    %93 = arith.mulf %92, %91 : vector<16x32xf32>
    %94 = arith.addf %86, %93 : vector<16x32xf32>
    %cst_58 = arith.constant -0.707106769 : f32
    %95 = vector.broadcast %cst_58 : f32 to vector<16x32xf32>
    %96 = arith.mulf %95, %91 : vector<16x32xf32>
    %97 = arith.addf %89, %96 : vector<16x32xf32>
    %c4_59 = arith.constant 4 : index
    %c0_60 = arith.constant 0 : index
    %c0_61 = arith.constant 0 : index
    %98 = vector.load %arg1[%c4_59, %c0_60, %c0_61] : memref<8x16x32xf32, #tpu.memory_space<vmem>>, vector<1x16x32xf32>
    %99 = vector.shape_cast %98 : vector<1x16x32xf32> to vector<16x32xf32>
    %cst_62 = arith.constant -1.000000e+00 : f32
    %100 = vector.broadcast %cst_62 : f32 to vector<16x32xf32>
    %101 = arith.mulf %100, %99 : vector<16x32xf32>
    %102 = arith.addf %94, %101 : vector<16x32xf32>
    %cst_63 = arith.constant -3.67394029E-16 : f32
    %103 = vector.broadcast %cst_63 : f32 to vector<16x32xf32>
    %104 = arith.mulf %103, %99 : vector<16x32xf32>
    %105 = arith.addf %97, %104 : vector<16x32xf32>
    %c5_64 = arith.constant 5 : index
    %c0_65 = arith.constant 0 : index
    %c0_66 = arith.constant 0 : index
    %106 = vector.load %arg1[%c5_64, %c0_65, %c0_66] : memref<8x16x32xf32, #tpu.memory_space<vmem>>, vector<1x16x32xf32>
    %107 = vector.shape_cast %106 : vector<1x16x32xf32> to vector<16x32xf32>
    %cst_67 = arith.constant 0.707106769 : f32
    %108 = vector.broadcast %cst_67 : f32 to vector<16x32xf32>
    %109 = arith.mulf %108, %107 : vector<16x32xf32>
    %110 = arith.addf %102, %109 : vector<16x32xf32>
    %cst_68 = arith.constant 0.707106769 : f32
    %111 = vector.broadcast %cst_68 : f32 to vector<16x32xf32>
    %112 = arith.mulf %111, %107 : vector<16x32xf32>
    %113 = arith.addf %105, %112 : vector<16x32xf32>
    %c6_69 = arith.constant 6 : index
    %c0_70 = arith.constant 0 : index
    %c0_71 = arith.constant 0 : index
    %114 = vector.load %arg1[%c6_69, %c0_70, %c0_71] : memref<8x16x32xf32, #tpu.memory_space<vmem>>, vector<1x16x32xf32>
    %115 = vector.shape_cast %114 : vector<1x16x32xf32> to vector<16x32xf32>
    %cst_72 = arith.constant 5.5109107E-16 : f32
    %116 = vector.broadcast %cst_72 : f32 to vector<16x32xf32>
    %117 = arith.mulf %116, %115 : vector<16x32xf32>
    %118 = arith.addf %110, %117 : vector<16x32xf32>
    %cst_73 = arith.constant -1.000000e+00 : f32
    %119 = vector.broadcast %cst_73 : f32 to vector<16x32xf32>
    %120 = arith.mulf %119, %115 : vector<16x32xf32>
    %121 = arith.addf %113, %120 : vector<16x32xf32>
    %c7_74 = arith.constant 7 : index
    %c0_75 = arith.constant 0 : index
    %c0_76 = arith.constant 0 : index
    %122 = vector.load %arg1[%c7_74, %c0_75, %c0_76] : memref<8x16x32xf32, #tpu.memory_space<vmem>>, vector<1x16x32xf32>
    %123 = vector.shape_cast %122 : vector<1x16x32xf32> to vector<16x32xf32>
    %cst_77 = arith.constant -0.707106769 : f32
    %124 = vector.broadcast %cst_77 : f32 to vector<16x32xf32>
    %125 = arith.mulf %124, %123 : vector<16x32xf32>
    %126 = arith.addf %118, %125 : vector<16x32xf32>
    %cst_78 = arith.constant 0.707106769 : f32
    %127 = vector.broadcast %cst_78 : f32 to vector<16x32xf32>
    %128 = arith.mulf %127, %123 : vector<16x32xf32>
    %129 = arith.addf %121, %128 : vector<16x32xf32>
    %c0_79 = arith.constant 0 : index
    %c1_80 = arith.constant 1 : index
    %c0_81 = arith.constant 0 : index
    %c0_82 = arith.constant 0 : index
    %130 = vector.load %arg2[%c0_79, %c1_80, %c0_81, %c0_82] : memref<2x2x16x32xf32, #tpu.memory_space<vmem>>, vector<1x1x16x32xf32>
    %131 = vector.shape_cast %130 : vector<1x1x16x32xf32> to vector<16x32xf32>
    %132 = vector.shape_cast %126 : vector<16x32xf32> to vector<1x1x16x32xf32>
    tpu.vector_store %arg2[%c0_79, %c1_80, %c0_81, %c0_82], %132 {strides = array<i32>} : memref<2x2x16x32xf32, #tpu.memory_space<vmem>>, vector<1x1x16x32xf32>,
    %c1_83 = arith.constant 1 : index
    %c1_84 = arith.constant 1 : index
    %c0_85 = arith.constant 0 : index
    %c0_86 = arith.constant 0 : index
    %133 = vector.load %arg2[%c1_83, %c1_84, %c0_85, %c0_86] : memref<2x2x16x32xf32, #tpu.memory_space<vmem>>, vector<1x1x16x32xf32>
    %134 = vector.shape_cast %133 : vector<1x1x16x32xf32> to vector<16x32xf32>
    %135 = vector.shape_cast %129 : vector<16x32xf32> to vector<1x1x16x32xf32>
    tpu.vector_store %arg2[%c1_83, %c1_84, %c0_85, %c0_86], %135 {strides = array<i32>} : memref<2x2x16x32xf32, #tpu.memory_space<vmem>>, vector<1x1x16x32xf32>,
    return
  }
  func.func @transform_0(%arg0: i32) -> (i32, i32, i32) {
    %c0_i32 = arith.constant 0 : i32
    %c0_i32_0 = arith.constant 0 : i32
    %c0_i32_1 = arith.constant 0 : i32
    return %c0_i32, %arg0, %c0_i32_0 : i32, i32, i32
  }
  func.func @transform_1(%arg0: i32) -> (i32, i32, i32, i32) {
    %c0_i32 = arith.constant 0 : i32
    %c0_i32_0 = arith.constant 0 : i32
    %c0_i32_1 = arith.constant 0 : i32
    %c0_i32_2 = arith.constant 0 : i32
    return %c0_i32, %c0_i32_0, %arg0, %c0_i32_1 : i32, i32, i32, i32
  }
}

module attributes {stable_mosaic.version = 11 : i64} {
  func.func @kernel(%arg0: i32, %arg1: i32, %arg2: i32, %arg3: memref<64x128xf32, #tpu.memory_space<vmem>>, %arg4: memref<128x128xf32, #tpu.memory_space<vmem>>, %arg5: memref<1x128xf32, #tpu.memory_space<vmem>>, %arg6: memref<64x128xf32, #tpu.memory_space<vmem>>, %arg7: memref<64x128xf32, #tpu.memory_space<vmem>>) attributes {dimension_semantics = [#tpu.dimension_semantics<parallel>, #tpu.dimension_semantics<parallel>, #tpu.dimension_semantics<arbitrary>], iteration_bounds = array<i64: 1, 1, 1>, scalar_prefetch = 0 : i64, scratch_operands = 1 : i64, tpu.core_type = #tpu.core_type<tc>, window_params = [{transform_indices = @transform_0, window_bounds = array<i64: 64, 128>}, {transform_indices = @transform_1, window_bounds = array<i64: 128, 128>}, {transform_indices = @transform_2, window_bounds = array<i64: 1, 128>}, {transform_indices = @transform_3, window_bounds = array<i64: 64, 128>}]} {
    %c0_i32 = arith.constant 0 : i32
    %0 = arith.cmpi eq, %arg2, %c0_i32 : i32
    %1 = arith.extui %0 : i1 to i32
    %c0_i32_0 = arith.constant 0 : i32
    %2 = arith.cmpi ne, %1, %c0_i32_0 : i32
    scf.if %2 {
      %cst_10 = arith.constant 0.000000e+00 : f32
      %12 = vector.broadcast %cst_10 : f32 to vector<64x128xf32>
      %c0_11 = arith.constant 0 : index
      %c0_12 = arith.constant 0 : index
      %13 = vector.load %arg7[%c0_11, %c0_12] : memref<64x128xf32, #tpu.memory_space<vmem>>, vector<64x128xf32>
      tpu.vector_store %arg7[%c0_11, %c0_12], %12 {strides = array<i32>} : memref<64x128xf32, #tpu.memory_space<vmem>>, vector<64x128xf32>,
    } else {
    }
    %c0 = arith.constant 0 : index
    %c0_1 = arith.constant 0 : index
    %3 = vector.load %arg7[%c0, %c0_1] : memref<64x128xf32, #tpu.memory_space<vmem>>, vector<64x128xf32>
    %c0_2 = arith.constant 0 : index
    %c0_3 = arith.constant 0 : index
    %4 = vector.load %arg3[%c0_2, %c0_3] : memref<64x128xf32, #tpu.memory_space<vmem>>, vector<64x128xf32>
    %c0_4 = arith.constant 0 : index
    %c0_5 = arith.constant 0 : index
    %5 = vector.load %arg4[%c0_4, %c0_5] : memref<128x128xf32, #tpu.memory_space<vmem>>, vector<128x128xf32>
    %cst = arith.constant dense<0.000000e+00> : vector<64x128xf32>
    %6 = tpu.matmul %4, %5, %cst {dimension_numbers = #tpu.dot_dimension_numbers<[1], [0], [0], [1], [0, 0, 1, 1], [], []>, precision = #tpu.contract_precision<fp32>} : vector<64x128xf32>, vector<128x128xf32>, vector<64x128xf32> -> vector<64x128xf32>
    %7 = arith.addf %3, %6 : vector<64x128xf32>
    %c0_6 = arith.constant 0 : index
    %c0_7 = arith.constant 0 : index
    %8 = vector.load %arg7[%c0_6, %c0_7] : memref<64x128xf32, #tpu.memory_space<vmem>>, vector<64x128xf32>
    tpu.vector_store %arg7[%c0_6, %c0_7], %7 {strides = array<i32>} : memref<64x128xf32, #tpu.memory_space<vmem>>, vector<64x128xf32>,
    %c0_i32_8 = arith.constant 0 : i32
    %9 = arith.cmpi eq, %arg2, %c0_i32_8 : i32
    %10 = arith.extui %9 : i1 to i32
    %c0_i32_9 = arith.constant 0 : i32
    %11 = arith.cmpi ne, %10, %c0_i32_9 : i32
    scf.if %11 {
      %c0_10 = arith.constant 0 : index
      %c0_11 = arith.constant 0 : index
      %12 = vector.load %arg7[%c0_10, %c0_11] : memref<64x128xf32, #tpu.memory_space<vmem>>, vector<64x128xf32>
      %c0_12 = arith.constant 0 : index
      %c0_13 = arith.constant 0 : index
      %13 = vector.load %arg5[%c0_12, %c0_13] : memref<1x128xf32, #tpu.memory_space<vmem>>, vector<1x128xf32>
      %14 = vector.broadcast %13 : vector<1x128xf32> to vector<64x128xf32>
      %15 = arith.addf %12, %14 : vector<64x128xf32>
      %c0_14 = arith.constant 0 : index
      %c0_15 = arith.constant 0 : index
      %16 = vector.load %arg6[%c0_14, %c0_15] : memref<64x128xf32, #tpu.memory_space<vmem>>, vector<64x128xf32>
      tpu.vector_store %arg6[%c0_14, %c0_15], %15 {strides = array<i32>} : memref<64x128xf32, #tpu.memory_space<vmem>>, vector<64x128xf32>,
    } else {
    }
    return
  }
  func.func @transform_0(%arg0: i32, %arg1: i32, %arg2: i32) -> (i32, i32) {
    %c0_i32 = arith.constant 0 : i32
    return %arg0, %arg2 : i32, i32
  }
  func.func @transform_1(%arg0: i32, %arg1: i32, %arg2: i32) -> (i32, i32) {
    %c0_i32 = arith.constant 0 : i32
    return %arg2, %arg1 : i32, i32
  }
  func.func @transform_2(%arg0: i32, %arg1: i32, %arg2: i32) -> (i32, i32) {
    %c0_i32 = arith.constant 0 : i32
    %c0_i32_0 = arith.constant 0 : i32
    return %c0_i32, %arg1 : i32, i32
  }
  func.func @transform_3(%arg0: i32, %arg1: i32, %arg2: i32) -> (i32, i32) {
    %c0_i32 = arith.constant 0 : i32
    return %arg0, %arg1 : i32, i32
  }
}

module attributes {stable_mosaic.version = 11 : i64} {
  func.func @kernel(%arg0: i32, %arg1: i32, %arg2: i32, %arg3: memref<64x128xf32, #tpu.memory_space<vmem>>, %arg4: memref<128x128xf32, #tpu.memory_space<vmem>>, %arg5: memref<1x128xf32, #tpu.memory_space<vmem>>, %arg6: memref<64x128xf32, #tpu.memory_space<vmem>>, %arg7: memref<64x128xf32, #tpu.memory_space<vmem>>) attributes {dimension_semantics = [#tpu.dimension_semantics<parallel>, #tpu.dimension_semantics<parallel>, #tpu.dimension_semantics<arbitrary>], iteration_bounds = array<i64: 1, 1, 1>, scalar_prefetch = 0 : i64, scratch_operands = 1 : i64, tpu.core_type = #tpu.core_type<tc>, window_params = [{transform_indices = @transform_0, window_bounds = array<i64: 64, 128>}, {transform_indices = @transform_1, window_bounds = array<i64: 128, 128>}, {transform_indices = @transform_2, window_bounds = array<i64: 1, 128>}, {transform_indices = @transform_3, window_bounds = array<i64: 64, 128>}]} {
    %c0_i32 = arith.constant 0 : i32
    %0 = arith.cmpi eq, %arg2, %c0_i32 : i32
    %1 = arith.extui %0 : i1 to i32
    %c0_i32_0 = arith.constant 0 : i32
    %2 = arith.cmpi ne, %1, %c0_i32_0 : i32
    scf.if %2 {
      %cst_10 = arith.constant 0.000000e+00 : f32
      %12 = vector.broadcast %cst_10 : f32 to vector<64x128xf32>
      %c0_11 = arith.constant 0 : index
      %c0_12 = arith.constant 0 : index
      %13 = vector.load %arg7[%c0_11, %c0_12] : memref<64x128xf32, #tpu.memory_space<vmem>>, vector<64x128xf32>
      tpu.vector_store %arg7[%c0_11, %c0_12], %12 {strides = array<i32>} : memref<64x128xf32, #tpu.memory_space<vmem>>, vector<64x128xf32>,
    } else {
    }
    %c0 = arith.constant 0 : index
    %c0_1 = arith.constant 0 : index
    %3 = vector.load %arg7[%c0, %c0_1] : memref<64x128xf32, #tpu.memory_space<vmem>>, vector<64x128xf32>
    %c0_2 = arith.constant 0 : index
    %c0_3 = arith.constant 0 : index
    %4 = vector.load %arg3[%c0_2, %c0_3] : memref<64x128xf32, #tpu.memory_space<vmem>>, vector<64x128xf32>
    %c0_4 = arith.constant 0 : index
    %c0_5 = arith.constant 0 : index
    %5 = vector.load %arg4[%c0_4, %c0_5] : memref<128x128xf32, #tpu.memory_space<vmem>>, vector<128x128xf32>
    %cst = arith.constant dense<0.000000e+00> : vector<64x128xf32>
    %6 = tpu.matmul %4, %5, %cst {dimension_numbers = #tpu.dot_dimension_numbers<[1], [0], [0], [1], [0, 0, 1, 1], [], []>, precision = #tpu.contract_precision<fp32>} : vector<64x128xf32>, vector<128x128xf32>, vector<64x128xf32> -> vector<64x128xf32>
    %7 = arith.addf %3, %6 : vector<64x128xf32>
    %c0_6 = arith.constant 0 : index
    %c0_7 = arith.constant 0 : index
    %8 = vector.load %arg7[%c0_6, %c0_7] : memref<64x128xf32, #tpu.memory_space<vmem>>, vector<64x128xf32>
    tpu.vector_store %arg7[%c0_6, %c0_7], %7 {strides = array<i32>} : memref<64x128xf32, #tpu.memory_space<vmem>>, vector<64x128xf32>,
    %c0_i32_8 = arith.constant 0 : i32
    %9 = arith.cmpi eq, %arg2, %c0_i32_8 : i32
    %10 = arith.extui %9 : i1 to i32
    %c0_i32_9 = arith.constant 0 : i32
    %11 = arith.cmpi ne, %10, %c0_i32_9 : i32
    scf.if %11 {
      %c0_10 = arith.constant 0 : index
      %c0_11 = arith.constant 0 : index
      %12 = vector.load %arg7[%c0_10, %c0_11] : memref<64x128xf32, #tpu.memory_space<vmem>>, vector<64x128xf32>
      %c0_12 = arith.constant 0 : index
      %c0_13 = arith.constant 0 : index
      %13 = vector.load %arg5[%c0_12, %c0_13] : memref<1x128xf32, #tpu.memory_space<vmem>>, vector<1x128xf32>
      %14 = vector.broadcast %13 : vector<1x128xf32> to vector<64x128xf32>
      %15 = arith.addf %12, %14 : vector<64x128xf32>
      %c0_14 = arith.constant 0 : index
      %c0_15 = arith.constant 0 : index
      %16 = vector.load %arg6[%c0_14, %c0_15] : memref<64x128xf32, #tpu.memory_space<vmem>>, vector<64x128xf32>
      tpu.vector_store %arg6[%c0_14, %c0_15], %15 {strides = array<i32>} : memref<64x128xf32, #tpu.memory_space<vmem>>, vector<64x128xf32>,
    } else {
    }
    return
  }
  func.func @transform_0(%arg0: i32, %arg1: i32, %arg2: i32) -> (i32, i32) {
    %c0_i32 = arith.constant 0 : i32
    return %arg0, %arg2 : i32, i32
  }
  func.func @transform_1(%arg0: i32, %arg1: i32, %arg2: i32) -> (i32, i32) {
    %c0_i32 = arith.constant 0 : i32
    return %arg2, %arg1 : i32, i32
  }
  func.func @transform_2(%arg0: i32, %arg1: i32, %arg2: i32) -> (i32, i32) {
    %c0_i32 = arith.constant 0 : i32
    %c0_i32_0 = arith.constant 0 : i32
    return %c0_i32, %arg1 : i32, i32
  }
  func.func @transform_3(%arg0: i32, %arg1: i32, %arg2: i32) -> (i32, i32) {
    %c0_i32 = arith.constant 0 : i32
    return %arg0, %arg1 : i32, i32
  }
}

module attributes {stable_mosaic.version = 11 : i64} {
  func.func @kernel(%arg0: i32, %arg1: memref<64x32xf32, #tpu.memory_space<vmem>>, %arg2: memref<64x32xf32, #tpu.memory_space<vmem>>, %arg3: memref<1x32xf32, #tpu.memory_space<vmem>>, %arg4: memref<1x32xf32, #tpu.memory_space<vmem>>, %arg5: memref<64x32xf32, #tpu.memory_space<vmem>>) attributes {dimension_semantics = [#tpu.dimension_semantics<parallel>], iteration_bounds = array<i64: 1>, scalar_prefetch = 0 : i64, scratch_operands = 0 : i64, tpu.core_type = #tpu.core_type<tc>, window_params = [{transform_indices = @transform_0, window_bounds = array<i64: 64, 32>}, {transform_indices = @transform_1, window_bounds = array<i64: 64, 32>}, {pipeline_mode = #tpu.pipeline_mode<synchronous>, transform_indices = @transform_2, window_bounds = array<i64: 1, 32>}, {pipeline_mode = #tpu.pipeline_mode<synchronous>, transform_indices = @transform_3, window_bounds = array<i64: 1, 32>}, {transform_indices = @transform_4, window_bounds = array<i64: 64, 32>}]} {
    %c0 = arith.constant 0 : index
    %c0_0 = arith.constant 0 : index
    %0 = vector.load %arg1[%c0, %c0_0] : memref<64x32xf32, #tpu.memory_space<vmem>>, vector<64x32xf32>
    %c0_1 = arith.constant 0 : index
    %c0_2 = arith.constant 0 : index
    %1 = vector.load %arg2[%c0_1, %c0_2] : memref<64x32xf32, #tpu.memory_space<vmem>>, vector<64x32xf32>
    %2 = arith.addf %0, %1 : vector<64x32xf32>
    %cst = arith.constant dense<0.000000e+00> : vector<64xf32>
    %3 = vector.multi_reduction <add>, %2, %cst [1] : vector<64x32xf32> to vector<64xf32>
    %4 = vector.shape_cast %3 : vector<64xf32> to vector<64x1xf32>
    %cst_3 = arith.constant 3.200000e+01 : f32
    %5 = vector.broadcast %cst_3 : f32 to vector<64x1xf32>
    %6 = arith.divf %4, %5 : vector<64x1xf32>
    %7 = vector.broadcast %6 : vector<64x1xf32> to vector<64x32xf32>
    %8 = arith.subf %2, %7 : vector<64x32xf32>
    %9 = arith.mulf %8, %8 : vector<64x32xf32>
    %cst_4 = arith.constant dense<0.000000e+00> : vector<64xf32>
    %10 = vector.multi_reduction <add>, %9, %cst_4 [1] : vector<64x32xf32> to vector<64xf32>
    %11 = vector.shape_cast %10 : vector<64xf32> to vector<64x1xf32>
    %cst_5 = arith.constant 3.200000e+01 : f32
    %12 = vector.broadcast %cst_5 : f32 to vector<64x1xf32>
    %13 = arith.divf %11, %12 : vector<64x1xf32>
    %cst_6 = arith.constant 9.99999974E-6 : f32
    %14 = vector.broadcast %cst_6 : f32 to vector<64x1xf32>
    %15 = arith.addf %13, %14 : vector<64x1xf32>
    %16 = math.rsqrt %15 : vector<64x1xf32>
    %17 = vector.broadcast %16 : vector<64x1xf32> to vector<64x32xf32>
    %18 = arith.mulf %8, %17 : vector<64x32xf32>
    %c0_7 = arith.constant 0 : index
    %c0_8 = arith.constant 0 : index
    %19 = vector.load %arg3[%c0_7, %c0_8] : memref<1x32xf32, #tpu.memory_space<vmem>>, vector<1x32xf32>
    %20 = vector.broadcast %19 : vector<1x32xf32> to vector<64x32xf32>
    %21 = arith.mulf %18, %20 : vector<64x32xf32>
    %c0_9 = arith.constant 0 : index
    %c0_10 = arith.constant 0 : index
    %22 = vector.load %arg4[%c0_9, %c0_10] : memref<1x32xf32, #tpu.memory_space<vmem>>, vector<1x32xf32>
    %23 = vector.broadcast %22 : vector<1x32xf32> to vector<64x32xf32>
    %24 = arith.addf %21, %23 : vector<64x32xf32>
    %c0_11 = arith.constant 0 : index
    %c0_12 = arith.constant 0 : index
    %25 = vector.load %arg5[%c0_11, %c0_12] : memref<64x32xf32, #tpu.memory_space<vmem>>, vector<64x32xf32>
    tpu.vector_store %arg5[%c0_11, %c0_12], %24 {strides = array<i32>} : memref<64x32xf32, #tpu.memory_space<vmem>>, vector<64x32xf32>,
    return
  }
  func.func @transform_0(%arg0: i32) -> (i32, i32) {
    %c0_i32 = arith.constant 0 : i32
    %c0_i32_0 = arith.constant 0 : i32
    return %arg0, %c0_i32 : i32, i32
  }
  func.func @transform_1(%arg0: i32) -> (i32, i32) {
    %c0_i32 = arith.constant 0 : i32
    %c0_i32_0 = arith.constant 0 : i32
    return %arg0, %c0_i32 : i32, i32
  }
  func.func @transform_2(%arg0: i32) -> (i32, i32) {
    %c0_i32 = arith.constant 0 : i32
    %c0_i32_0 = arith.constant 0 : i32
    %c0_i32_1 = arith.constant 0 : i32
    return %c0_i32, %c0_i32_0 : i32, i32
  }
  func.func @transform_3(%arg0: i32) -> (i32, i32) {
    %c0_i32 = arith.constant 0 : i32
    %c0_i32_0 = arith.constant 0 : i32
    %c0_i32_1 = arith.constant 0 : i32
    return %c0_i32, %c0_i32_0 : i32, i32
  }
  func.func @transform_4(%arg0: i32) -> (i32, i32) {
    %c0_i32 = arith.constant 0 : i32
    %c0_i32_0 = arith.constant 0 : i32
    return %arg0, %c0_i32 : i32, i32
  }
}

module attributes {stable_mosaic.version = 11 : i64} {
  func.func @kernel(%arg0: i32, %arg1: i32, %arg2: i32, %arg3: memref<64x128xf32, #tpu.memory_space<vmem>>, %arg4: memref<128x128xf32, #tpu.memory_space<vmem>>, %arg5: memref<1x128xf32, #tpu.memory_space<vmem>>, %arg6: memref<64x128xf32, #tpu.memory_space<vmem>>, %arg7: memref<64x128xf32, #tpu.memory_space<vmem>>) attributes {dimension_semantics = [#tpu.dimension_semantics<parallel>, #tpu.dimension_semantics<parallel>, #tpu.dimension_semantics<arbitrary>], iteration_bounds = array<i64: 1, 1, 1>, scalar_prefetch = 0 : i64, scratch_operands = 1 : i64, tpu.core_type = #tpu.core_type<tc>, window_params = [{transform_indices = @transform_0, window_bounds = array<i64: 64, 128>}, {transform_indices = @transform_1, window_bounds = array<i64: 128, 128>}, {transform_indices = @transform_2, window_bounds = array<i64: 1, 128>}, {transform_indices = @transform_3, window_bounds = array<i64: 64, 128>}]} {
    %c0_i32 = arith.constant 0 : i32
    %0 = arith.cmpi eq, %arg2, %c0_i32 : i32
    %1 = arith.extui %0 : i1 to i32
    %c0_i32_0 = arith.constant 0 : i32
    %2 = arith.cmpi ne, %1, %c0_i32_0 : i32
    scf.if %2 {
      %cst_10 = arith.constant 0.000000e+00 : f32
      %12 = vector.broadcast %cst_10 : f32 to vector<64x128xf32>
      %c0_11 = arith.constant 0 : index
      %c0_12 = arith.constant 0 : index
      %13 = vector.load %arg7[%c0_11, %c0_12] : memref<64x128xf32, #tpu.memory_space<vmem>>, vector<64x128xf32>
      tpu.vector_store %arg7[%c0_11, %c0_12], %12 {strides = array<i32>} : memref<64x128xf32, #tpu.memory_space<vmem>>, vector<64x128xf32>,
    } else {
    }
    %c0 = arith.constant 0 : index
    %c0_1 = arith.constant 0 : index
    %3 = vector.load %arg7[%c0, %c0_1] : memref<64x128xf32, #tpu.memory_space<vmem>>, vector<64x128xf32>
    %c0_2 = arith.constant 0 : index
    %c0_3 = arith.constant 0 : index
    %4 = vector.load %arg3[%c0_2, %c0_3] : memref<64x128xf32, #tpu.memory_space<vmem>>, vector<64x128xf32>
    %c0_4 = arith.constant 0 : index
    %c0_5 = arith.constant 0 : index
    %5 = vector.load %arg4[%c0_4, %c0_5] : memref<128x128xf32, #tpu.memory_space<vmem>>, vector<128x128xf32>
    %cst = arith.constant dense<0.000000e+00> : vector<64x128xf32>
    %6 = tpu.matmul %4, %5, %cst {dimension_numbers = #tpu.dot_dimension_numbers<[1], [0], [0], [1], [0, 0, 1, 1], [], []>, precision = #tpu.contract_precision<fp32>} : vector<64x128xf32>, vector<128x128xf32>, vector<64x128xf32> -> vector<64x128xf32>
    %7 = arith.addf %3, %6 : vector<64x128xf32>
    %c0_6 = arith.constant 0 : index
    %c0_7 = arith.constant 0 : index
    %8 = vector.load %arg7[%c0_6, %c0_7] : memref<64x128xf32, #tpu.memory_space<vmem>>, vector<64x128xf32>
    tpu.vector_store %arg7[%c0_6, %c0_7], %7 {strides = array<i32>} : memref<64x128xf32, #tpu.memory_space<vmem>>, vector<64x128xf32>,
    %c0_i32_8 = arith.constant 0 : i32
    %9 = arith.cmpi eq, %arg2, %c0_i32_8 : i32
    %10 = arith.extui %9 : i1 to i32
    %c0_i32_9 = arith.constant 0 : i32
    %11 = arith.cmpi ne, %10, %c0_i32_9 : i32
    scf.if %11 {
      %c0_10 = arith.constant 0 : index
      %c0_11 = arith.constant 0 : index
      %12 = vector.load %arg7[%c0_10, %c0_11] : memref<64x128xf32, #tpu.memory_space<vmem>>, vector<64x128xf32>
      %c0_12 = arith.constant 0 : index
      %c0_13 = arith.constant 0 : index
      %13 = vector.load %arg5[%c0_12, %c0_13] : memref<1x128xf32, #tpu.memory_space<vmem>>, vector<1x128xf32>
      %14 = vector.broadcast %13 : vector<1x128xf32> to vector<64x128xf32>
      %15 = arith.addf %12, %14 : vector<64x128xf32>
      %cst_14 = arith.constant 0.000000e+00 : f32
      %16 = vector.broadcast %cst_14 : f32 to vector<64x128xf32>
      %17 = arith.maximumf %15, %16 : vector<64x128xf32>
      %c0_15 = arith.constant 0 : index
      %c0_16 = arith.constant 0 : index
      %18 = vector.load %arg6[%c0_15, %c0_16] : memref<64x128xf32, #tpu.memory_space<vmem>>, vector<64x128xf32>
      tpu.vector_store %arg6[%c0_15, %c0_16], %17 {strides = array<i32>} : memref<64x128xf32, #tpu.memory_space<vmem>>, vector<64x128xf32>,
    } else {
    }
    return
  }
  func.func @transform_0(%arg0: i32, %arg1: i32, %arg2: i32) -> (i32, i32) {
    %c0_i32 = arith.constant 0 : i32
    return %arg0, %arg2 : i32, i32
  }
  func.func @transform_1(%arg0: i32, %arg1: i32, %arg2: i32) -> (i32, i32) {
    %c0_i32 = arith.constant 0 : i32
    return %arg2, %arg1 : i32, i32
  }
  func.func @transform_2(%arg0: i32, %arg1: i32, %arg2: i32) -> (i32, i32) {
    %c0_i32 = arith.constant 0 : i32
    %c0_i32_0 = arith.constant 0 : i32
    return %c0_i32, %arg1 : i32, i32
  }
  func.func @transform_3(%arg0: i32, %arg1: i32, %arg2: i32) -> (i32, i32) {
    %c0_i32 = arith.constant 0 : i32
    return %arg0, %arg1 : i32, i32
  }
}

module attributes {stable_mosaic.version = 11 : i64} {
  func.func @kernel(%arg0: i32, %arg1: i32, %arg2: i32, %arg3: memref<64x128xf32, #tpu.memory_space<vmem>>, %arg4: memref<128x128xf32, #tpu.memory_space<vmem>>, %arg5: memref<1x128xf32, #tpu.memory_space<vmem>>, %arg6: memref<64x128xf32, #tpu.memory_space<vmem>>, %arg7: memref<64x128xf32, #tpu.memory_space<vmem>>) attributes {dimension_semantics = [#tpu.dimension_semantics<parallel>, #tpu.dimension_semantics<parallel>, #tpu.dimension_semantics<arbitrary>], iteration_bounds = array<i64: 1, 1, 1>, scalar_prefetch = 0 : i64, scratch_operands = 1 : i64, tpu.core_type = #tpu.core_type<tc>, window_params = [{transform_indices = @transform_0, window_bounds = array<i64: 64, 128>}, {transform_indices = @transform_1, window_bounds = array<i64: 128, 128>}, {transform_indices = @transform_2, window_bounds = array<i64: 1, 128>}, {transform_indices = @transform_3, window_bounds = array<i64: 64, 128>}]} {
    %c0_i32 = arith.constant 0 : i32
    %0 = arith.cmpi eq, %arg2, %c0_i32 : i32
    %1 = arith.extui %0 : i1 to i32
    %c0_i32_0 = arith.constant 0 : i32
    %2 = arith.cmpi ne, %1, %c0_i32_0 : i32
    scf.if %2 {
      %cst_10 = arith.constant 0.000000e+00 : f32
      %12 = vector.broadcast %cst_10 : f32 to vector<64x128xf32>
      %c0_11 = arith.constant 0 : index
      %c0_12 = arith.constant 0 : index
      %13 = vector.load %arg7[%c0_11, %c0_12] : memref<64x128xf32, #tpu.memory_space<vmem>>, vector<64x128xf32>
      tpu.vector_store %arg7[%c0_11, %c0_12], %12 {strides = array<i32>} : memref<64x128xf32, #tpu.memory_space<vmem>>, vector<64x128xf32>,
    } else {
    }
    %c0 = arith.constant 0 : index
    %c0_1 = arith.constant 0 : index
    %3 = vector.load %arg7[%c0, %c0_1] : memref<64x128xf32, #tpu.memory_space<vmem>>, vector<64x128xf32>
    %c0_2 = arith.constant 0 : index
    %c0_3 = arith.constant 0 : index
    %4 = vector.load %arg3[%c0_2, %c0_3] : memref<64x128xf32, #tpu.memory_space<vmem>>, vector<64x128xf32>
    %c0_4 = arith.constant 0 : index
    %c0_5 = arith.constant 0 : index
    %5 = vector.load %arg4[%c0_4, %c0_5] : memref<128x128xf32, #tpu.memory_space<vmem>>, vector<128x128xf32>
    %cst = arith.constant dense<0.000000e+00> : vector<64x128xf32>
    %6 = tpu.matmul %4, %5, %cst {dimension_numbers = #tpu.dot_dimension_numbers<[1], [0], [0], [1], [0, 0, 1, 1], [], []>, precision = #tpu.contract_precision<fp32>} : vector<64x128xf32>, vector<128x128xf32>, vector<64x128xf32> -> vector<64x128xf32>
    %7 = arith.addf %3, %6 : vector<64x128xf32>
    %c0_6 = arith.constant 0 : index
    %c0_7 = arith.constant 0 : index
    %8 = vector.load %arg7[%c0_6, %c0_7] : memref<64x128xf32, #tpu.memory_space<vmem>>, vector<64x128xf32>
    tpu.vector_store %arg7[%c0_6, %c0_7], %7 {strides = array<i32>} : memref<64x128xf32, #tpu.memory_space<vmem>>, vector<64x128xf32>,
    %c0_i32_8 = arith.constant 0 : i32
    %9 = arith.cmpi eq, %arg2, %c0_i32_8 : i32
    %10 = arith.extui %9 : i1 to i32
    %c0_i32_9 = arith.constant 0 : i32
    %11 = arith.cmpi ne, %10, %c0_i32_9 : i32
    scf.if %11 {
      %c0_10 = arith.constant 0 : index
      %c0_11 = arith.constant 0 : index
      %12 = vector.load %arg7[%c0_10, %c0_11] : memref<64x128xf32, #tpu.memory_space<vmem>>, vector<64x128xf32>
      %c0_12 = arith.constant 0 : index
      %c0_13 = arith.constant 0 : index
      %13 = vector.load %arg5[%c0_12, %c0_13] : memref<1x128xf32, #tpu.memory_space<vmem>>, vector<1x128xf32>
      %14 = vector.broadcast %13 : vector<1x128xf32> to vector<64x128xf32>
      %15 = arith.addf %12, %14 : vector<64x128xf32>
      %c0_14 = arith.constant 0 : index
      %c0_15 = arith.constant 0 : index
      %16 = vector.load %arg6[%c0_14, %c0_15] : memref<64x128xf32, #tpu.memory_space<vmem>>, vector<64x128xf32>
      tpu.vector_store %arg6[%c0_14, %c0_15], %15 {strides = array<i32>} : memref<64x128xf32, #tpu.memory_space<vmem>>, vector<64x128xf32>,
    } else {
    }
    return
  }
  func.func @transform_0(%arg0: i32, %arg1: i32, %arg2: i32) -> (i32, i32) {
    %c0_i32 = arith.constant 0 : i32
    return %arg0, %arg2 : i32, i32
  }
  func.func @transform_1(%arg0: i32, %arg1: i32, %arg2: i32) -> (i32, i32) {
    %c0_i32 = arith.constant 0 : i32
    return %arg2, %arg1 : i32, i32
  }
  func.func @transform_2(%arg0: i32, %arg1: i32, %arg2: i32) -> (i32, i32) {
    %c0_i32 = arith.constant 0 : i32
    %c0_i32_0 = arith.constant 0 : i32
    return %c0_i32, %arg1 : i32, i32
  }
  func.func @transform_3(%arg0: i32, %arg1: i32, %arg2: i32) -> (i32, i32) {
    %c0_i32 = arith.constant 0 : i32
    return %arg0, %arg1 : i32, i32
  }
}

module attributes {stable_mosaic.version = 11 : i64} {
  func.func @kernel(%arg0: i32, %arg1: memref<2x2x16x32xf32, #tpu.memory_space<vmem>>, %arg2: memref<8x16x32xf32, #tpu.memory_space<vmem>>) attributes {dimension_semantics = [#tpu.dimension_semantics<parallel>], iteration_bounds = array<i64: 1>, scalar_prefetch = 0 : i64, scratch_operands = 0 : i64, tpu.core_type = #tpu.core_type<tc>, window_params = [{transform_indices = @transform_0, window_bounds = array<i64: 2, 2, 16, 32>}, {transform_indices = @transform_1, window_bounds = array<i64: 8, 16, 32>}]} {
    %c0 = arith.constant 0 : index
    %c0_0 = arith.constant 0 : index
    %c0_1 = arith.constant 0 : index
    %c0_2 = arith.constant 0 : index
    %0 = vector.load %arg1[%c0, %c0_0, %c0_1, %c0_2] : memref<2x2x16x32xf32, #tpu.memory_space<vmem>>, vector<1x1x16x32xf32>
    %1 = vector.shape_cast %0 : vector<1x1x16x32xf32> to vector<16x32xf32>
    %cst = arith.constant 2.500000e-01 : f32
    %2 = vector.broadcast %cst : f32 to vector<16x32xf32>
    %3 = arith.mulf %2, %1 : vector<16x32xf32>
    %c1 = arith.constant 1 : index
    %c0_3 = arith.constant 0 : index
    %c0_4 = arith.constant 0 : index
    %c0_5 = arith.constant 0 : index
    %4 = vector.load %arg1[%c1, %c0_3, %c0_4, %c0_5] : memref<2x2x16x32xf32, #tpu.memory_space<vmem>>, vector<1x1x16x32xf32>
    %5 = vector.shape_cast %4 : vector<1x1x16x32xf32> to vector<16x32xf32>
    %cst_6 = arith.constant -0.000000e+00 : f32
    %6 = vector.broadcast %cst_6 : f32 to vector<16x32xf32>
    %7 = arith.mulf %6, %5 : vector<16x32xf32>
    %8 = arith.addf %3, %7 : vector<16x32xf32>
    %c0_7 = arith.constant 0 : index
    %c1_8 = arith.constant 1 : index
    %c0_9 = arith.constant 0 : index
    %c0_10 = arith.constant 0 : index
    %9 = vector.load %arg1[%c0_7, %c1_8, %c0_9, %c0_10] : memref<2x2x16x32xf32, #tpu.memory_space<vmem>>, vector<1x1x16x32xf32>
    %10 = vector.shape_cast %9 : vector<1x1x16x32xf32> to vector<16x32xf32>
    %cst_11 = arith.constant 2.500000e-01 : f32
    %11 = vector.broadcast %cst_11 : f32 to vector<16x32xf32>
    %12 = arith.mulf %11, %10 : vector<16x32xf32>
    %13 = arith.addf %8, %12 : vector<16x32xf32>
    %c1_12 = arith.constant 1 : index
    %c1_13 = arith.constant 1 : index
    %c0_14 = arith.constant 0 : index
    %c0_15 = arith.constant 0 : index
    %14 = vector.load %arg1[%c1_12, %c1_13, %c0_14, %c0_15] : memref<2x2x16x32xf32, #tpu.memory_space<vmem>>, vector<1x1x16x32xf32>
    %15 = vector.shape_cast %14 : vector<1x1x16x32xf32> to vector<16x32xf32>
    %cst_16 = arith.constant -0.000000e+00 : f32
    %16 = vector.broadcast %cst_16 : f32 to vector<16x32xf32>
    %17 = arith.mulf %16, %15 : vector<16x32xf32>
    %18 = arith.addf %13, %17 : vector<16x32xf32>
    %c0_17 = arith.constant 0 : index
    %c0_18 = arith.constant 0 : index
    %c0_19 = arith.constant 0 : index
    %19 = vector.load %arg2[%c0_17, %c0_18, %c0_19] : memref<8x16x32xf32, #tpu.memory_space<vmem>>, vector<1x16x32xf32>
    %20 = vector.shape_cast %19 : vector<1x16x32xf32> to vector<16x32xf32>
    %21 = vector.shape_cast %18 : vector<16x32xf32> to vector<1x16x32xf32>
    tpu.vector_store %arg2[%c0_17, %c0_18, %c0_19], %21 {strides = array<i32>} : memref<8x16x32xf32, #tpu.memory_space<vmem>>, vector<1x16x32xf32>,
    %c0_20 = arith.constant 0 : index
    %c0_21 = arith.constant 0 : index
    %c0_22 = arith.constant 0 : index
    %c0_23 = arith.constant 0 : index
    %22 = vector.load %arg1[%c0_20, %c0_21, %c0_22, %c0_23] : memref<2x2x16x32xf32, #tpu.memory_space<vmem>>, vector<1x1x16x32xf32>
    %23 = vector.shape_cast %22 : vector<1x1x16x32xf32> to vector<16x32xf32>
    %cst_24 = arith.constant 1.53080857E-17 : f32
    %24 = vector.broadcast %cst_24 : f32 to vector<16x32xf32>
    %25 = arith.mulf %24, %23 : vector<16x32xf32>
    %c1_25 = arith.constant 1 : index
    %c0_26 = arith.constant 0 : index
    %c0_27 = arith.constant 0 : index
    %c0_28 = arith.constant 0 : index
    %26 = vector.load %arg1[%c1_25, %c0_26, %c0_27, %c0_28] : memref<2x2x16x32xf32, #tpu.memory_space<vmem>>, vector<1x1x16x32xf32>
    %27 = vector.shape_cast %26 : vector<1x1x16x32xf32> to vector<16x32xf32>
    %cst_29 = arith.constant -2.500000e-01 : f32
    %28 = vector.broadcast %cst_29 : f32 to vector<16x32xf32>
    %29 = arith.mulf %28, %27 : vector<16x32xf32>
    %30 = arith.addf %25, %29 : vector<16x32xf32>
    %c0_30 = arith.constant 0 : index
    %c1_31 = arith.constant 1 : index
    %c0_32 = arith.constant 0 : index
    %c0_33 = arith.constant 0 : index
    %31 = vector.load %arg1[%c0_30, %c1_31, %c0_32, %c0_33] : memref<2x2x16x32xf32, #tpu.memory_space<vmem>>, vector<1x1x16x32xf32>
    %32 = vector.shape_cast %31 : vector<1x1x16x32xf32> to vector<16x32xf32>
    %cst_34 = arith.constant -0.176776692 : f32
    %33 = vector.broadcast %cst_34 : f32 to vector<16x32xf32>
    %34 = arith.mulf %33, %32 : vector<16x32xf32>
    %35 = arith.addf %30, %34 : vector<16x32xf32>
    %c1_35 = arith.constant 1 : index
    %c1_36 = arith.constant 1 : index
    %c0_37 = arith.constant 0 : index
    %c0_38 = arith.constant 0 : index
    %36 = vector.load %arg1[%c1_35, %c1_36, %c0_37, %c0_38] : memref<2x2x16x32xf32, #tpu.memory_space<vmem>>, vector<1x1x16x32xf32>
    %37 = vector.shape_cast %36 : vector<1x1x16x32xf32> to vector<16x32xf32>
    %cst_39 = arith.constant -0.176776692 : f32
    %38 = vector.broadcast %cst_39 : f32 to vector<16x32xf32>
    %39 = arith.mulf %38, %37 : vector<16x32xf32>
    %40 = arith.addf %35, %39 : vector<16x32xf32>
    %c1_40 = arith.constant 1 : index
    %c0_41 = arith.constant 0 : index
    %c0_42 = arith.constant 0 : index
    %41 = vector.load %arg2[%c1_40, %c0_41, %c0_42] : memref<8x16x32xf32, #tpu.memory_space<vmem>>, vector<1x16x32xf32>
    %42 = vector.shape_cast %41 : vector<1x16x32xf32> to vector<16x32xf32>
    %43 = vector.shape_cast %40 : vector<16x32xf32> to vector<1x16x32xf32>
    tpu.vector_store %arg2[%c1_40, %c0_41, %c0_42], %43 {strides = array<i32>} : memref<8x16x32xf32, #tpu.memory_space<vmem>>, vector<1x16x32xf32>,
    %c0_43 = arith.constant 0 : index
    %c0_44 = arith.constant 0 : index
    %c0_45 = arith.constant 0 : index
    %c0_46 = arith.constant 0 : index
    %44 = vector.load %arg1[%c0_43, %c0_44, %c0_45, %c0_46] : memref<2x2x16x32xf32, #tpu.memory_space<vmem>>, vector<1x1x16x32xf32>
    %45 = vector.shape_cast %44 : vector<1x1x16x32xf32> to vector<16x32xf32>
    %cst_47 = arith.constant -2.500000e-01 : f32
    %46 = vector.broadcast %cst_47 : f32 to vector<16x32xf32>
    %47 = arith.mulf %46, %45 : vector<16x32xf32>
    %c1_48 = arith.constant 1 : index
    %c0_49 = arith.constant 0 : index
    %c0_50 = arith.constant 0 : index
    %c0_51 = arith.constant 0 : index
    %48 = vector.load %arg1[%c1_48, %c0_49, %c0_50, %c0_51] : memref<2x2x16x32xf32, #tpu.memory_space<vmem>>, vector<1x1x16x32xf32>
    %49 = vector.shape_cast %48 : vector<1x1x16x32xf32> to vector<16x32xf32>
    %cst_52 = arith.constant -3.06161713E-17 : f32
    %50 = vector.broadcast %cst_52 : f32 to vector<16x32xf32>
    %51 = arith.mulf %50, %49 : vector<16x32xf32>
    %52 = arith.addf %47, %51 : vector<16x32xf32>
    %c0_53 = arith.constant 0 : index
    %c1_54 = arith.constant 1 : index
    %c0_55 = arith.constant 0 : index
    %c0_56 = arith.constant 0 : index
    %53 = vector.load %arg1[%c0_53, %c1_54, %c0_55, %c0_56] : memref<2x2x16x32xf32, #tpu.memory_space<vmem>>, vector<1x1x16x32xf32>
    %54 = vector.shape_cast %53 : vector<1x1x16x32xf32> to vector<16x32xf32>
    %cst_57 = arith.constant -4.59242537E-17 : f32
    %55 = vector.broadcast %cst_57 : f32 to vector<16x32xf32>
    %56 = arith.mulf %55, %54 : vector<16x32xf32>
    %57 = arith.addf %52, %56 : vector<16x32xf32>
    %c1_58 = arith.constant 1 : index
    %c1_59 = arith.constant 1 : index
    %c0_60 = arith.constant 0 : index
    %c0_61 = arith.constant 0 : index
    %58 = vector.load %arg1[%c1_58, %c1_59, %c0_60, %c0_61] : memref<2x2x16x32xf32, #tpu.memory_space<vmem>>, vector<1x1x16x32xf32>
    %59 = vector.shape_cast %58 : vector<1x1x16x32xf32> to vector<16x32xf32>
    %cst_62 = arith.constant 2.500000e-01 : f32
    %60 = vector.broadcast %cst_62 : f32 to vector<16x32xf32>
    %61 = arith.mulf %60, %59 : vector<16x32xf32>
    %62 = arith.addf %57, %61 : vector<16x32xf32>
    %c2 = arith.constant 2 : index
    %c0_63 = arith.constant 0 : index
    %c0_64 = arith.constant 0 : index
    %63 = vector.load %arg2[%c2, %c0_63, %c0_64] : memref<8x16x32xf32, #tpu.memory_space<vmem>>, vector<1x16x32xf32>
    %64 = vector.shape_cast %63 : vector<1x16x32xf32> to vector<16x32xf32>
    %65 = vector.shape_cast %62 : vector<16x32xf32> to vector<1x16x32xf32>
    tpu.vector_store %arg2[%c2, %c0_63, %c0_64], %65 {strides = array<i32>} : memref<8x16x32xf32, #tpu.memory_space<vmem>>, vector<1x16x32xf32>,
    %c0_65 = arith.constant 0 : index
    %c0_66 = arith.constant 0 : index
    %c0_67 = arith.constant 0 : index
    %c0_68 = arith.constant 0 : index
    %66 = vector.load %arg1[%c0_65, %c0_66, %c0_67, %c0_68] : memref<2x2x16x32xf32, #tpu.memory_space<vmem>>, vector<1x1x16x32xf32>
    %67 = vector.shape_cast %66 : vector<1x1x16x32xf32> to vector<16x32xf32>
    %cst_69 = arith.constant -4.59242537E-17 : f32
    %68 = vector.broadcast %cst_69 : f32 to vector<16x32xf32>
    %69 = arith.mulf %68, %67 : vector<16x32xf32>
    %c1_70 = arith.constant 1 : index
    %c0_71 = arith.constant 0 : index
    %c0_72 = arith.constant 0 : index
    %c0_73 = arith.constant 0 : index
    %70 = vector.load %arg1[%c1_70, %c0_71, %c0_72, %c0_73] : memref<2x2x16x32xf32, #tpu.memory_space<vmem>>, vector<1x1x16x32xf32>
    %71 = vector.shape_cast %70 : vector<1x1x16x32xf32> to vector<16x32xf32>
    %cst_74 = arith.constant 2.500000e-01 : f32
    %72 = vector.broadcast %cst_74 : f32 to vector<16x32xf32>
    %73 = arith.mulf %72, %71 : vector<16x32xf32>
    %74 = arith.addf %69, %73 : vector<16x32xf32>
    %c0_75 = arith.constant 0 : index
    %c1_76 = arith.constant 1 : index
    %c0_77 = arith.constant 0 : index
    %c0_78 = arith.constant 0 : index
    %75 = vector.load %arg1[%c0_75, %c1_76, %c0_77, %c0_78] : memref<2x2x16x32xf32, #tpu.memory_space<vmem>>, vector<1x1x16x32xf32>
    %76 = vector.shape_cast %75 : vector<1x1x16x32xf32> to vector<16x32xf32>
    %cst_79 = arith.constant 0.176776692 : f32
    %77 = vector.broadcast %cst_79 : f32 to vector<16x32xf32>
    %78 = arith.mulf %77, %76 : vector<16x32xf32>
    %79 = arith.addf %74, %78 : vector<16x32xf32>
    %c1_80 = arith.constant 1 : index
    %c1_81 = arith.constant 1 : index
    %c0_82 = arith.constant 0 : index
    %c0_83 = arith.constant 0 : index
    %80 = vector.load %arg1[%c1_80, %c1_81, %c0_82, %c0_83] : memref<2x2x16x32xf32, #tpu.memory_space<vmem>>, vector<1x1x16x32xf32>
    %81 = vector.shape_cast %80 : vector<1x1x16x32xf32> to vector<16x32xf32>
    %cst_84 = arith.constant -0.176776692 : f32
    %82 = vector.broadcast %cst_84 : f32 to vector<16x32xf32>
    %83 = arith.mulf %82, %81 : vector<16x32xf32>
    %84 = arith.addf %79, %83 : vector<16x32xf32>
    %c3 = arith.constant 3 : index
    %c0_85 = arith.constant 0 : index
    %c0_86 = arith.constant 0 : index
    %85 = vector.load %arg2[%c3, %c0_85, %c0_86] : memref<8x16x32xf32, #tpu.memory_space<vmem>>, vector<1x16x32xf32>
    %86 = vector.shape_cast %85 : vector<1x16x32xf32> to vector<16x32xf32>
    %87 = vector.shape_cast %84 : vector<16x32xf32> to vector<1x16x32xf32>
    tpu.vector_store %arg2[%c3, %c0_85, %c0_86], %87 {strides = array<i32>} : memref<8x16x32xf32, #tpu.memory_space<vmem>>, vector<1x16x32xf32>,
    %c0_87 = arith.constant 0 : index
    %c0_88 = arith.constant 0 : index
    %c0_89 = arith.constant 0 : index
    %c0_90 = arith.constant 0 : index
    %88 = vector.load %arg1[%c0_87, %c0_88, %c0_89, %c0_90] : memref<2x2x16x32xf32, #tpu.memory_space<vmem>>, vector<1x1x16x32xf32>
    %89 = vector.shape_cast %88 : vector<1x1x16x32xf32> to vector<16x32xf32>
    %cst_91 = arith.constant 2.500000e-01 : f32
    %90 = vector.broadcast %cst_91 : f32 to vector<16x32xf32>
    %91 = arith.mulf %90, %89 : vector<16x32xf32>
    %c1_92 = arith.constant 1 : index
    %c0_93 = arith.constant 0 : index
    %c0_94 = arith.constant 0 : index
    %c0_95 = arith.constant 0 : index
    %92 = vector.load %arg1[%c1_92, %c0_93, %c0_94, %c0_95] : memref<2x2x16x32xf32, #tpu.memory_space<vmem>>, vector<1x1x16x32xf32>
    %93 = vector.shape_cast %92 : vector<1x1x16x32xf32> to vector<16x32xf32>
    %cst_96 = arith.constant 6.12323426E-17 : f32
    %94 = vector.broadcast %cst_96 : f32 to vector<16x32xf32>
    %95 = arith.mulf %94, %93 : vector<16x32xf32>
    %96 = arith.addf %91, %95 : vector<16x32xf32>
    %c0_97 = arith.constant 0 : index
    %c1_98 = arith.constant 1 : index
    %c0_99 = arith.constant 0 : index
    %c0_100 = arith.constant 0 : index
    %97 = vector.load %arg1[%c0_97, %c1_98, %c0_99, %c0_100] : memref<2x2x16x32xf32, #tpu.memory_space<vmem>>, vector<1x1x16x32xf32>
    %98 = vector.shape_cast %97 : vector<1x1x16x32xf32> to vector<16x32xf32>
    %cst_101 = arith.constant -2.500000e-01 : f32
    %99 = vector.broadcast %cst_101 : f32 to vector<16x32xf32>
    %100 = arith.mulf %99, %98 : vector<16x32xf32>
    %101 = arith.addf %96, %100 : vector<16x32xf32>
    %c1_102 = arith.constant 1 : index
    %c1_103 = arith.constant 1 : index
    %c0_104 = arith.constant 0 : index
    %c0_105 = arith.constant 0 : index
    %102 = vector.load %arg1[%c1_102, %c1_103, %c0_104, %c0_105] : memref<2x2x16x32xf32, #tpu.memory_space<vmem>>, vector<1x1x16x32xf32>
    %103 = vector.shape_cast %102 : vector<1x1x16x32xf32> to vector<16x32xf32>
    %cst_106 = arith.constant -9.18485073E-17 : f32
    %104 = vector.broadcast %cst_106 : f32 to vector<16x32xf32>
    %105 = arith.mulf %104, %103 : vector<16x32xf32>
    %106 = arith.addf %101, %105 : vector<16x32xf32>
    %c4 = arith.constant 4 : index
    %c0_107 = arith.constant 0 : index
    %c0_108 = arith.constant 0 : index
    %107 = vector.load %arg2[%c4, %c0_107, %c0_108] : memref<8x16x32xf32, #tpu.memory_space<vmem>>, vector<1x16x32xf32>
    %108 = vector.shape_cast %107 : vector<1x16x32xf32> to vector<16x32xf32>
    %109 = vector.shape_cast %106 : vector<16x32xf32> to vector<1x16x32xf32>
    tpu.vector_store %arg2[%c4, %c0_107, %c0_108], %109 {strides = array<i32>} : memref<8x16x32xf32, #tpu.memory_space<vmem>>, vector<1x16x32xf32>,
    %c0_109 = arith.constant 0 : index
    %c0_110 = arith.constant 0 : index
    %c0_111 = arith.constant 0 : index
    %c0_112 = arith.constant 0 : index
    %110 = vector.load %arg1[%c0_109, %c0_110, %c0_111, %c0_112] : memref<2x2x16x32xf32, #tpu.memory_space<vmem>>, vector<1x1x16x32xf32>
    %111 = vector.shape_cast %110 : vector<1x1x16x32xf32> to vector<16x32xf32>
    %cst_113 = arith.constant 7.6540425E-17 : f32
    %112 = vector.broadcast %cst_113 : f32 to vector<16x32xf32>
    %113 = arith.mulf %112, %111 : vector<16x32xf32>
    %c1_114 = arith.constant 1 : index
    %c0_115 = arith.constant 0 : index
    %c0_116 = arith.constant 0 : index
    %c0_117 = arith.constant 0 : index
    %114 = vector.load %arg1[%c1_114, %c0_115, %c0_116, %c0_117] : memref<2x2x16x32xf32, #tpu.memory_space<vmem>>, vector<1x1x16x32xf32>
    %115 = vector.shape_cast %114 : vector<1x1x16x32xf32> to vector<16x32xf32>
    %cst_118 = arith.constant -2.500000e-01 : f32
    %116 = vector.broadcast %cst_118 : f32 to vector<16x32xf32>
    %117 = arith.mulf %116, %115 : vector<16x32xf32>
    %118 = arith.addf %113, %117 : vector<16x32xf32>
    %c0_119 = arith.constant 0 : index
    %c1_120 = arith.constant 1 : index
    %c0_121 = arith.constant 0 : index
    %c0_122 = arith.constant 0 : index
    %119 = vector.load %arg1[%c0_119, %c1_120, %c0_121, %c0_122] : memref<2x2x16x32xf32, #tpu.memory_space<vmem>>, vector<1x1x16x32xf32>
    %120 = vector.shape_cast %119 : vector<1x1x16x32xf32> to vector<16x32xf32>
    %cst_123 = arith.constant 0.176776692 : f32
    %121 = vector.broadcast %cst_123 : f32 to vector<16x32xf32>
    %122 = arith.mulf %121, %120 : vector<16x32xf32>
    %123 = arith.addf %118, %122 : vector<16x32xf32>
    %c1_124 = arith.constant 1 : index
    %c1_125 = arith.constant 1 : index
    %c0_126 = arith.constant 0 : index
    %c0_127 = arith.constant 0 : index
    %124 = vector.load %arg1[%c1_124, %c1_125, %c0_126, %c0_127] : memref<2x2x16x32xf32, #tpu.memory_space<vmem>>, vector<1x1x16x32xf32>
    %125 = vector.shape_cast %124 : vector<1x1x16x32xf32> to vector<16x32xf32>
    %cst_128 = arith.constant 0.176776692 : f32
    %126 = vector.broadcast %cst_128 : f32 to vector<16x32xf32>
    %127 = arith.mulf %126, %125 : vector<16x32xf32>
    %128 = arith.addf %123, %127 : vector<16x32xf32>
    %c5 = arith.constant 5 : index
    %c0_129 = arith.constant 0 : index
    %c0_130 = arith.constant 0 : index
    %129 = vector.load %arg2[%c5, %c0_129, %c0_130] : memref<8x16x32xf32, #tpu.memory_space<vmem>>, vector<1x16x32xf32>
    %130 = vector.shape_cast %129 : vector<1x16x32xf32> to vector<16x32xf32>
    %131 = vector.shape_cast %128 : vector<16x32xf32> to vector<1x16x32xf32>
    tpu.vector_store %arg2[%c5, %c0_129, %c0_130], %131 {strides = array<i32>} : memref<8x16x32xf32, #tpu.memory_space<vmem>>, vector<1x16x32xf32>,
    %c0_131 = arith.constant 0 : index
    %c0_132 = arith.constant 0 : index
    %c0_133 = arith.constant 0 : index
    %c0_134 = arith.constant 0 : index
    %132 = vector.load %arg1[%c0_131, %c0_132, %c0_133, %c0_134] : memref<2x2x16x32xf32, #tpu.memory_space<vmem>>, vector<1x1x16x32xf32>
    %133 = vector.shape_cast %132 : vector<1x1x16x32xf32> to vector<16x32xf32>
    %cst_135 = arith.constant -2.500000e-01 : f32
    %134 = vector.broadcast %cst_135 : f32 to vector<16x32xf32>
    %135 = arith.mulf %134, %133 : vector<16x32xf32>
    %c1_136 = arith.constant 1 : index
    %c0_137 = arith.constant 0 : index
    %c0_138 = arith.constant 0 : index
    %c0_139 = arith.constant 0 : index
    %136 = vector.load %arg1[%c1_136, %c0_137, %c0_138, %c0_139] : memref<2x2x16x32xf32, #tpu.memory_space<vmem>>, vector<1x1x16x32xf32>
    %137 = vector.shape_cast %136 : vector<1x1x16x32xf32> to vector<16x32xf32>
    %cst_140 = arith.constant -9.18485073E-17 : f32
    %138 = vector.broadcast %cst_140 : f32 to vector<16x32xf32>
    %139 = arith.mulf %138, %137 : vector<16x32xf32>
    %140 = arith.addf %135, %139 : vector<16x32xf32>
    %c0_141 = arith.constant 0 : index
    %c1_142 = arith.constant 1 : index
    %c0_143 = arith.constant 0 : index
    %c0_144 = arith.constant 0 : index
    %141 = vector.load %arg1[%c0_141, %c1_142, %c0_143, %c0_144] : memref<2x2x16x32xf32, #tpu.memory_space<vmem>>, vector<1x1x16x32xf32>
    %142 = vector.shape_cast %141 : vector<1x1x16x32xf32> to vector<16x32xf32>
    %cst_145 = arith.constant 1.37772768E-16 : f32
    %143 = vector.broadcast %cst_145 : f32 to vector<16x32xf32>
    %144 = arith.mulf %143, %142 : vector<16x32xf32>
    %145 = arith.addf %140, %144 : vector<16x32xf32>
    %c1_146 = arith.constant 1 : index
    %c1_147 = arith.constant 1 : index
    %c0_148 = arith.constant 0 : index
    %c0_149 = arith.constant 0 : index
    %146 = vector.load %arg1[%c1_146, %c1_147, %c0_148, %c0_149] : memref<2x2x16x32xf32, #tpu.memory_space<vmem>>, vector<1x1x16x32xf32>
    %147 = vector.shape_cast %146 : vector<1x1x16x32xf32> to vector<16x32xf32>
    %cst_150 = arith.constant -2.500000e-01 : f32
    %148 = vector.broadcast %cst_150 : f32 to vector<16x32xf32>
    %149 = arith.mulf %148, %147 : vector<16x32xf32>
    %150 = arith.addf %145, %149 : vector<16x32xf32>
    %c6 = arith.constant 6 : index
    %c0_151 = arith.constant 0 : index
    %c0_152 = arith.constant 0 : index
    %151 = vector.load %arg2[%c6, %c0_151, %c0_152] : memref<8x16x32xf32, #tpu.memory_space<vmem>>, vector<1x16x32xf32>
    %152 = vector.shape_cast %151 : vector<1x16x32xf32> to vector<16x32xf32>
    %153 = vector.shape_cast %150 : vector<16x32xf32> to vector<1x16x32xf32>
    tpu.vector_store %arg2[%c6, %c0_151, %c0_152], %153 {strides = array<i32>} : memref<8x16x32xf32, #tpu.memory_space<vmem>>, vector<1x16x32xf32>,
    %c0_153 = arith.constant 0 : index
    %c0_154 = arith.constant 0 : index
    %c0_155 = arith.constant 0 : index
    %c0_156 = arith.constant 0 : index
    %154 = vector.load %arg1[%c0_153, %c0_154, %c0_155, %c0_156] : memref<2x2x16x32xf32, #tpu.memory_space<vmem>>, vector<1x1x16x32xf32>
    %155 = vector.shape_cast %154 : vector<1x1x16x32xf32> to vector<16x32xf32>
    %cst_157 = arith.constant -1.07156596E-16 : f32
    %156 = vector.broadcast %cst_157 : f32 to vector<16x32xf32>
    %157 = arith.mulf %156, %155 : vector<16x32xf32>
    %c1_158 = arith.constant 1 : index
    %c0_159 = arith.constant 0 : index
    %c0_160 = arith.constant 0 : index
    %c0_161 = arith.constant 0 : index
    %158 = vector.load %arg1[%c1_158, %c0_159, %c0_160, %c0_161] : memref<2x2x16x32xf32, #tpu.memory_space<vmem>>, vector<1x1x16x32xf32>
    %159 = vector.shape_cast %158 : vector<1x1x16x32xf32> to vector<16x32xf32>
    %cst_162 = arith.constant 2.500000e-01 : f32
    %160 = vector.broadcast %cst_162 : f32 to vector<16x32xf32>
    %161 = arith.mulf %160, %159 : vector<16x32xf32>
    %162 = arith.addf %157, %161 : vector<16x32xf32>
    %c0_163 = arith.constant 0 : index
    %c1_164 = arith.constant 1 : index
    %c0_165 = arith.constant 0 : index
    %c0_166 = arith.constant 0 : index
    %163 = vector.load %arg1[%c0_163, %c1_164, %c0_165, %c0_166] : memref<2x2x16x32xf32, #tpu.memory_space<vmem>>, vector<1x1x16x32xf32>
    %164 = vector.shape_cast %163 : vector<1x1x16x32xf32> to vector<16x32xf32>
    %cst_167 = arith.constant -0.176776692 : f32
    %165 = vector.broadcast %cst_167 : f32 to vector<16x32xf32>
    %166 = arith.mulf %165, %164 : vector<16x32xf32>
    %167 = arith.addf %162, %166 : vector<16x32xf32>
    %c1_168 = arith.constant 1 : index
    %c1_169 = arith.constant 1 : index
    %c0_170 = arith.constant 0 : index
    %c0_171 = arith.constant 0 : index
    %168 = vector.load %arg1[%c1_168, %c1_169, %c0_170, %c0_171] : memref<2x2x16x32xf32, #tpu.memory_space<vmem>>, vector<1x1x16x32xf32>
    %169 = vector.shape_cast %168 : vector<1x1x16x32xf32> to vector<16x32xf32>
    %cst_172 = arith.constant 0.176776692 : f32
    %170 = vector.broadcast %cst_172 : f32 to vector<16x32xf32>
    %171 = arith.mulf %170, %169 : vector<16x32xf32>
    %172 = arith.addf %167, %171 : vector<16x32xf32>
    %c7 = arith.constant 7 : index
    %c0_173 = arith.constant 0 : index
    %c0_174 = arith.constant 0 : index
    %173 = vector.load %arg2[%c7, %c0_173, %c0_174] : memref<8x16x32xf32, #tpu.memory_space<vmem>>, vector<1x16x32xf32>
    %174 = vector.shape_cast %173 : vector<1x16x32xf32> to vector<16x32xf32>
    %175 = vector.shape_cast %172 : vector<16x32xf32> to vector<1x16x32xf32>
    tpu.vector_store %arg2[%c7, %c0_173, %c0_174], %175 {strides = array<i32>} : memref<8x16x32xf32, #tpu.memory_space<vmem>>, vector<1x16x32xf32>,
    return
  }
  func.func @transform_0(%arg0: i32) -> (i32, i32, i32, i32) {
    %c0_i32 = arith.constant 0 : i32
    %c0_i32_0 = arith.constant 0 : i32
    %c0_i32_1 = arith.constant 0 : i32
    %c0_i32_2 = arith.constant 0 : i32
    return %c0_i32, %c0_i32_0, %arg0, %c0_i32_1 : i32, i32, i32, i32
  }
  func.func @transform_1(%arg0: i32) -> (i32, i32, i32) {
    %c0_i32 = arith.constant 0 : i32
    %c0_i32_0 = arith.constant 0 : i32
    %c0_i32_1 = arith.constant 0 : i32
    return %c0_i32, %arg0, %c0_i32_0 : i32, i32, i32
  }
}

</mosaic_0001>

<llo_original>
// kernel: _lambda_.8
$region0: #{_lambda_.8}
  #allocation0 [shape = 'u32[]', space=smem, size = 0x4, offset = 0x4, fixed_abs, tag = 'smem constant byte address 0x4 - core index']
  #allocation1 [shape = 'u32[144,128]{1,0:T(1,128)}', space=vmem, size = 0x12000, scoped, tag = 'internal scratch']
  %s0 = inlined_call_operand.vmem [shape: f32[8,16,32], index: 0, kind: input, shape index: {}]
  %s1 = inlined_call_operand.vmem [shape: f32[2,2,16,32], index: 1, kind: output, shape index: {}]
  %s2 = sld [smem:[#allocation0]]
  $region14: #{_lambda_.8} parent=0
    _
  %s4 = ssub.s32 1, %s2
  %s5 = scalar_select 0, %s4, %s2
  // Predicated region
  $region2: #{_lambda_.8} parent=0 // pred_check
    _
  $region3: #{_lambda_.8} parent=0 // pred_check_branch
    %7 = sbr.rel (0) target = $region5
  $region4: #{_lambda_.8} parent=0 // pred_region
    _
  $region5: #{_lambda_.8} parent=0 // pred_fallthru
    _
  %v8 = vld [vmem:[%s0] sm:$0xff]
  %v9 = vld [vmem:[%s0 + $0x8] sm:$0xff]
  %v10 = vmul.f32 %v8, -0.0
  %v11 = vmul.f32 %v9, -0.0
  %s12 = scalar_lea.vmem %s0, 16
  %v13 = vld [vmem:[%s12] sm:$0xff]
  %v14 = vld [vmem:[%s12 + $0x8] sm:$0xff]
  %v15 = vmul.f32 %v13, 6.123234e-17
  %v16 = vmul.f32 %v14, 6.123234e-17
  %v17 = vadd.f32 %v8, %v15
  %v18 = vadd.f32 %v9, %v16
  %v19 = vmul.f32 %v13, -1.0
  %v20 = vmul.f32 %v14, -1.0
  %v21 = vadd.f32 %v10, %v19
  %v22 = vadd.f32 %v11, %v20
  %s23 = scalar_lea.vmem %s0, 32
  %v24 = vld [vmem:[%s23] sm:$0xff]
  %v25 = vld [vmem:[%s23 + $0x8] sm:$0xff]
  %v26 = vmul.f32 %v24, -1.0
  %v27 = vmul.f32 %v25, -1.0
  %v28 = vadd.f32 %v17, %v26
  %v29 = vadd.f32 %v18, %v27
  %v30 = vmul.f32 %v24, -1.2246469e-16
  %v31 = vmul.f32 %v25, -1.2246469e-16
  %v32 = vadd.f32 %v21, %v30
  %v33 = vadd.f32 %v22, %v31
  %s34 = scalar_lea.vmem %s0, 48
  %v35 = vld [vmem:[%s34] sm:$0xff]
  %v36 = vld [vmem:[%s34 + $0x8] sm:$0xff]
  %v37 = vmul.f32 %v35, -1.8369701e-16
  %v38 = vmul.f32 %v36, -1.8369701e-16
  %v39 = vadd.f32 %v28, %v37
  %v40 = vadd.f32 %v29, %v38
  %v41 = vadd.f32 %v32, %v35
  %v42 = vadd.f32 %v33, %v36
  %s43 = scalar_lea.vmem %s0, 64
  %v44 = vld [vmem:[%s43] sm:$0xff]
  %v45 = vld [vmem:[%s43 + $0x8] sm:$0xff]
  %v46 = vadd.f32 %v39, %v44
  %v47 = vadd.f32 %v40, %v45
  %v48 = vmul.f32 %v44, 2.4492937e-16
  %v49 = vmul.f32 %v45, 2.4492937e-16
  %v50 = vadd.f32 %v41, %v48
  %v51 = vadd.f32 %v42, %v49
  %s52 = scalar_lea.vmem %s0, 80
  %v53 = vld [vmem:[%s52] sm:$0xff]
  %v54 = vld [vmem:[%s52 + $0x8] sm:$0xff]
  %v55 = vmul.f32 %v53, 3.061617e-16
  %v56 = vmul.f32 %v54, 3.061617e-16
  %v57 = vadd.f32 %v46, %v55
  %v58 = vadd.f32 %v47, %v56
  %v59 = vmul.f32 %v53, -1.0
  %v60 = vmul.f32 %v54, -1.0
  %v61 = vadd.f32 %v50, %v59
  %v62 = vadd.f32 %v51, %v60
  %s63 = scalar_lea.vmem %s0, 96
  %v64 = vld [vmem:[%s63] sm:$0xff]
  %v65 = vld [vmem:[%s63 + $0x8] sm:$0xff]
  %v66 = vmul.f32 %v64, -1.0
  %v67 = vmul.f32 %v65, -1.0
  %v68 = vadd.f32 %v57, %v66
  %v69 = vadd.f32 %v58, %v67
  %v70 = vmul.f32 %v64, -3.6739403e-16
  %v71 = vmul.f32 %v65, -3.6739403e-16
  %v72 = vadd.f32 %v61, %v70
  %v73 = vadd.f32 %v62, %v71
  %s74 = scalar_lea.vmem %s0, 112
  %v75 = vld [vmem:[%s74] sm:$0xff]
  %v76 = vld [vmem:[%s74 + $0x8] sm:$0xff]
  %v77 = vmul.f32 %v75, -4.2862639e-16
  %v78 = vmul.f32 %v76, -4.2862639e-16
  %v79 = vadd.f32 %v68, %v77
  %v80 = vadd.f32 %v69, %v78
  %v81 = vadd.f32 %v72, %v75
  %v82 = vadd.f32 %v73, %v76
  %vm83 = vcmask 261120
  %84 = vst.msk [vmem:[%s1] sm:$0xff] %vm83, %v79
  %85 = vst.msk [vmem:[%s1 + $0x8] sm:$0xff] %vm83, %v80
  %s86 = scalar_lea.vmem %s1, 32
  %87 = vst.msk [vmem:[%s86] sm:$0xff] %vm83, %v81
  %88 = vst.msk [vmem:[%s86 + $0x8] sm:$0xff] %vm83, %v82
  %v89 = vld [vmem:[%s0] sm:$0xff]
  %v90 = vld [vmem:[%s0 + $0x8] sm:$0xff]
  %v91 = vmul.f32 %v89, -0.0
  %v92 = vmul.f32 %v90, -0.0
  %v93 = vld [vmem:[%s12] sm:$0xff]
  %v94 = vld [vmem:[%s12 + $0x8] sm:$0xff]
  %v95 = vmul.f32 %v93, -0.70710677
  %v96 = vmul.f32 %v94, -0.70710677
  %v97 = vadd.f32 %v89, %v95
  %v98 = vadd.f32 %v90, %v96
  %v99 = vadd.f32 %v91, %v95
  %v100 = vadd.f32 %v92, %v96
  %v101 = vld [vmem:[%s23] sm:$0xff]
  %v102 = vld [vmem:[%s23 + $0x8] sm:$0xff]
  %v103 = vmul.f32 %v101, -1.8369701e-16
  %v104 = vmul.f32 %v102, -1.8369701e-16
  %v105 = vadd.f32 %v97, %v103
  %v106 = vadd.f32 %v98, %v104
  %v107 = vadd.f32 %v99, %v101
  %v108 = vadd.f32 %v100, %v102
  %v109 = vld [vmem:[%s34] sm:$0xff]
  %v110 = vld [vmem:[%s34 + $0x8] sm:$0xff]
  %v111 = vmul.f32 %v109, 0.70710677
  %v112 = vmul.f32 %v110, 0.70710677
  %v113 = vadd.f32 %v105, %v111
  %v114 = vadd.f32 %v106, %v112
  %v115 = vmul.f32 %v109, -0.70710677
  %v116 = vmul.f32 %v110, -0.70710677
  %v117 = vadd.f32 %v107, %v115
  %v118 = vadd.f32 %v108, %v116
  %v119 = vld [vmem:[%s43] sm:$0xff]
  %v120 = vld [vmem:[%s43 + $0x8] sm:$0xff]
  %v121 = vmul.f32 %v119, -1.0
  %v122 = vmul.f32 %v120, -1.0
  %v123 = vadd.f32 %v113, %v121
  %v124 = vadd.f32 %v114, %v122
  %v125 = vmul.f32 %v119, -3.6739403e-16
  %v126 = vmul.f32 %v120, -3.6739403e-16
  %v127 = vadd.f32 %v117, %v125
  %v128 = vadd.f32 %v118, %v126
  %v129 = vld [vmem:[%s52] sm:$0xff]
  %v130 = vld [vmem:[%s52 + $0x8] sm:$0xff]
  %v131 = vmul.f32 %v129, 0.70710677
  %v132 = vmul.f32 %v130, 0.70710677
  %v133 = vadd.f32 %v123, %v131
  %v134 = vadd.f32 %v124, %v132
  %v135 = vadd.f32 %v127, %v131
  %v136 = vadd.f32 %v128, %v132
  %v137 = vld [vmem:[%s63] sm:$0xff]
  %v138 = vld [vmem:[%s63 + $0x8] sm:$0xff]
  %v139 = vmul.f32 %v137, 5.5109107e-16
  %v140 = vmul.f32 %v138, 5.5109107e-16
  %v141 = vadd.f32 %v133, %v139
  %v142 = vadd.f32 %v134, %v140
  %v143 = vmul.f32 %v137, -1.0
  %v144 = vmul.f32 %v138, -1.0
  %v145 = vadd.f32 %v135, %v143
  %v146 = vadd.f32 %v136, %v144
  %v147 = vld [vmem:[%s74] sm:$0xff]
  %v148 = vld [vmem:[%s74 + $0x8] sm:$0xff]
  %v149 = vmul.f32 %v147, -0.70710677
  %v150 = vmul.f32 %v148, -0.70710677
  %v151 = vadd.f32 %v141, %v149
  %v152 = vadd.f32 %v142, %v150
  %v153 = vmul.f32 %v147, 0.70710677
  %v154 = vmul.f32 %v148, 0.70710677
  %v155 = vadd.f32 %v145, %v153
  %v156 = vadd.f32 %v146, %v154
  %s157 = scalar_lea.vmem %s1, 16
  %158 = vst.msk [vmem:[%s157] sm:$0xff] %vm83, %v151
  %159 = vst.msk [vmem:[%s157 + $0x8] sm:$0xff] %vm83, %v152
  %s160 = scalar_lea.vmem %s1, 48
  %161 = vst.msk [vmem:[%s160] sm:$0xff] %vm83, %v155
  %162 = vst.msk [vmem:[%s160 + $0x8] sm:$0xff] %vm83, %v156
  // Predicated region
  $region6: #{_lambda_.8} parent=0 // pred_check
    _
  $region7: #{_lambda_.8} parent=0 // pred_check_branch
    %164 = sbr.rel (0) target = $region9
  $region8: #{_lambda_.8} parent=0 // pred_region
    _
  $region9: #{_lambda_.8} parent=0 // pred_fallthru
    _
  // Predicated region
  $region10: #{_lambda_.8} parent=0 // pred_check
    _
  $region11: #{_lambda_.8} parent=0 // pred_check_branch
    %166 = sbr.rel (0) target = $region13
  $region12: #{_lambda_.8} parent=0 // pred_region
    _
  $region13: #{_lambda_.8} parent=0 // pred_fallthru
    _

// kernel: _lambda_.9
$region0: #{_lambda_.9}
  #allocation0 [shape = 'u32[]', space=smem, size = 0x4, offset = 0x4, fixed_abs, tag = 'smem constant byte address 0x4 - core index']
  #allocation1 [shape = 'u32[144,128]{1,0:T(1,128)}', space=vmem, size = 0x12000, scoped, tag = 'internal scratch']
  #allocation2 [shape = 'f32[64,128]{1,0:T(8,128)}', space=vmem, size = 0x8000, scoped, tag = 'scratch operand']
  %s0 = inlined_call_operand.vmem [shape: f32[64,128], index: 0, kind: input, shape index: {}]
  %s1 = inlined_call_operand.vmem [shape: f32[128,128], index: 1, kind: input, shape index: {}]
  %s2 = inlined_call_operand.vmem [shape: f32[1,128], index: 2, kind: input, shape index: {}]
  %s3 = inlined_call_operand.vmem [shape: f32[64,128], index: 3, kind: output, shape index: {}]
  %s4 = sld [smem:[#allocation0]]
  $region30: #{_lambda_.9} parent=0
    _
  %s6 = ssub.s32 1, %s4
  %s7 = scalar_select 0, %s6, %s4
  // Predicated region
  $region2: #{_lambda_.9} parent=0 // pred_check
    _
  $region3: #{_lambda_.9} parent=0 // pred_check_branch
    %9 = sbr.rel (0) target = $region5
  $region4: #{_lambda_.9} parent=0 // pred_region
    _
  $region5: #{_lambda_.9} parent=0 // pred_fallthru
    _
  // Predicated region
  $region6: #{_lambda_.9} parent=0 // pred_check
    _
  $region7: #{_lambda_.9} parent=0 // pred_check_branch
    %11 = sbr.rel (0) target = $region9
  $region8: #{_lambda_.9} parent=0 // pred_region
    _
  $region9: #{_lambda_.9} parent=0 // pred_fallthru
    _
  // Predicated region
  $region10: #{_lambda_.9} parent=0 // pred_check
    _
  $region11: #{_lambda_.9} parent=0 // pred_check_branch
    %13 = sbr.rel (0) target = $region13
  $region12: #{_lambda_.9} parent=0 // pred_region
    _
  $region13: #{_lambda_.9} parent=0 // pred_fallthru
    _
  %p14 = scmp.eq.s32.totalorder 0, 0
  // Predicated region
  $region14: #{_lambda_.9} parent=0 // pred_check
    %p15 = pneg %p14
  $region15: #{_lambda_.9} parent=0 // pred_check_branch
    %17 = sbr.rel (%p15) target = $region17
  $region16: #{_lambda_.9} parent=0 // pred_region
    %18 = vst [vmem:[#allocation2] sm:$0xff] 0.0
    %19 = vst [vmem:[#allocation2 + $0x8] sm:$0xff] 0.0
    %20 = vst [vmem:[#allocation2 + $0x10] sm:$0xff] 0.0
    %21 = vst [vmem:[#allocation2 + $0x18] sm:$0xff] 0.0
    %22 = vst [vmem:[#allocation2 + $0x20] sm:$0xff] 0.0
    %23 = vst [vmem:[#allocation2 + $0x28] sm:$0xff] 0.0
    %24 = vst [vmem:[#allocation2 + $0x30] sm:$0xff] 0.0
    %25 = vst [vmem:[#allocation2 + $0x38] sm:$0xff] 0.0
  $region17: #{_lambda_.9} parent=0 // pred_fallthru
    _
  %v26 = vld [vmem:[#allocation2] sm:$0xff]
  %v27 = vld [vmem:[#allocation2 + $0x8] sm:$0xff]
  %v28 = vld [vmem:[#allocation2 + $0x10] sm:$0xff]
  %v29 = vld [vmem:[#allocation2 + $0x18] sm:$0xff]
  %v30 = vld [vmem:[#allocation2 + $0x20] sm:$0xff]
  %v31 = vld [vmem:[#allocation2 + $0x28] sm:$0xff]
  %v32 = vld [vmem:[#allocation2 + $0x30] sm:$0xff]
  %v33 = vld [vmem:[#allocation2 + $0x38] sm:$0xff]
  %v34 = vld [vmem:[%s0] sm:$0xff]
  %v35 = vld [vmem:[%s0 + $0x8] sm:$0xff]
  %v36 = vld [vmem:[%s0 + $0x10] sm:$0xff]
  %v37 = vld [vmem:[%s0 + $0x18] sm:$0xff]
  %v38 = vld [vmem:[%s0 + $0x20] sm:$0xff]
  %v39 = vld [vmem:[%s0 + $0x28] sm:$0xff]
  %v40 = vld [vmem:[%s0 + $0x30] sm:$0xff]
  %v41 = vld [vmem:[%s0 + $0x38] sm:$0xff]
  %v42 = vld [vmem:[%s1] sm:$0xff]
  %v43 = vld [vmem:[%s1 + $0x8] sm:$0xff]
  %v44 = vld [vmem:[%s1 + $0x10] sm:$0xff]
  %v45 = vld [vmem:[%s1 + $0x18] sm:$0xff]
  %v46 = vld [vmem:[%s1 + $0x20] sm:$0xff]
  %v47 = vld [vmem:[%s1 + $0x28] sm:$0xff]
  %v48 = vld [vmem:[%s1 + $0x30] sm:$0xff]
  %v49 = vld [vmem:[%s1 + $0x38] sm:$0xff]
  %v50 = vld [vmem:[%s1 + $0x40] sm:$0xff]
  %v51 = vld [vmem:[%s1 + $0x48] sm:$0xff]
  %v52 = vld [vmem:[%s1 + $0x50] sm:$0xff]
  %v53 = vld [vmem:[%s1 + $0x58] sm:$0xff]
  %v54 = vld [vmem:[%s1 + $0x60] sm:$0xff]
  %v55 = vld [vmem:[%s1 + $0x68] sm:$0xff]
  %v56 = vld [vmem:[%s1 + $0x70] sm:$0xff]
  %v57 = vld [vmem:[%s1 + $0x78] sm:$0xff]
  %58 = vmatprep.subr.mxu0 0.0
  %v59 = vand.u32 %v42, 4294901760
  %60 = vmatpush1.msra.mxu0 %v59
  %61 = vmatprep.subr.mxu0 0.0
  %v62 = vand.u32 %v43, 4294901760
  %63 = vmatpush1.msra.mxu0 %v62
  %64 = vmatprep.subr.mxu0 0.0
  %v65 = vand.u32 %v44, 4294901760
  %66 = vmatpush1.msra.mxu0 %v65
  %67 = vmatprep.subr.mxu0 0.0
  %v68 = vand.u32 %v45, 4294901760
  %69 = vmatpush1.msra.mxu0 %v68
  %70 = vmatprep.subr.mxu0 0.0
  %v71 = vand.u32 %v46, 4294901760
  %72 = vmatpush1.msra.mxu0 %v71
  %73 = vmatprep.subr.mxu0 0.0
  %v74 = vand.u32 %v47, 4294901760
  %75 = vmatpush1.msra.mxu0 %v74
  %76 = vmatprep.subr.mxu0 0.0
  %v77 = vand.u32 %v48, 4294901760
  %78 = vmatpush1.msra.mxu0 %v77
  %79 = vmatprep.subr.mxu0 0.0
  %v80 = vand.u32 %v49, 4294901760
  %81 = vmatpush1.msra.mxu0 %v80
  %82 = vmatprep.subr.mxu0 0.0
  %v83 = vand.u32 %v50, 4294901760
  %84 = vmatpush1.msra.mxu0 %v83
  %85 = vmatprep.subr.mxu0 0.0
  %v86 = vand.u32 %v51, 4294901760
  %87 = vmatpush1.msra.mxu0 %v86
  %88 = vmatprep.subr.mxu0 0.0
  %v89 = vand.u32 %v52, 4294901760
  %90 = vmatpush1.msra.mxu0 %v89
  %91 = vmatprep.subr.mxu0 0.0
  %v92 = vand.u32 %v53, 4294901760
  %93 = vmatpush1.msra.mxu0 %v92
  %94 = vmatprep.subr.mxu0 0.0
  %v95 = vand.u32 %v54, 4294901760
  %96 = vmatpush1.msra.mxu0 %v95
  %97 = vmatprep.subr.mxu0 0.0
  %v98 = vand.u32 %v55, 4294901760
  %99 = vmatpush1.msra.mxu0 %v98
  %100 = vmatprep.subr.mxu0 0.0
  %v101 = vand.u32 %v56, 4294901760
  %102 = vmatpush1.msra.mxu0 %v101
  %103 = vmatprep.subr.mxu0 0.0
  %v104 = vand.u32 %v57, 4294901760
  %105 = vmatpush1.msra.mxu0 %v104
  %106 = vmatprep.subr.mxu0 0.0
  %107 = vmatpush1.msra.mxu0 0.0
  %108 = vmatprep.subr.mxu0 0.0
  %109 = vmatpush1.msra.mxu0 0.0
  %110 = vmatprep.subr.mxu0 0.0
  %111 = vmatpush1.msra.mxu0 0.0
  %112 = vmatprep.subr.mxu0 0.0
  %113 = vmatpush1.msra.mxu0 0.0
  %114 = vmatprep.subr.mxu0 0.0
  %115 = vmatpush1.msra.mxu0 0.0
  %116 = vmatprep.subr.mxu0 0.0
  %117 = vmatpush1.msra.mxu0 0.0
  %118 = vmatprep.subr.mxu0 0.0
  %119 = vmatpush1.msra.mxu0 0.0
  %120 = vmatprep.subr.mxu0 0.0
  %121 = vmatpush1.msra.mxu0 0.0
  %122 = vmatprep.subr.mxu0 0.0
  %123 = vmatpush1.msra.mxu0 0.0
  %124 = vmatprep.subr.mxu0 0.0
  %125 = vmatpush1.msra.mxu0 0.0
  %126 = vmatprep.subr.mxu0 0.0
  %127 = vmatpush1.msra.mxu0 0.0
  %128 = vmatprep.subr.mxu0 0.0
  %129 = vmatpush1.msra.mxu0 0.0
  %130 = vmatprep.subr.mxu0 0.0
  %131 = vmatpush1.msra.mxu0 0.0
  %132 = vmatprep.subr.mxu0 0.0
  %133 = vmatpush1.msra.mxu0 0.0
  %134 = vmatprep.subr.mxu0 0.0
  %135 = vmatpush1.msra.mxu0 0.0
  %136 = vmatprep.subr.mxu0 0.0
  %137 = vmatpush1.msra.mxu0 0.0
  %138 = vmatprep.mubr.f32.mxu0 0.0
  %v139 = vand.u32 %v34, 4294901760
  %v140 = vsub.f32 %v34, %v139
  %v141 = vand.u32 %v140, 4294901760
  %v142 = vsub.f32 %v140, %v141
  %v143 = vand.u32 %v142, 4294901760
  %144 = vmatmul.mubr.f32.gmra.mrb[0].mxu0 %v143
  %v145 = vpop.f32.mrb[0].mxu0
  %v146 = vadd.f32 0.0, %v145
  %v147 = vpop.f32.mrb[0].mxu0
  %148 = vmatprep.mubr.f32.mxu0 0.0
  %v149 = vand.u32 %v35, 4294901760
  %v150 = vsub.f32 %v35, %v149
  %v151 = vand.u32 %v150, 4294901760
  %v152 = vsub.f32 %v150, %v151
  %v153 = vand.u32 %v152, 4294901760
  %154 = vmatmul.mubr.f32.gmra.mrb[0].mxu0 %v153
  %v155 = vpop.f32.mrb[0].mxu0
  %v156 = vadd.f32 0.0, %v155
  %v157 = vpop.f32.mrb[0].mxu0
  %158 = vmatprep.mubr.f32.mxu0 0.0
  %v159 = vand.u32 %v36, 4294901760
  %v160 = vsub.f32 %v36, %v159
  %v161 = vand.u32 %v160, 4294901760
  %v162 = vsub.f32 %v160, %v161
  %v163 = vand.u32 %v162, 4294901760
  %164 = vmatmul.mubr.f32.gmra.mrb[0].mxu0 %v163
  %v165 = vpop.f32.mrb[0].mxu0
  %v166 = vadd.f32 0.0, %v165
  %v167 = vpop.f32.mrb[0].mxu0
  %168 = vmatprep.mubr.f32.mxu0 0.0
  %v169 = vand.u32 %v37, 4294901760
  %v170 = vsub.f32 %v37, %v169
  %v171 = vand.u32 %v170, 4294901760
  %v172 = vsub.f32 %v170, %v171
  %v173 = vand.u32 %v172, 4294901760
  %174 = vmatmul.mubr.f32.gmra.mrb[0].mxu0 %v173
  %v175 = vpop.f32.mrb[0].mxu0
  %v176 = vadd.f32 0.0, %v175
  %v177 = vpop.f32.mrb[0].mxu0
  %178 = vmatprep.mubr.f32.mxu0 0.0
  %v179 = vand.u32 %v38, 4294901760
  %v180 = vsub.f32 %v38, %v179
  %v181 = vand.u32 %v180, 4294901760
  %v182 = vsub.f32 %v180, %v181
  %v183 = vand.u32 %v182, 4294901760
  %184 = vmatmul.mubr.f32.gmra.mrb[0].mxu0 %v183
  %v185 = vpop.f32.mrb[0].mxu0
  %v186 = vadd.f32 0.0, %v185
  %v187 = vpop.f32.mrb[0].mxu0
  %188 = vmatprep.mubr.f32.mxu0 0.0
  %v189 = vand.u32 %v39, 4294901760
  %v190 = vsub.f32 %v39, %v189
  %v191 = vand.u32 %v190, 4294901760
  %v192 = vsub.f32 %v190, %v191
  %v193 = vand.u32 %v192, 4294901760
  %194 = vmatmul.mubr.f32.gmra.mrb[0].mxu0 %v193
  %v195 = vpop.f32.mrb[0].mxu0
  %v196 = vadd.f32 0.0, %v195
  %v197 = vpop.f32.mrb[0].mxu0
  %198 = vmatprep.mubr.f32.mxu0 0.0
  %v199 = vand.u32 %v40, 4294901760
  %v200 = vsub.f32 %v40, %v199
  %v201 = vand.u32 %v200, 4294901760
  %v202 = vsub.f32 %v200, %v201
  %v203 = vand.u32 %v202, 4294901760
  %204 = vmatmul.mubr.f32.gmra.mrb[0].mxu0 %v203
  %v205 = vpop.f32.mrb[0].mxu0
  %v206 = vadd.f32 0.0, %v205
  %v207 = vpop.f32.mrb[0].mxu0
  %208 = vmatprep.mubr.f32.mxu0 0.0
  %v209 = vand.u32 %v41, 4294901760
  %v210 = vsub.f32 %v41, %v209
  %v211 = vand.u32 %v210, 4294901760
  %v212 = vsub.f32 %v210, %v211
  %v213 = vand.u32 %v212, 4294901760
  %214 = vmatmul.mubr.f32.gmra.mrb[0].mxu0 %v213
  %v215 = vpop.f32.mrb[0].mxu0
  %v216 = vadd.f32 0.0, %v215
  %v217 = vpop.f32.mrb[0].mxu0
  %218 = vdwg.mxu0
  %219 = vmatprep.subr.mxu0 0.0
  %v220 = vand.u32 %v42, 4294901760
  %v221 = vsub.f32 %v42, %v220
  %v222 = vand.u32 %v221, 4294901760
  %v223 = vsub.f32 %v221, %v222
  %v224 = vand.u32 %v223, 4294901760
  %225 = vmatpush1.msra.mxu0 %v224
  %226 = vmatprep.subr.mxu0 0.0
  %v227 = vand.u32 %v43, 4294901760
  %v228 = vsub.f32 %v43, %v227
  %v229 = vand.u32 %v228, 4294901760
  %v230 = vsub.f32 %v228, %v229
  %v231 = vand.u32 %v230, 4294901760
  %232 = vmatpush1.msra.mxu0 %v231
  %233 = vmatprep.subr.mxu0 0.0
  %v234 = vand.u32 %v44, 4294901760
  %v235 = vsub.f32 %v44, %v234
  %v236 = vand.u32 %v235, 4294901760
  %v237 = vsub.f32 %v235, %v236
  %v238 = vand.u32 %v237, 4294901760
  %239 = vmatpush1.msra.mxu0 %v238
  %240 = vmatprep.subr.mxu0 0.0
  %v241 = vand.u32 %v45, 4294901760
  %v242 = vsub.f32 %v45, %v241
  %v243 = vand.u32 %v242, 4294901760
  %v244 = vsub.f32 %v242, %v243
  %v245 = vand.u32 %v244, 4294901760
  %246 = vmatpush1.msra.mxu0 %v245
  %247 = vmatprep.subr.mxu0 0.0
  %v248 = vand.u32 %v46, 4294901760
  %v249 = vsub.f32 %v46, %v248
  %v250 = vand.u32 %v249, 4294901760
  %v251 = vsub.f32 %v249, %v250
  %v252 = vand.u32 %v251, 4294901760
  %253 = vmatpush1.msra.mxu0 %v252
  %254 = vmatprep.subr.mxu0 0.0
  %v255 = vand.u32 %v47, 4294901760
  %v256 = vsub.f32 %v47, %v255
  %v257 = vand.u32 %v256, 4294901760
  %v258 = vsub.f32 %v256, %v257
  %v259 = vand.u32 %v258, 4294901760
  %260 = vmatpush1.msra.mxu0 %v259
  %261 = vmatprep.subr.mxu0 0.0
  %v262 = vand.u32 %v48, 4294901760
  %v263 = vsub.f32 %v48, %v262
  %v264 = vand.u32 %v263, 4294901760
  %v265 = vsub.f32 %v263, %v264
  %v266 = vand.u32 %v265, 4294901760
  %267 = vmatpush1.msra.mxu0 %v266
  %268 = vmatprep.subr.mxu0 0.0
  %v269 = vand.u32 %v49, 4294901760
  %v270 = vsub.f32 %v49, %v269
  %v271 = vand.u32 %v270, 4294901760
  %v272 = vsub.f32 %v270, %v271
  %v273 = vand.u32 %v272, 4294901760
  %274 = vmatpush1.msra.mxu0 %v273
  %275 = vmatprep.subr.mxu0 0.0
  %v276 = vand.u32 %v50, 4294901760
  %v277 = vsub.f32 %v50, %v276
  %v278 = vand.u32 %v277, 4294901760
  %v279 = vsub.f32 %v277, %v278
  %v280 = vand.u32 %v279, 4294901760
  %281 = vmatpush1.msra.mxu0 %v280
  %282 = vmatprep.subr.mxu0 0.0
  %v283 = vand.u32 %v51, 4294901760
  %v284 = vsub.f32 %v51, %v283
  %v285 = vand.u32 %v284, 4294901760
  %v286 = vsub.f32 %v284, %v285
  %v287 = vand.u32 %v286, 4294901760
  %288 = vmatpush1.msra.mxu0 %v287
  %289 = vmatprep.subr.mxu0 0.0
  %v290 = vand.u32 %v52, 4294901760
  %v291 = vsub.f32 %v52, %v290
  %v292 = vand.u32 %v291, 4294901760
  %v293 = vsub.f32 %v291, %v292
  %v294 = vand.u32 %v293, 4294901760
  %295 = vmatpush1.msra.mxu0 %v294
  %296 = vmatprep.subr.mxu0 0.0
  %v297 = vand.u32 %v53, 4294901760
  %v298 = vsub.f32 %v53, %v297
  %v299 = vand.u32 %v298, 4294901760
  %v300 = vsub.f32 %v298, %v299
  %v301 = vand.u32 %v300, 4294901760
  %302 = vmatpush1.msra.mxu0 %v301
  %303 = vmatprep.subr.mxu0 0.0
  %v304 = vand.u32 %v54, 4294901760
  %v305 = vsub.f32 %v54, %v304
  %v306 = vand.u32 %v305, 4294901760
  %v307 = vsub.f32 %v305, %v306
  %v308 = vand.u32 %v307, 4294901760
  %309 = vmatpush1.msra.mxu0 %v308
  %310 = vmatprep.subr.mxu0 0.0
  %v311 = vand.u32 %v55, 4294901760
  %v312 = vsub.f32 %v55, %v311
  %v313 = vand.u32 %v312, 4294901760
  %v314 = vsub.f32 %v312, %v313
  %v315 = vand.u32 %v314, 4294901760
  %316 = vmatpush1.msra.mxu0 %v315
  %317 = vmatprep.subr.mxu0 0.0
  %v318 = vand.u32 %v56, 4294901760
  %v319 = vsub.f32 %v56, %v318
  %v320 = vand.u32 %v319, 4294901760
  %v321 = vsub.f32 %v319, %v320
  %v322 = vand.u32 %v321, 4294901760
  %323 = vmatpush1.msra.mxu0 %v322
  %324 = vmatprep.subr.mxu0 0.0
  %v325 = vand.u32 %v57, 4294901760
  %v326 = vsub.f32 %v57, %v325
  %v327 = vand.u32 %v326, 4294901760
  %v328 = vsub.f32 %v326, %v327
  %v329 = vand.u32 %v328, 4294901760
  %330 = vmatpush1.msra.mxu0 %v329
  %331 = vmatprep.subr.mxu0 0.0
  %332 = vmatpush1.msra.mxu0 0.0
  %333 = vmatprep.subr.mxu0 0.0
  %334 = vmatpush1.msra.mxu0 0.0
  %335 = vmatprep.subr.mxu0 0.0
  %336 = vmatpush1.msra.mxu0 0.0
  %337 = vmatprep.subr.mxu0 0.0
  %338 = vmatpush1.msra.mxu0 0.0
  %339 = vmatprep.subr.mxu0 0.0
  %340 = vmatpush1.msra.mxu0 0.0
  %341 = vmatprep.subr.mxu0 0.0
  %342 = vmatpush1.msra.mxu0 0.0
  %343 = vmatprep.subr.mxu0 0.0
  %344 = vmatpush1.msra.mxu0 0.0
  %345 = vmatprep.subr.mxu0 0.0
  %346 = vmatpush1.msra.mxu0 0.0
  %347 = vmatprep.subr.mxu0 0.0
  %348 = vmatpush1.msra.mxu0 0.0
  %349 = vmatprep.subr.mxu0 0.0
  %350 = vmatpush1.msra.mxu0 0.0
  %351 = vmatprep.subr.mxu0 0.0
  %352 = vmatpush1.msra.mxu0 0.0
  %353 = vmatprep.subr.mxu0 0.0
  %354 = vmatpush1.msra.mxu0 0.0
  %355 = vmatprep.subr.mxu0 0.0
  %356 = vmatpush1.msra.mxu0 0.0
  %357 = vmatprep.subr.mxu0 0.0
  %358 = vmatpush1.msra.mxu0 0.0
  %359 = vmatprep.subr.mxu0 0.0
  %360 = vmatpush1.msra.mxu0 0.0
  %361 = vmatprep.subr.mxu0 0.0
  %362 = vmatpush1.msra.mxu0 0.0
  %363 = vmatprep.mubr.f32.mxu0 0.0
  %v364 = vand.u32 %v34, 4294901760
  %365 = vmatmul.mubr.f32.gmra.mrb[0].mxu0 %v364
  %v366 = vpop.f32.mrb[0].mxu0
  %v367 = vadd.f32 %v146, %v366
  %v368 = vpop.f32.mrb[0].mxu0
  %369 = vmatprep.mubr.f32.mxu0 0.0
  %v370 = vand.u32 %v35, 4294901760
  %371 = vmatmul.mubr.f32.gmra.mrb[0].mxu0 %v370
  %v372 = vpop.f32.mrb[0].mxu0
  %v373 = vadd.f32 %v156, %v372
  %v374 = vpop.f32.mrb[0].mxu0
  %375 = vmatprep.mubr.f32.mxu0 0.0
  %v376 = vand.u32 %v36, 4294901760
  %377 = vmatmul.mubr.f32.gmra.mrb[0].mxu0 %v376
  %v378 = vpop.f32.mrb[0].mxu0
  %v379 = vadd.f32 %v166, %v378
  %v380 = vpop.f32.mrb[0].mxu0
  %381 = vmatprep.mubr.f32.mxu0 0.0
  %v382 = vand.u32 %v37, 4294901760
  %383 = vmatmul.mubr.f32.gmra.mrb[0].mxu0 %v382
  %v384 = vpop.f32.mrb[0].mxu0
  %v385 = vadd.f32 %v176, %v384
  %v386 = vpop.f32.mrb[0].mxu0
  %387 = vmatprep.mubr.f32.mxu0 0.0
  %v388 = vand.u32 %v38, 4294901760
  %389 = vmatmul.mubr.f32.gmra.mrb[0].mxu0 %v388
  %v390 = vpop.f32.mrb[0].mxu0
  %v391 = vadd.f32 %v186, %v390
  %v392 = vpop.f32.mrb[0].mxu0
  %393 = vmatprep.mubr.f32.mxu0 0.0
  %v394 = vand.u32 %v39, 4294901760
  %395 = vmatmul.mubr.f32.gmra.mrb[0].mxu0 %v394
  %v396 = vpop.f32.mrb[0].mxu0
  %v397 = vadd.f32 %v196, %v396
  %v398 = vpop.f32.mrb[0].mxu0
  %399 = vmatprep.mubr.f32.mxu0 0.0
  %v400 = vand.u32 %v40, 4294901760
  %401 = vmatmul.mubr.f32.gmra.mrb[0].mxu0 %v400
  %v402 = vpop.f32.mrb[0].mxu0
  %v403 = vadd.f32 %v206, %v402
  %v404 = vpop.f32.mrb[0].mxu0
  %405 = vmatprep.mubr.f32.mxu0 0.0
  %v406 = vand.u32 %v41, 4294901760
  %407 = vmatmul.mubr.f32.gmra.mrb[0].mxu0 %v406
  %v408 = vpop.f32.mrb[0].mxu0
  %v409 = vadd.f32 %v216, %v408
  %v410 = vpop.f32.mrb[0].mxu0
  %411 = vdwg.mxu0
  %412 = vmatprep.subr.mxu0 0.0
  %v413 = vand.u32 %v42, 4294901760
  %v414 = vsub.f32 %v42, %v413
  %415 = vmatpush1.msra.mxu0 %v414
  %416 = vmatprep.subr.mxu0 0.0
  %v417 = vand.u32 %v43, 4294901760
  %v418 = vsub.f32 %v43, %v417
  %419 = vmatpush1.msra.mxu0 %v418
  %420 = vmatprep.subr.mxu0 0.0
  %v421 = vand.u32 %v44, 4294901760
  %v422 = vsub.f32 %v44, %v421
  %423 = vmatpush1.msra.mxu0 %v422
  %424 = vmatprep.subr.mxu0 0.0
  %v425 = vand.u32 %v45, 4294901760
  %v426 = vsub.f32 %v45, %v425
  %427 = vmatpush1.msra.mxu0 %v426
  %428 = vmatprep.subr.mxu0 0.0
  %v429 = vand.u32 %v46, 4294901760
  %v430 = vsub.f32 %v46, %v429
  %431 = vmatpush1.msra.mxu0 %v430
  %432 = vmatprep.subr.mxu0 0.0
  %v433 = vand.u32 %v47, 4294901760
  %v434 = vsub.f32 %v47, %v433
  %435 = vmatpush1.msra.mxu0 %v434
  %436 = vmatprep.subr.mxu0 0.0
  %v437 = vand.u32 %v48, 4294901760
  %v438 = vsub.f32 %v48, %v437
  %439 = vmatpush1.msra.mxu0 %v438
  %440 = vmatprep.subr.mxu0 0.0
  %v441 = vand.u32 %v49, 4294901760
  %v442 = vsub.f32 %v49, %v441
  %443 = vmatpush1.msra.mxu0 %v442
  %444 = vmatprep.subr.mxu0 0.0
  %v445 = vand.u32 %v50, 4294901760
  %v446 = vsub.f32 %v50, %v445
  %447 = vmatpush1.msra.mxu0 %v446
  %448 = vmatprep.subr.mxu0 0.0
  %v449 = vand.u32 %v51, 4294901760
  %v450 = vsub.f32 %v51, %v449
  %451 = vmatpush1.msra.mxu0 %v450
  %452 = vmatprep.subr.mxu0 0.0
  %v453 = vand.u32 %v52, 4294901760
  %v454 = vsub.f32 %v52, %v453
  %455 = vmatpush1.msra.mxu0 %v454
  %456 = vmatprep.subr.mxu0 0.0
  %v457 = vand.u32 %v53, 4294901760
  %v458 = vsub.f32 %v53, %v457
  %459 = vmatpush1.msra.mxu0 %v458
  %460 = vmatprep.subr.mxu0 0.0
  %v461 = vand.u32 %v54, 4294901760
  %v462 = vsub.f32 %v54, %v461
  %463 = vmatpush1.msra.mxu0 %v462
  %464 = vmatprep.subr.mxu0 0.0
  %v465 = vand.u32 %v55, 4294901760
  %v466 = vsub.f32 %v55, %v465
  %467 = vmatpush1.msra.mxu0 %v466
  %468 = vmatprep.subr.mxu0 0.0
  %v469 = vand.u32 %v56, 4294901760
  %v470 = vsub.f32 %v56, %v469
  %471 = vmatpush1.msra.mxu0 %v470
  %472 = vmatprep.subr.mxu0 0.0
  %v473 = vand.u32 %v57, 4294901760
  %v474 = vsub.f32 %v57, %v473
  %475 = vmatpush1.msra.mxu0 %v474
  %476 = vmatprep.subr.mxu0 0.0
  %477 = vmatpush1.msra.mxu0 0.0
  %478 = vmatprep.subr.mxu0 0.0
  %479 = vmatpush1.msra.mxu0 0.0
  %480 = vmatprep.subr.mxu0 0.0
  %481 = vmatpush1.msra.mxu0 0.0
  %482 = vmatprep.subr.mxu0 0.0
  %483 = vmatpush1.msra.mxu0 0.0
  %484 = vmatprep.subr.mxu0 0.0
  %485 = vmatpush1.msra.mxu0 0.0
  %486 = vmatprep.subr.mxu0 0.0
  %487 = vmatpush1.msra.mxu0 0.0
  %488 = vmatprep.subr.mxu0 0.0
  %489 = vmatpush1.msra.mxu0 0.0
  %490 = vmatprep.subr.mxu0 0.0
  %491 = vmatpush1.msra.mxu0 0.0
  %492 = vmatprep.subr.mxu0 0.0
  %493 = vmatpush1.msra.mxu0 0.0
  %494 = vmatprep.subr.mxu0 0.0
  %495 = vmatpush1.msra.mxu0 0.0
  %496 = vmatprep.subr.mxu0 0.0
  %497 = vmatpush1.msra.mxu0 0.0
  %498 = vmatprep.subr.mxu0 0.0
  %499 = vmatpush1.msra.mxu0 0.0
  %500 = vmatprep.subr.mxu0 0.0
  %501 = vmatpush1.msra.mxu0 0.0
  %502 = vmatprep.subr.mxu0 0.0
  %503 = vmatpush1.msra.mxu0 0.0
  %504 = vmatprep.subr.mxu0 0.0
  %505 = vmatpush1.msra.mxu0 0.0
  %506 = vmatprep.subr.mxu0 0.0
  %507 = vmatpush1.msra.mxu0 0.0
  %508 = vmatprep.mubr.f32.mxu0 0.0
  %v509 = vand.u32 %v34, 4294901760
  %v510 = vsub.f32 %v34, %v509
  %511 = vmatmul.mubr.f32.gmra.mrb[0].mxu0 %v510
  %v512 = vpop.f32.mrb[0].mxu0
  %v513 = vadd.f32 %v367, %v512
  %v514 = vpop.f32.mrb[0].mxu0
  %515 = vmatprep.mubr.f32.mxu0 0.0
  %v516 = vand.u32 %v35, 4294901760
  %v517 = vsub.f32 %v35, %v516
  %518 = vmatmul.mubr.f32.gmra.mrb[0].mxu0 %v517
  %v519 = vpop.f32.mrb[0].mxu0
  %v520 = vadd.f32 %v373, %v519
  %v521 = vpop.f32.mrb[0].mxu0
  %522 = vmatprep.mubr.f32.mxu0 0.0
  %v523 = vand.u32 %v36, 4294901760
  %v524 = vsub.f32 %v36, %v523
  %525 = vmatmul.mubr.f32.gmra.mrb[0].mxu0 %v524
  %v526 = vpop.f32.mrb[0].mxu0
  %v527 = vadd.f32 %v379, %v526
  %v528 = vpop.f32.mrb[0].mxu0
  %529 = vmatprep.mubr.f32.mxu0 0.0
  %v530 = vand.u32 %v37, 4294901760
  %v531 = vsub.f32 %v37, %v530
  %532 = vmatmul.mubr.f32.gmra.mrb[0].mxu0 %v531
  %v533 = vpop.f32.mrb[0].mxu0
  %v534 = vadd.f32 %v385, %v533
  %v535 = vpop.f32.mrb[0].mxu0
  %536 = vmatprep.mubr.f32.mxu0 0.0
  %v537 = vand.u32 %v38, 4294901760
  %v538 = vsub.f32 %v38, %v537
  %539 = vmatmul.mubr.f32.gmra.mrb[0].mxu0 %v538
  %v540 = vpop.f32.mrb[0].mxu0
  %v541 = vadd.f32 %v391, %v540
  %v542 = vpop.f32.mrb[0].mxu0
  %543 = vmatprep.mubr.f32.mxu0 0.0
  %v544 = vand.u32 %v39, 4294901760
  %v545 = vsub.f32 %v39, %v544
  %546 = vmatmul.mubr.f32.gmra.mrb[0].mxu0 %v545
  %v547 = vpop.f32.mrb[0].mxu0
  %v548 = vadd.f32 %v397, %v547
  %v549 = vpop.f32.mrb[0].mxu0
  %550 = vmatprep.mubr.f32.mxu0 0.0
  %v551 = vand.u32 %v40, 4294901760
  %v552 = vsub.f32 %v40, %v551
  %553 = vmatmul.mubr.f32.gmra.mrb[0].mxu0 %v552
  %v554 = vpop.f32.mrb[0].mxu0
  %v555 = vadd.f32 %v403, %v554
  %v556 = vpop.f32.mrb[0].mxu0
  %557 = vmatprep.mubr.f32.mxu0 0.0
  %v558 = vand.u32 %v41, 4294901760
  %v559 = vsub.f32 %v41, %v558
  %560 = vmatmul.mubr.f32.gmra.mrb[0].mxu0 %v559
  %v561 = vpop.f32.mrb[0].mxu0
  %v562 = vadd.f32 %v409, %v561
  %v563 = vpop.f32.mrb[0].mxu0
  %564 = vdwg.mxu0
  %565 = vmatprep.subr.mxu0 0.0
  %v566 = vand.u32 %v42, 4294901760
  %567 = vmatpush1.msra.mxu0 %v566
  %568 = vmatprep.subr.mxu0 0.0
  %v569 = vand.u32 %v43, 4294901760
  %570 = vmatpush1.msra.mxu0 %v569
  %571 = vmatprep.subr.mxu0 0.0
  %v572 = vand.u32 %v44, 4294901760
  %573 = vmatpush1.msra.mxu0 %v572
  %574 = vmatprep.subr.mxu0 0.0
  %v575 = vand.u32 %v45, 4294901760
  %576 = vmatpush1.msra.mxu0 %v575
  %577 = vmatprep.subr.mxu0 0.0
  %v578 = vand.u32 %v46, 4294901760
  %579 = vmatpush1.msra.mxu0 %v578
  %580 = vmatprep.subr.mxu0 0.0
  %v581 = vand.u32 %v47, 4294901760
  %582 = vmatpush1.msra.mxu0 %v581
  %583 = vmatprep.subr.mxu0 0.0
  %v584 = vand.u32 %v48, 4294901760
  %585 = vmatpush1.msra.mxu0 %v584
  %586 = vmatprep.subr.mxu0 0.0
  %v587 = vand.u32 %v49, 4294901760
  %588 = vmatpush1.msra.mxu0 %v587
  %589 = vmatprep.subr.mxu0 0.0
  %v590 = vand.u32 %v50, 4294901760
  %591 = vmatpush1.msra.mxu0 %v590
  %592 = vmatprep.subr.mxu0 0.0
  %v593 = vand.u32 %v51, 4294901760
  %594 = vmatpush1.msra.mxu0 %v593
  %595 = vmatprep.subr.mxu0 0.0
  %v596 = vand.u32 %v52, 4294901760
  %597 = vmatpush1.msra.mxu0 %v596
  %598 = vmatprep.subr.mxu0 0.0
  %v599 = vand.u32 %v53, 4294901760
  %600 = vmatpush1.msra.mxu0 %v599
  %601 = vmatprep.subr.mxu0 0.0
  %v602 = vand.u32 %v54, 4294901760
  %603 = vmatpush1.msra.mxu0 %v602
  %604 = vmatprep.subr.mxu0 0.0
  %v605 = vand.u32 %v55, 4294901760
  %606 = vmatpush1.msra.mxu0 %v605
  %607 = vmatprep.subr.mxu0 0.0
  %v608 = vand.u32 %v56, 4294901760
  %609 = vmatpush1.msra.mxu0 %v608
  %610 = vmatprep.subr.mxu0 0.0
  %v611 = vand.u32 %v57, 4294901760
  %612 = vmatpush1.msra.mxu0 %v611
  %613 = vmatprep.subr.mxu0 0.0
  %614 = vmatpush1.msra.mxu0 0.0
  %615 = vmatprep.subr.mxu0 0.0
  %616 = vmatpush1.msra.mxu0 0.0
  %617 = vmatprep.subr.mxu0 0.0
  %618 = vmatpush1.msra.mxu0 0.0
  %619 = vmatprep.subr.mxu0 0.0
  %620 = vmatpush1.msra.mxu0 0.0
  %621 = vmatprep.subr.mxu0 0.0
  %622 = vmatpush1.msra.mxu0 0.0
  %623 = vmatprep.subr.mxu0 0.0
  %624 = vmatpush1.msra.mxu0 0.0
  %625 = vmatprep.subr.mxu0 0.0
  %626 = vmatpush1.msra.mxu0 0.0
  %627 = vmatprep.subr.mxu0 0.0
  %628 = vmatpush1.msra.mxu0 0.0
  %629 = vmatprep.subr.mxu0 0.0
  %630 = vmatpush1.msra.mxu0 0.0
  %631 = vmatprep.subr.mxu0 0.0
  %632 = vmatpush1.msra.mxu0 0.0
  %633 = vmatprep.subr.mxu0 0.0
  %634 = vmatpush1.msra.mxu0 0.0
  %635 = vmatprep.subr.mxu0 0.0
  %636 = vmatpush1.msra.mxu0 0.0
  %637 = vmatprep.subr.mxu0 0.0
  %638 = vmatpush1.msra.mxu0 0.0
  %639 = vmatprep.subr.mxu0 0.0
  %640 = vmatpush1.msra.mxu0 0.0
  %641 = vmatprep.subr.mxu0 0.0
  %642 = vmatpush1.msra.mxu0 0.0
  %643 = vmatprep.subr.mxu0 0.0
  %644 = vmatpush1.msra.mxu0 0.0
  %645 = vmatprep.mubr.f32.mxu0 0.0
  %v646 = vand.u32 %v34, 4294901760
  %v647 = vsub.f32 %v34, %v646
  %v648 = vand.u32 %v647, 4294901760
  %649 = vmatmul.mubr.f32.gmra.mrb[0].mxu0 %v648
  %v650 = vpop.f32.mrb[0].mxu0
  %v651 = vadd.f32 %v513, %v650
  %v652 = vpop.f32.mrb[0].mxu0
  %653 = vmatprep.mubr.f32.mxu0 0.0
  %v654 = vand.u32 %v35, 4294901760
  %v655 = vsub.f32 %v35, %v654
  %v656 = vand.u32 %v655, 4294901760
  %657 = vmatmul.mubr.f32.gmra.mrb[0].mxu0 %v656
  %v658 = vpop.f32.mrb[0].mxu0
  %v659 = vadd.f32 %v520, %v658
  %v660 = vpop.f32.mrb[0].mxu0
  %661 = vmatprep.mubr.f32.mxu0 0.0
  %v662 = vand.u32 %v36, 4294901760
  %v663 = vsub.f32 %v36, %v662
  %v664 = vand.u32 %v663, 4294901760
  %665 = vmatmul.mubr.f32.gmra.mrb[0].mxu0 %v664
  %v666 = vpop.f32.mrb[0].mxu0
  %v667 = vadd.f32 %v527, %v666
  %v668 = vpop.f32.mrb[0].mxu0
  %669 = vmatprep.mubr.f32.mxu0 0.0
  %v670 = vand.u32 %v37, 4294901760
  %v671 = vsub.f32 %v37, %v670
  %v672 = vand.u32 %v671, 4294901760
  %673 = vmatmul.mubr.f32.gmra.mrb[0].mxu0 %v672
  %v674 = vpop.f32.mrb[0].mxu0
  %v675 = vadd.f32 %v534, %v674
  %v676 = vpop.f32.mrb[0].mxu0
  %677 = vmatprep.mubr.f32.mxu0 0.0
  %v678 = vand.u32 %v38, 4294901760
  %v679 = vsub.f32 %v38, %v678
  %v680 = vand.u32 %v679, 4294901760
  %681 = vmatmul.mubr.f32.gmra.mrb[0].mxu0 %v680
  %v682 = vpop.f32.mrb[0].mxu0
  %v683 = vadd.f32 %v541, %v682
  %v684 = vpop.f32.mrb[0].mxu0
  %685 = vmatprep.mubr.f32.mxu0 0.0
  %v686 = vand.u32 %v39, 4294901760
  %v687 = vsub.f32 %v39, %v686
  %v688 = vand.u32 %v687, 4294901760
  %689 = vmatmul.mubr.f32.gmra.mrb[0].mxu0 %v688
  %v690 = vpop.f32.mrb[0].mxu0
  %v691 = vadd.f32 %v548, %v690
  %v692 = vpop.f32.mrb[0].mxu0
  %693 = vmatprep.mubr.f32.mxu0 0.0
  %v694 = vand.u32 %v40, 4294901760
  %v695 = vsub.f32 %v40, %v694
  %v696 = vand.u32 %v695, 4294901760
  %697 = vmatmul.mubr.f32.gmra.mrb[0].mxu0 %v696
  %v698 = vpop.f32.mrb[0].mxu0
  %v699 = vadd.f32 %v555, %v698
  %v700 = vpop.f32.mrb[0].mxu0
  %701 = vmatprep.mubr.f32.mxu0 0.0
  %v702 = vand.u32 %v41, 4294901760
  %v703 = vsub.f32 %v41, %v702
  %v704 = vand.u32 %v703, 4294901760
  %705 = vmatmul.mubr.f32.gmra.mrb[0].mxu0 %v704
  %v706 = vpop.f32.mrb[0].mxu0
  %v707 = vadd.f32 %v562, %v706
  %v708 = vpop.f32.mrb[0].mxu0
  %709 = vdwg.mxu0
  %710 = vmatprep.subr.mxu0 0.0
  %v711 = vand.u32 %v42, 4294901760
  %v712 = vsub.f32 %v42, %v711
  %v713 = vand.u32 %v712, 4294901760
  %714 = vmatpush1.msra.mxu0 %v713
  %715 = vmatprep.subr.mxu0 0.0
  %v716 = vand.u32 %v43, 4294901760
  %v717 = vsub.f32 %v43, %v716
  %v718 = vand.u32 %v717, 4294901760
  %719 = vmatpush1.msra.mxu0 %v718
  %720 = vmatprep.subr.mxu0 0.0
  %v721 = vand.u32 %v44, 4294901760
  %v722 = vsub.f32 %v44, %v721
  %v723 = vand.u32 %v722, 4294901760
  %724 = vmatpush1.msra.mxu0 %v723
  %725 = vmatprep.subr.mxu0 0.0
  %v726 = vand.u32 %v45, 4294901760
  %v727 = vsub.f32 %v45, %v726
  %v728 = vand.u32 %v727, 4294901760
  %729 = vmatpush1.msra.mxu0 %v728
  %730 = vmatprep.subr.mxu0 0.0
  %v731 = vand.u32 %v46, 4294901760
  %v732 = vsub.f32 %v46, %v731
  %v733 = vand.u32 %v732, 4294901760
  %734 = vmatpush1.msra.mxu0 %v733
  %735 = vmatprep.subr.mxu0 0.0
  %v736 = vand.u32 %v47, 4294901760
  %v737 = vsub.f32 %v47, %v736
  %v738 = vand.u32 %v737, 4294901760
  %739 = vmatpush1.msra.mxu0 %v738
  %740 = vmatprep.subr.mxu0 0.0
  %v741 = vand.u32 %v48, 4294901760
  %v742 = vsub.f32 %v48, %v741
  %v743 = vand.u32 %v742, 4294901760
  %744 = vmatpush1.msra.mxu0 %v743
  %745 = vmatprep.subr.mxu0 0.0
  %v746 = vand.u32 %v49, 4294901760
  %v747 = vsub.f32 %v49, %v746
  %v748 = vand.u32 %v747, 4294901760
  %749 = vmatpush1.msra.mxu0 %v748
  %750 = vmatprep.subr.mxu0 0.0
  %v751 = vand.u32 %v50, 4294901760
  %v752 = vsub.f32 %v50, %v751
  %v753 = vand.u32 %v752, 4294901760
  %754 = vmatpush1.msra.mxu0 %v753
  %755 = vmatprep.subr.mxu0 0.0
  %v756 = vand.u32 %v51, 4294901760
  %v757 = vsub.f32 %v51, %v756
  %v758 = vand.u32 %v757, 4294901760
  %759 = vmatpush1.msra.mxu0 %v758
  %760 = vmatprep.subr.mxu0 0.0
  %v761 = vand.u32 %v52, 4294901760
  %v762 = vsub.f32 %v52, %v761
  %v763 = vand.u32 %v762, 4294901760
  %764 = vmatpush1.msra.mxu0 %v763
  %765 = vmatprep.subr.mxu0 0.0
  %v766 = vand.u32 %v53, 4294901760
  %v767 = vsub.f32 %v53, %v766
  %v768 = vand.u32 %v767, 4294901760
  %769 = vmatpush1.msra.mxu0 %v768
  %770 = vmatprep.subr.mxu0 0.0
  %v771 = vand.u32 %v54, 4294901760
  %v772 = vsub.f32 %v54, %v771
  %v773 = vand.u32 %v772, 4294901760
  %774 = vmatpush1.msra.mxu0 %v773
  %775 = vmatprep.subr.mxu0 0.0
  %v776 = vand.u32 %v55, 4294901760
  %v777 = vsub.f32 %v55, %v776
  %v778 = vand.u32 %v777, 4294901760
  %779 = vmatpush1.msra.mxu0 %v778
  %780 = vmatprep.subr.mxu0 0.0
  %v781 = vand.u32 %v56, 4294901760
  %v782 = vsub.f32 %v56, %v781
  %v783 = vand.u32 %v782, 4294901760
  %784 = vmatpush1.msra.mxu0 %v783
  %785 = vmatprep.subr.mxu0 0.0
  %v786 = vand.u32 %v57, 4294901760
  %v787 = vsub.f32 %v57, %v786
  %v788 = vand.u32 %v787, 4294901760
  %789 = vmatpush1.msra.mxu0 %v788
  %790 = vmatprep.subr.mxu0 0.0
  %791 = vmatpush1.msra.mxu0 0.0
  %792 = vmatprep.subr.mxu0 0.0
  %793 = vmatpush1.msra.mxu0 0.0
  %794 = vmatprep.subr.mxu0 0.0
  %795 = vmatpush1.msra.mxu0 0.0
  %796 = vmatprep.subr.mxu0 0.0
  %797 = vmatpush1.msra.mxu0 0.0
  %798 = vmatprep.subr.mxu0 0.0
  %799 = vmatpush1.msra.mxu0 0.0
  %800 = vmatprep.subr.mxu0 0.0
  %801 = vmatpush1.msra.mxu0 0.0
  %802 = vmatprep.subr.mxu0 0.0
  %803 = vmatpush1.msra.mxu0 0.0
  %804 = vmatprep.subr.mxu0 0.0
  %805 = vmatpush1.msra.mxu0 0.0
  %806 = vmatprep.subr.mxu0 0.0
  %807 = vmatpush1.msra.mxu0 0.0
  %808 = vmatprep.subr.mxu0 0.0
  %809 = vmatpush1.msra.mxu0 0.0
  %810 = vmatprep.subr.mxu0 0.0
  %811 = vmatpush1.msra.mxu0 0.0
  %812 = vmatprep.subr.mxu0 0.0
  %813 = vmatpush1.msra.mxu0 0.0
  %814 = vmatprep.subr.mxu0 0.0
  %815 = vmatpush1.msra.mxu0 0.0
  %816 = vmatprep.subr.mxu0 0.0
  %817 = vmatpush1.msra.mxu0 0.0
  %818 = vmatprep.subr.mxu0 0.0
  %819 = vmatpush1.msra.mxu0 0.0
  %820 = vmatprep.subr.mxu0 0.0
  %821 = vmatpush1.msra.mxu0 0.0
  %822 = vmatprep.mubr.f32.mxu0 0.0
  %v823 = vand.u32 %v34, 4294901760
  %824 = vmatmul.mubr.f32.gmra.mrb[0].mxu0 %v823
  %v825 = vpop.f32.mrb[0].mxu0
  %v826 = vadd.f32 %v651, %v825
  %v827 = vpop.f32.mrb[0].mxu0
  %828 = vmatprep.mubr.f32.mxu0 0.0
  %v829 = vand.u32 %v35, 4294901760
  %830 = vmatmul.mubr.f32.gmra.mrb[0].mxu0 %v829
  %v831 = vpop.f32.mrb[0].mxu0
  %v832 = vadd.f32 %v659, %v831
  %v833 = vpop.f32.mrb[0].mxu0
  %834 = vmatprep.mubr.f32.mxu0 0.0
  %v835 = vand.u32 %v36, 4294901760
  %836 = vmatmul.mubr.f32.gmra.mrb[0].mxu0 %v835
  %v837 = vpop.f32.mrb[0].mxu0
  %v838 = vadd.f32 %v667, %v837
  %v839 = vpop.f32.mrb[0].mxu0
  %840 = vmatprep.mubr.f32.mxu0 0.0
  %v841 = vand.u32 %v37, 4294901760
  %842 = vmatmul.mubr.f32.gmra.mrb[0].mxu0 %v841
  %v843 = vpop.f32.mrb[0].mxu0
  %v844 = vadd.f32 %v675, %v843
  %v845 = vpop.f32.mrb[0].mxu0
  %846 = vmatprep.mubr.f32.mxu0 0.0
  %v847 = vand.u32 %v38, 4294901760
  %848 = vmatmul.mubr.f32.gmra.mrb[0].mxu0 %v847
  %v849 = vpop.f32.mrb[0].mxu0
  %v850 = vadd.f32 %v683, %v849
  %v851 = vpop.f32.mrb[0].mxu0
  %852 = vmatprep.mubr.f32.mxu0 0.0
  %v853 = vand.u32 %v39, 4294901760
  %854 = vmatmul.mubr.f32.gmra.mrb[0].mxu0 %v853
  %v855 = vpop.f32.mrb[0].mxu0
  %v856 = vadd.f32 %v691, %v855
  %v857 = vpop.f32.mrb[0].mxu0
  %858 = vmatprep.mubr.f32.mxu0 0.0
  %v859 = vand.u32 %v40, 4294901760
  %860 = vmatmul.mubr.f32.gmra.mrb[0].mxu0 %v859
  %v861 = vpop.f32.mrb[0].mxu0
  %v862 = vadd.f32 %v699, %v861
  %v863 = vpop.f32.mrb[0].mxu0
  %864 = vmatprep.mubr.f32.mxu0 0.0
  %v865 = vand.u32 %v41, 4294901760
  %866 = vmatmul.mubr.f32.gmra.mrb[0].mxu0 %v865
  %v867 = vpop.f32.mrb[0].mxu0
  %v868 = vadd.f32 %v707, %v867
  %v869 = vpop.f32.mrb[0].mxu0
  %870 = vdwg.mxu0
  %871 = vmatprep.subr.mxu0 0.0
  %v872 = vand.u32 %v42, 4294901760
  %873 = vmatpush1.msra.mxu0 %v872
  %874 = vmatprep.subr.mxu0 0.0
  %v875 = vand.u32 %v43, 4294901760
  %876 = vmatpush1.msra.mxu0 %v875
  %877 = vmatprep.subr.mxu0 0.0
  %v878 = vand.u32 %v44, 4294901760
  %879 = vmatpush1.msra.mxu0 %v878
  %880 = vmatprep.subr.mxu0 0.0
  %v881 = vand.u32 %v45, 4294901760
  %882 = vmatpush1.msra.mxu0 %v881
  %883 = vmatprep.subr.mxu0 0.0
  %v884 = vand.u32 %v46, 4294901760
  %885 = vmatpush1.msra.mxu0 %v884
  %886 = vmatprep.subr.mxu0 0.0
  %v887 = vand.u32 %v47, 4294901760
  %888 = vmatpush1.msra.mxu0 %v887
  %889 = vmatprep.subr.mxu0 0.0
  %v890 = vand.u32 %v48, 4294901760
  %891 = vmatpush1.msra.mxu0 %v890
  %892 = vmatprep.subr.mxu0 0.0
  %v893 = vand.u32 %v49, 4294901760
  %894 = vmatpush1.msra.mxu0 %v893
  %895 = vmatprep.subr.mxu0 0.0
  %v896 = vand.u32 %v50, 4294901760
  %897 = vmatpush1.msra.mxu0 %v896
  %898 = vmatprep.subr.mxu0 0.0
  %v899 = vand.u32 %v51, 4294901760
  %900 = vmatpush1.msra.mxu0 %v899
  %901 = vmatprep.subr.mxu0 0.0
  %v902 = vand.u32 %v52, 4294901760
  %903 = vmatpush1.msra.mxu0 %v902
  %904 = vmatprep.subr.mxu0 0.0
  %v905 = vand.u32 %v53, 4294901760
  %906 = vmatpush1.msra.mxu0 %v905
  %907 = vmatprep.subr.mxu0 0.0
  %v908 = vand.u32 %v54, 4294901760
  %909 = vmatpush1.msra.mxu0 %v908
  %910 = vmatprep.subr.mxu0 0.0
  %v911 = vand.u32 %v55, 4294901760
  %912 = vmatpush1.msra.mxu0 %v911
  %913 = vmatprep.subr.mxu0 0.0
  %v914 = vand.u32 %v56, 4294901760
  %915 = vmatpush1.msra.mxu0 %v914
  %916 = vmatprep.subr.mxu0 0.0
  %v917 = vand.u32 %v57, 4294901760
  %918 = vmatpush1.msra.mxu0 %v917
  %919 = vmatprep.subr.mxu0 0.0
  %920 = vmatpush1.msra.mxu0 0.0
  %921 = vmatprep.subr.mxu0 0.0
  %922 = vmatpush1.msra.mxu0 0.0
  %923 = vmatprep.subr.mxu0 0.0
  %924 = vmatpush1.msra.mxu0 0.0
  %925 = vmatprep.subr.mxu0 0.0
  %926 = vmatpush1.msra.mxu0 0.0
  %927 = vmatprep.subr.mxu0 0.0
  %928 = vmatpush1.msra.mxu0 0.0
  %929 = vmatprep.subr.mxu0 0.0
  %930 = vmatpush1.msra.mxu0 0.0
  %931 = vmatprep.subr.mxu0 0.0
  %932 = vmatpush1.msra.mxu0 0.0
  %933 = vmatprep.subr.mxu0 0.0
  %934 = vmatpush1.msra.mxu0 0.0
  %935 = vmatprep.subr.mxu0 0.0
  %936 = vmatpush1.msra.mxu0 0.0
  %937 = vmatprep.subr.mxu0 0.0
  %938 = vmatpush1.msra.mxu0 0.0
  %939 = vmatprep.subr.mxu0 0.0
  %940 = vmatpush1.msra.mxu0 0.0
  %941 = vmatprep.subr.mxu0 0.0
  %942 = vmatpush1.msra.mxu0 0.0
  %943 = vmatprep.subr.mxu0 0.0
  %944 = vmatpush1.msra.mxu0 0.0
  %945 = vmatprep.subr.mxu0 0.0
  %946 = vmatpush1.msra.mxu0 0.0
  %947 = vmatprep.subr.mxu0 0.0
  %948 = vmatpush1.msra.mxu0 0.0
  %949 = vmatprep.subr.mxu0 0.0
  %950 = vmatpush1.msra.mxu0 0.0
  %951 = vmatprep.mubr.f32.mxu0 0.0
  %v952 = vand.u32 %v34, 4294901760
  %953 = vmatmul.mubr.f32.gmra.mrb[0].mxu0 %v952
  %v954 = vpop.f32.mrb[0].mxu0
  %v955 = vadd.f32 %v826, %v954
  %v956 = vpop.f32.mrb[0].mxu0
  %957 = vmatprep.mubr.f32.mxu0 0.0
  %v958 = vand.u32 %v35, 4294901760
  %959 = vmatmul.mubr.f32.gmra.mrb[0].mxu0 %v958
  %v960 = vpop.f32.mrb[0].mxu0
  %v961 = vadd.f32 %v832, %v960
  %v962 = vpop.f32.mrb[0].mxu0
  %963 = vmatprep.mubr.f32.mxu0 0.0
  %v964 = vand.u32 %v36, 4294901760
  %965 = vmatmul.mubr.f32.gmra.mrb[0].mxu0 %v964
  %v966 = vpop.f32.mrb[0].mxu0
  %v967 = vadd.f32 %v838, %v966
  %v968 = vpop.f32.mrb[0].mxu0
  %969 = vmatprep.mubr.f32.mxu0 0.0
  %v970 = vand.u32 %v37, 4294901760
  %971 = vmatmul.mubr.f32.gmra.mrb[0].mxu0 %v970
  %v972 = vpop.f32.mrb[0].mxu0
  %v973 = vadd.f32 %v844, %v972
  %v974 = vpop.f32.mrb[0].mxu0
  %975 = vmatprep.mubr.f32.mxu0 0.0
  %v976 = vand.u32 %v38, 4294901760
  %977 = vmatmul.mubr.f32.gmra.mrb[0].mxu0 %v976
  %v978 = vpop.f32.mrb[0].mxu0
  %v979 = vadd.f32 %v850, %v978
  %v980 = vpop.f32.mrb[0].mxu0
  %981 = vmatprep.mubr.f32.mxu0 0.0
  %v982 = vand.u32 %v39, 4294901760
  %983 = vmatmul.mubr.f32.gmra.mrb[0].mxu0 %v982
  %v984 = vpop.f32.mrb[0].mxu0
  %v985 = vadd.f32 %v856, %v984
  %v986 = vpop.f32.mrb[0].mxu0
  %987 = vmatprep.mubr.f32.mxu0 0.0
  %v988 = vand.u32 %v40, 4294901760
  %989 = vmatmul.mubr.f32.gmra.mrb[0].mxu0 %v988
  %v990 = vpop.f32.mrb[0].mxu0
  %v991 = vadd.f32 %v862, %v990
  %v992 = vpop.f32.mrb[0].mxu0
  %993 = vmatprep.mubr.f32.mxu0 0.0
  %v994 = vand.u32 %v41, 4294901760
  %995 = vmatmul.mubr.f32.gmra.mrb[0].mxu0 %v994
  %v996 = vpop.f32.mrb[0].mxu0
  %v997 = vadd.f32 %v868, %v996
  %v998 = vpop.f32.mrb[0].mxu0
  %999 = vdwg.mxu0
  %v1000 = vadd.f32 %v26, %v955
  %v1001 = vadd.f32 %v27, %v961
  %v1002 = vadd.f32 %v28, %v967
  %v1003 = vadd.f32 %v29, %v973
  %v1004 = vadd.f32 %v30, %v979
  %v1005 = vadd.f32 %v31, %v985
  %v1006 = vadd.f32 %v32, %v991
  %v1007 = vadd.f32 %v33, %v997
  %1008 = vst [vmem:[#allocation2] sm:$0xff] %v1000
  %1009 = vst [vmem:[#allocation2 + $0x8] sm:$0xff] %v1001
  %1010 = vst [vmem:[#allocation2 + $0x10] sm:$0xff] %v1002
  %1011 = vst [vmem:[#allocation2 + $0x18] sm:$0xff] %v1003
  %1012 = vst [vmem:[#allocation2 + $0x20] sm:$0xff] %v1004
  %1013 = vst [vmem:[#allocation2 + $0x28] sm:$0xff] %v1005
  %1014 = vst [vmem:[#allocation2 + $0x30] sm:$0xff] %v1006
  %1015 = vst [vmem:[#allocation2 + $0x38] sm:$0xff] %v1007
  // Predicated region
  $region18: #{_lambda_.9} parent=0 // pred_check
    %p1016 = pneg %p14
  $region19: #{_lambda_.9} parent=0 // pred_check_branch
    %1018 = sbr.rel (%p1016) target = $region21
  $region20: #{_lambda_.9} parent=0 // pred_region
    %v1019 = vld [vmem:[#allocation2] sm:$0xff]
    %v1020 = vld [vmem:[#allocation2 + $0x8] sm:$0xff]
    %v1021 = vld [vmem:[#allocation2 + $0x10] sm:$0xff]
    %v1022 = vld [vmem:[#allocation2 + $0x18] sm:$0xff]
    %v1023 = vld [vmem:[#allocation2 + $0x20] sm:$0xff]
    %v1024 = vld [vmem:[#allocation2 + $0x28] sm:$0xff]
    %v1025 = vld [vmem:[#allocation2 + $0x30] sm:$0xff]
    %v1026 = vld [vmem:[#allocation2 + $0x38] sm:$0xff]
    %v1027 = vld [vmem:[%s2] sm:$0x1]
    %v1029 = vlaneseq
    %v1030 = vshrl.u32 %v1029, 7
    %v1031 = vsub.s32 0, %v1030
    %v1032 = vrot.slane %v1027, %v1031
    %v1034 = vadd.f32 %v1019, %v1032
    %v1035 = vadd.f32 %v1020, %v1032
    %v1036 = vadd.f32 %v1021, %v1032
    %v1037 = vadd.f32 %v1022, %v1032
    %v1038 = vadd.f32 %v1023, %v1032
    %v1039 = vadd.f32 %v1024, %v1032
    %v1040 = vadd.f32 %v1025, %v1032
    %v1041 = vadd.f32 %v1026, %v1032
    %1042 = vst [vmem:[%s3] sm:$0xff] %v1034
    %1043 = vst [vmem:[%s3 + $0x8] sm:$0xff] %v1035
    %1044 = vst [vmem:[%s3 + $0x10] sm:$0xff] %v1036
    %1045 = vst [vmem:[%s3 + $0x18] sm:$0xff] %v1037
    %1046 = vst [vmem:[%s3 + $0x20] sm:$0xff] %v1038
    %1047 = vst [vmem:[%s3 + $0x28] sm:$0xff] %v1039
    %1048 = vst [vmem:[%s3 + $0x30] sm:$0xff] %v1040
    %1049 = vst [vmem:[%s3 + $0x38] sm:$0xff] %v1041
  $region21: #{_lambda_.9} parent=0 // pred_fallthru
    _
  // Predicated region
  $region22: #{_lambda_.9} parent=0 // pred_check
    _
  $region23: #{_lambda_.9} parent=0 // pred_check_branch
    %1051 = sbr.rel (0) target = $region25
  $region24: #{_lambda_.9} parent=0 // pred_region
    _
  $region25: #{_lambda_.9} parent=0 // pred_fallthru
    _
  // Predicated region
  $region26: #{_lambda_.9} parent=0 // pred_check
    _
  $region27: #{_lambda_.9} parent=0 // pred_check_branch
    %1053 = sbr.rel (0) target = $region29
  $region28: #{_lambda_.9} parent=0 // pred_region
    _
  $region29: #{_lambda_.9} parent=0 // pred_fallthru
    _

// kernel: _lambda_.10
$region0: #{_lambda_.10}
  #allocation0 [shape = 'u32[]', space=smem, size = 0x4, offset = 0x4, fixed_abs, tag = 'smem constant byte address 0x4 - core index']
  #allocation1 [shape = 'u32[144,128]{1,0:T(1,128)}', space=vmem, size = 0x12000, scoped, tag = 'internal scratch']
  #allocation2 [shape = 'f32[64,128]{1,0:T(8,128)}', space=vmem, size = 0x8000, scoped, tag = 'scratch operand']
  %s0 = inlined_call_operand.vmem [shape: f32[64,128], index: 0, kind: input, shape index: {}]
  %s1 = inlined_call_operand.vmem [shape: f32[128,128], index: 1, kind: input, shape index: {}]
  %s2 = inlined_call_operand.vmem [shape: f32[1,128], index: 2, kind: input, shape index: {}]
  %s3 = inlined_call_operand.vmem [shape: f32[64,128], index: 3, kind: output, shape index: {}]
  %s4 = sld [smem:[#allocation0]]
  $region30: #{_lambda_.10} parent=0
    _
  %s6 = ssub.s32 1, %s4
  %s7 = scalar_select 0, %s6, %s4
  // Predicated region
  $region2: #{_lambda_.10} parent=0 // pred_check
    _
  $region3: #{_lambda_.10} parent=0 // pred_check_branch
    %9 = sbr.rel (0) target = $region5
  $region4: #{_lambda_.10} parent=0 // pred_region
    _
  $region5: #{_lambda_.10} parent=0 // pred_fallthru
    _
  // Predicated region
  $region6: #{_lambda_.10} parent=0 // pred_check
    _
  $region7: #{_lambda_.10} parent=0 // pred_check_branch
    %11 = sbr.rel (0) target = $region9
  $region8: #{_lambda_.10} parent=0 // pred_region
    _
  $region9: #{_lambda_.10} parent=0 // pred_fallthru
    _
  // Predicated region
  $region10: #{_lambda_.10} parent=0 // pred_check
    _
  $region11: #{_lambda_.10} parent=0 // pred_check_branch
    %13 = sbr.rel (0) target = $region13
  $region12: #{_lambda_.10} parent=0 // pred_region
    _
  $region13: #{_lambda_.10} parent=0 // pred_fallthru
    _
  %p14 = scmp.eq.s32.totalorder 0, 0
  // Predicated region
  $region14: #{_lambda_.10} parent=0 // pred_check
    %p15 = pneg %p14
  $region15: #{_lambda_.10} parent=0 // pred_check_branch
    %17 = sbr.rel (%p15) target = $region17
  $region16: #{_lambda_.10} parent=0 // pred_region
    %18 = vst [vmem:[#allocation2] sm:$0xff] 0.0
    %19 = vst [vmem:[#allocation2 + $0x8] sm:$0xff] 0.0
    %20 = vst [vmem:[#allocation2 + $0x10] sm:$0xff] 0.0
    %21 = vst [vmem:[#allocation2 + $0x18] sm:$0xff] 0.0
    %22 = vst [vmem:[#allocation2 + $0x20] sm:$0xff] 0.0
    %23 = vst [vmem:[#allocation2 + $0x28] sm:$0xff] 0.0
    %24 = vst [vmem:[#allocation2 + $0x30] sm:$0xff] 0.0
    %25 = vst [vmem:[#allocation2 + $0x38] sm:$0xff] 0.0
  $region17: #{_lambda_.10} parent=0 // pred_fallthru
    _
  %v26 = vld [vmem:[#allocation2] sm:$0xff]
  %v27 = vld [vmem:[#allocation2 + $0x8] sm:$0xff]
  %v28 = vld [vmem:[#allocation2 + $0x10] sm:$0xff]
  %v29 = vld [vmem:[#allocation2 + $0x18] sm:$0xff]
  %v30 = vld [vmem:[#allocation2 + $0x20] sm:$0xff]
  %v31 = vld [vmem:[#allocation2 + $0x28] sm:$0xff]
  %v32 = vld [vmem:[#allocation2 + $0x30] sm:$0xff]
  %v33 = vld [vmem:[#allocation2 + $0x38] sm:$0xff]
  %v34 = vld [vmem:[%s0] sm:$0xff]
  %v35 = vld [vmem:[%s0 + $0x8] sm:$0xff]
  %v36 = vld [vmem:[%s0 + $0x10] sm:$0xff]
  %v37 = vld [vmem:[%s0 + $0x18] sm:$0xff]
  %v38 = vld [vmem:[%s0 + $0x20] sm:$0xff]
  %v39 = vld [vmem:[%s0 + $0x28] sm:$0xff]
  %v40 = vld [vmem:[%s0 + $0x30] sm:$0xff]
  %v41 = vld [vmem:[%s0 + $0x38] sm:$0xff]
  %v42 = vld [vmem:[%s1] sm:$0xff]
  %v43 = vld [vmem:[%s1 + $0x8] sm:$0xff]
  %v44 = vld [vmem:[%s1 + $0x10] sm:$0xff]
  %v45 = vld [vmem:[%s1 + $0x18] sm:$0xff]
  %v46 = vld [vmem:[%s1 + $0x20] sm:$0xff]
  %v47 = vld [vmem:[%s1 + $0x28] sm:$0xff]
  %v48 = vld [vmem:[%s1 + $0x30] sm:$0xff]
  %v49 = vld [vmem:[%s1 + $0x38] sm:$0xff]
  %v50 = vld [vmem:[%s1 + $0x40] sm:$0xff]
  %v51 = vld [vmem:[%s1 + $0x48] sm:$0xff]
  %v52 = vld [vmem:[%s1 + $0x50] sm:$0xff]
  %v53 = vld [vmem:[%s1 + $0x58] sm:$0xff]
  %v54 = vld [vmem:[%s1 + $0x60] sm:$0xff]
  %v55 = vld [vmem:[%s1 + $0x68] sm:$0xff]
  %v56 = vld [vmem:[%s1 + $0x70] sm:$0xff]
  %v57 = vld [vmem:[%s1 + $0x78] sm:$0xff]
  %58 = vmatprep.subr.mxu0 0.0
  %v59 = vand.u32 %v42, 4294901760
  %60 = vmatpush1.msra.mxu0 %v59
  %61 = vmatprep.subr.mxu0 0.0
  %v62 = vand.u32 %v43, 4294901760
  %63 = vmatpush1.msra.mxu0 %v62
  %64 = vmatprep.subr.mxu0 0.0
  %v65 = vand.u32 %v44, 4294901760
  %66 = vmatpush1.msra.mxu0 %v65
  %67 = vmatprep.subr.mxu0 0.0
  %v68 = vand.u32 %v45, 4294901760
  %69 = vmatpush1.msra.mxu0 %v68
  %70 = vmatprep.subr.mxu0 0.0
  %v71 = vand.u32 %v46, 4294901760
  %72 = vmatpush1.msra.mxu0 %v71
  %73 = vmatprep.subr.mxu0 0.0
  %v74 = vand.u32 %v47, 4294901760
  %75 = vmatpush1.msra.mxu0 %v74
  %76 = vmatprep.subr.mxu0 0.0
  %v77 = vand.u32 %v48, 4294901760
  %78 = vmatpush1.msra.mxu0 %v77
  %79 = vmatprep.subr.mxu0 0.0
  %v80 = vand.u32 %v49, 4294901760
  %81 = vmatpush1.msra.mxu0 %v80
  %82 = vmatprep.subr.mxu0 0.0
  %v83 = vand.u32 %v50, 4294901760
  %84 = vmatpush1.msra.mxu0 %v83
  %85 = vmatprep.subr.mxu0 0.0
  %v86 = vand.u32 %v51, 4294901760
  %87 = vmatpush1.msra.mxu0 %v86
  %88 = vmatprep.subr.mxu0 0.0
  %v89 = vand.u32 %v52, 4294901760
  %90 = vmatpush1.msra.mxu0 %v89
  %91 = vmatprep.subr.mxu0 0.0
  %v92 = vand.u32 %v53, 4294901760
  %93 = vmatpush1.msra.mxu0 %v92
  %94 = vmatprep.subr.mxu0 0.0
  %v95 = vand.u32 %v54, 4294901760
  %96 = vmatpush1.msra.mxu0 %v95
  %97 = vmatprep.subr.mxu0 0.0
  %v98 = vand.u32 %v55, 4294901760
  %99 = vmatpush1.msra.mxu0 %v98
  %100 = vmatprep.subr.mxu0 0.0
  %v101 = vand.u32 %v56, 4294901760
  %102 = vmatpush1.msra.mxu0 %v101
  %103 = vmatprep.subr.mxu0 0.0
  %v104 = vand.u32 %v57, 4294901760
  %105 = vmatpush1.msra.mxu0 %v104
  %106 = vmatprep.subr.mxu0 0.0
  %107 = vmatpush1.msra.mxu0 0.0
  %108 = vmatprep.subr.mxu0 0.0
  %109 = vmatpush1.msra.mxu0 0.0
  %110 = vmatprep.subr.mxu0 0.0
  %111 = vmatpush1.msra.mxu0 0.0
  %112 = vmatprep.subr.mxu0 0.0
  %113 = vmatpush1.msra.mxu0 0.0
  %114 = vmatprep.subr.mxu0 0.0
  %115 = vmatpush1.msra.mxu0 0.0
  %116 = vmatprep.subr.mxu0 0.0
  %117 = vmatpush1.msra.mxu0 0.0
  %118 = vmatprep.subr.mxu0 0.0
  %119 = vmatpush1.msra.mxu0 0.0
  %120 = vmatprep.subr.mxu0 0.0
  %121 = vmatpush1.msra.mxu0 0.0
  %122 = vmatprep.subr.mxu0 0.0
  %123 = vmatpush1.msra.mxu0 0.0
  %124 = vmatprep.subr.mxu0 0.0
  %125 = vmatpush1.msra.mxu0 0.0
  %126 = vmatprep.subr.mxu0 0.0
  %127 = vmatpush1.msra.mxu0 0.0
  %128 = vmatprep.subr.mxu0 0.0
  %129 = vmatpush1.msra.mxu0 0.0
  %130 = vmatprep.subr.mxu0 0.0
  %131 = vmatpush1.msra.mxu0 0.0
  %132 = vmatprep.subr.mxu0 0.0
  %133 = vmatpush1.msra.mxu0 0.0
  %134 = vmatprep.subr.mxu0 0.0
  %135 = vmatpush1.msra.mxu0 0.0
  %136 = vmatprep.subr.mxu0 0.0
  %137 = vmatpush1.msra.mxu0 0.0
  %138 = vmatprep.mubr.f32.mxu0 0.0
  %v139 = vand.u32 %v34, 4294901760
  %v140 = vsub.f32 %v34, %v139
  %v141 = vand.u32 %v140, 4294901760
  %v142 = vsub.f32 %v140, %v141
  %v143 = vand.u32 %v142, 4294901760
  %144 = vmatmul.mubr.f32.gmra.mrb[0].mxu0 %v143
  %v145 = vpop.f32.mrb[0].mxu0
  %v146 = vadd.f32 0.0, %v145
  %v147 = vpop.f32.mrb[0].mxu0
  %148 = vmatprep.mubr.f32.mxu0 0.0
  %v149 = vand.u32 %v35, 4294901760
  %v150 = vsub.f32 %v35, %v149
  %v151 = vand.u32 %v150, 4294901760
  %v152 = vsub.f32 %v150, %v151
  %v153 = vand.u32 %v152, 4294901760
  %154 = vmatmul.mubr.f32.gmra.mrb[0].mxu0 %v153
  %v155 = vpop.f32.mrb[0].mxu0
  %v156 = vadd.f32 0.0, %v155
  %v157 = vpop.f32.mrb[0].mxu0
  %158 = vmatprep.mubr.f32.mxu0 0.0
  %v159 = vand.u32 %v36, 4294901760
  %v160 = vsub.f32 %v36, %v159
  %v161 = vand.u32 %v160, 4294901760
  %v162 = vsub.f32 %v160, %v161
  %v163 = vand.u32 %v162, 4294901760
  %164 = vmatmul.mubr.f32.gmra.mrb[0].mxu0 %v163
  %v165 = vpop.f32.mrb[0].mxu0
  %v166 = vadd.f32 0.0, %v165
  %v167 = vpop.f32.mrb[0].mxu0
  %168 = vmatprep.mubr.f32.mxu0 0.0
  %v169 = vand.u32 %v37, 4294901760
  %v170 = vsub.f32 %v37, %v169
  %v171 = vand.u32 %v170, 4294901760
  %v172 = vsub.f32 %v170, %v171
  %v173 = vand.u32 %v172, 4294901760
  %174 = vmatmul.mubr.f32.gmra.mrb[0].mxu0 %v173
  %v175 = vpop.f32.mrb[0].mxu0
  %v176 = vadd.f32 0.0, %v175
  %v177 = vpop.f32.mrb[0].mxu0
  %178 = vmatprep.mubr.f32.mxu0 0.0
  %v179 = vand.u32 %v38, 4294901760
  %v180 = vsub.f32 %v38, %v179
  %v181 = vand.u32 %v180, 4294901760
  %v182 = vsub.f32 %v180, %v181
  %v183 = vand.u32 %v182, 4294901760
  %184 = vmatmul.mubr.f32.gmra.mrb[0].mxu0 %v183
  %v185 = vpop.f32.mrb[0].mxu0
  %v186 = vadd.f32 0.0, %v185
  %v187 = vpop.f32.mrb[0].mxu0
  %188 = vmatprep.mubr.f32.mxu0 0.0
  %v189 = vand.u32 %v39, 4294901760
  %v190 = vsub.f32 %v39, %v189
  %v191 = vand.u32 %v190, 4294901760
  %v192 = vsub.f32 %v190, %v191
  %v193 = vand.u32 %v192, 4294901760
  %194 = vmatmul.mubr.f32.gmra.mrb[0].mxu0 %v193
  %v195 = vpop.f32.mrb[0].mxu0
  %v196 = vadd.f32 0.0, %v195
  %v197 = vpop.f32.mrb[0].mxu0
  %198 = vmatprep.mubr.f32.mxu0 0.0
  %v199 = vand.u32 %v40, 4294901760
  %v200 = vsub.f32 %v40, %v199
  %v201 = vand.u32 %v200, 4294901760
  %v202 = vsub.f32 %v200, %v201
  %v203 = vand.u32 %v202, 4294901760
  %204 = vmatmul.mubr.f32.gmra.mrb[0].mxu0 %v203
  %v205 = vpop.f32.mrb[0].mxu0
  %v206 = vadd.f32 0.0, %v205
  %v207 = vpop.f32.mrb[0].mxu0
  %208 = vmatprep.mubr.f32.mxu0 0.0
  %v209 = vand.u32 %v41, 4294901760
  %v210 = vsub.f32 %v41, %v209
  %v211 = vand.u32 %v210, 4294901760
  %v212 = vsub.f32 %v210, %v211
  %v213 = vand.u32 %v212, 4294901760
  %214 = vmatmul.mubr.f32.gmra.mrb[0].mxu0 %v213
  %v215 = vpop.f32.mrb[0].mxu0
  %v216 = vadd.f32 0.0, %v215
  %v217 = vpop.f32.mrb[0].mxu0
  %218 = vdwg.mxu0
  %219 = vmatprep.subr.mxu0 0.0
  %v220 = vand.u32 %v42, 4294901760
  %v221 = vsub.f32 %v42, %v220
  %v222 = vand.u32 %v221, 4294901760
  %v223 = vsub.f32 %v221, %v222
  %v224 = vand.u32 %v223, 4294901760
  %225 = vmatpush1.msra.mxu0 %v224
  %226 = vmatprep.subr.mxu0 0.0
  %v227 = vand.u32 %v43, 4294901760
  %v228 = vsub.f32 %v43, %v227
  %v229 = vand.u32 %v228, 4294901760
  %v230 = vsub.f32 %v228, %v229
  %v231 = vand.u32 %v230, 4294901760
  %232 = vmatpush1.msra.mxu0 %v231
  %233 = vmatprep.subr.mxu0 0.0
  %v234 = vand.u32 %v44, 4294901760
  %v235 = vsub.f32 %v44, %v234
  %v236 = vand.u32 %v235, 4294901760
  %v237 = vsub.f32 %v235, %v236
  %v238 = vand.u32 %v237, 4294901760
  %239 = vmatpush1.msra.mxu0 %v238
  %240 = vmatprep.subr.mxu0 0.0
  %v241 = vand.u32 %v45, 4294901760
  %v242 = vsub.f32 %v45, %v241
  %v243 = vand.u32 %v242, 4294901760
  %v244 = vsub.f32 %v242, %v243
  %v245 = vand.u32 %v244, 4294901760
  %246 = vmatpush1.msra.mxu0 %v245
  %247 = vmatprep.subr.mxu0 0.0
  %v248 = vand.u32 %v46, 4294901760
  %v249 = vsub.f32 %v46, %v248
  %v250 = vand.u32 %v249, 4294901760
  %v251 = vsub.f32 %v249, %v250
  %v252 = vand.u32 %v251, 4294901760
  %253 = vmatpush1.msra.mxu0 %v252
  %254 = vmatprep.subr.mxu0 0.0
  %v255 = vand.u32 %v47, 4294901760
  %v256 = vsub.f32 %v47, %v255
  %v257 = vand.u32 %v256, 4294901760
  %v258 = vsub.f32 %v256, %v257
  %v259 = vand.u32 %v258, 4294901760
  %260 = vmatpush1.msra.mxu0 %v259
  %261 = vmatprep.subr.mxu0 0.0
  %v262 = vand.u32 %v48, 4294901760
  %v263 = vsub.f32 %v48, %v262
  %v264 = vand.u32 %v263, 4294901760
  %v265 = vsub.f32 %v263, %v264
  %v266 = vand.u32 %v265, 4294901760
  %267 = vmatpush1.msra.mxu0 %v266
  %268 = vmatprep.subr.mxu0 0.0
  %v269 = vand.u32 %v49, 4294901760
  %v270 = vsub.f32 %v49, %v269
  %v271 = vand.u32 %v270, 4294901760
  %v272 = vsub.f32 %v270, %v271
  %v273 = vand.u32 %v272, 4294901760
  %274 = vmatpush1.msra.mxu0 %v273
  %275 = vmatprep.subr.mxu0 0.0
  %v276 = vand.u32 %v50, 4294901760
  %v277 = vsub.f32 %v50, %v276
  %v278 = vand.u32 %v277, 4294901760
  %v279 = vsub.f32 %v277, %v278
  %v280 = vand.u32 %v279, 4294901760
  %281 = vmatpush1.msra.mxu0 %v280
  %282 = vmatprep.subr.mxu0 0.0
  %v283 = vand.u32 %v51, 4294901760
  %v284 = vsub.f32 %v51, %v283
  %v285 = vand.u32 %v284, 4294901760
  %v286 = vsub.f32 %v284, %v285
  %v287 = vand.u32 %v286, 4294901760
  %288 = vmatpush1.msra.mxu0 %v287
  %289 = vmatprep.subr.mxu0 0.0
  %v290 = vand.u32 %v52, 4294901760
  %v291 = vsub.f32 %v52, %v290
  %v292 = vand.u32 %v291, 4294901760
  %v293 = vsub.f32 %v291, %v292
  %v294 = vand.u32 %v293, 4294901760
  %295 = vmatpush1.msra.mxu0 %v294
  %296 = vmatprep.subr.mxu0 0.0
  %v297 = vand.u32 %v53, 4294901760
  %v298 = vsub.f32 %v53, %v297
  %v299 = vand.u32 %v298, 4294901760
  %v300 = vsub.f32 %v298, %v299
  %v301 = vand.u32 %v300, 4294901760
  %302 = vmatpush1.msra.mxu0 %v301
  %303 = vmatprep.subr.mxu0 0.0
  %v304 = vand.u32 %v54, 4294901760
  %v305 = vsub.f32 %v54, %v304
  %v306 = vand.u32 %v305, 4294901760
  %v307 = vsub.f32 %v305, %v306
  %v308 = vand.u32 %v307, 4294901760
  %309 = vmatpush1.msra.mxu0 %v308
  %310 = vmatprep.subr.mxu0 0.0
  %v311 = vand.u32 %v55, 4294901760
  %v312 = vsub.f32 %v55, %v311
  %v313 = vand.u32 %v312, 4294901760
  %v314 = vsub.f32 %v312, %v313
  %v315 = vand.u32 %v314, 4294901760
  %316 = vmatpush1.msra.mxu0 %v315
  %317 = vmatprep.subr.mxu0 0.0
  %v318 = vand.u32 %v56, 4294901760
  %v319 = vsub.f32 %v56, %v318
  %v320 = vand.u32 %v319, 4294901760
  %v321 = vsub.f32 %v319, %v320
  %v322 = vand.u32 %v321, 4294901760
  %323 = vmatpush1.msra.mxu0 %v322
  %324 = vmatprep.subr.mxu0 0.0
  %v325 = vand.u32 %v57, 4294901760
  %v326 = vsub.f32 %v57, %v325
  %v327 = vand.u32 %v326, 4294901760
  %v328 = vsub.f32 %v326, %v327
  %v329 = vand.u32 %v328, 4294901760
  %330 = vmatpush1.msra.mxu0 %v329
  %331 = vmatprep.subr.mxu0 0.0
  %332 = vmatpush1.msra.mxu0 0.0
  %333 = vmatprep.subr.mxu0 0.0
  %334 = vmatpush1.msra.mxu0 0.0
  %335 = vmatprep.subr.mxu0 0.0
  %336 = vmatpush1.msra.mxu0 0.0
  %337 = vmatprep.subr.mxu0 0.0
  %338 = vmatpush1.msra.mxu0 0.0
  %339 = vmatprep.subr.mxu0 0.0
  %340 = vmatpush1.msra.mxu0 0.0
  %341 = vmatprep.subr.mxu0 0.0
  %342 = vmatpush1.msra.mxu0 0.0
  %343 = vmatprep.subr.mxu0 0.0
  %344 = vmatpush1.msra.mxu0 0.0
  %345 = vmatprep.subr.mxu0 0.0
  %346 = vmatpush1.msra.mxu0 0.0
  %347 = vmatprep.subr.mxu0 0.0
  %348 = vmatpush1.msra.mxu0 0.0
  %349 = vmatprep.subr.mxu0 0.0
  %350 = vmatpush1.msra.mxu0 0.0
  %351 = vmatprep.subr.mxu0 0.0
  %352 = vmatpush1.msra.mxu0 0.0
  %353 = vmatprep.subr.mxu0 0.0
  %354 = vmatpush1.msra.mxu0 0.0
  %355 = vmatprep.subr.mxu0 0.0
  %356 = vmatpush1.msra.mxu0 0.0
  %357 = vmatprep.subr.mxu0 0.0
  %358 = vmatpush1.msra.mxu0 0.0
  %359 = vmatprep.subr.mxu0 0.0
  %360 = vmatpush1.msra.mxu0 0.0
  %361 = vmatprep.subr.mxu0 0.0
  %362 = vmatpush1.msra.mxu0 0.0
  %363 = vmatprep.mubr.f32.mxu0 0.0
  %v364 = vand.u32 %v34, 4294901760
  %365 = vmatmul.mubr.f32.gmra.mrb[0].mxu0 %v364
  %v366 = vpop.f32.mrb[0].mxu0
  %v367 = vadd.f32 %v146, %v366
  %v368 = vpop.f32.mrb[0].mxu0
  %369 = vmatprep.mubr.f32.mxu0 0.0
  %v370 = vand.u32 %v35, 4294901760
  %371 = vmatmul.mubr.f32.gmra.mrb[0].mxu0 %v370
  %v372 = vpop.f32.mrb[0].mxu0
  %v373 = vadd.f32 %v156, %v372
  %v374 = vpop.f32.mrb[0].mxu0
  %375 = vmatprep.mubr.f32.mxu0 0.0
  %v376 = vand.u32 %v36, 4294901760
  %377 = vmatmul.mubr.f32.gmra.mrb[0].mxu0 %v376
  %v378 = vpop.f32.mrb[0].mxu0
  %v379 = vadd.f32 %v166, %v378
  %v380 = vpop.f32.mrb[0].mxu0
  %381 = vmatprep.mubr.f32.mxu0 0.0
  %v382 = vand.u32 %v37, 4294901760
  %383 = vmatmul.mubr.f32.gmra.mrb[0].mxu0 %v382
  %v384 = vpop.f32.mrb[0].mxu0
  %v385 = vadd.f32 %v176, %v384
  %v386 = vpop.f32.mrb[0].mxu0
  %387 = vmatprep.mubr.f32.mxu0 0.0
  %v388 = vand.u32 %v38, 4294901760
  %389 = vmatmul.mubr.f32.gmra.mrb[0].mxu0 %v388
  %v390 = vpop.f32.mrb[0].mxu0
  %v391 = vadd.f32 %v186, %v390
  %v392 = vpop.f32.mrb[0].mxu0
  %393 = vmatprep.mubr.f32.mxu0 0.0
  %v394 = vand.u32 %v39, 4294901760
  %395 = vmatmul.mubr.f32.gmra.mrb[0].mxu0 %v394
  %v396 = vpop.f32.mrb[0].mxu0
  %v397 = vadd.f32 %v196, %v396
  %v398 = vpop.f32.mrb[0].mxu0
  %399 = vmatprep.mubr.f32.mxu0 0.0
  %v400 = vand.u32 %v40, 4294901760
  %401 = vmatmul.mubr.f32.gmra.mrb[0].mxu0 %v400
  %v402 = vpop.f32.mrb[0].mxu0
  %v403 = vadd.f32 %v206, %v402
  %v404 = vpop.f32.mrb[0].mxu0
  %405 = vmatprep.mubr.f32.mxu0 0.0
  %v406 = vand.u32 %v41, 4294901760
  %407 = vmatmul.mubr.f32.gmra.mrb[0].mxu0 %v406
  %v408 = vpop.f32.mrb[0].mxu0
  %v409 = vadd.f32 %v216, %v408
  %v410 = vpop.f32.mrb[0].mxu0
  %411 = vdwg.mxu0
  %412 = vmatprep.subr.mxu0 0.0
  %v413 = vand.u32 %v42, 4294901760
  %v414 = vsub.f32 %v42, %v413
  %415 = vmatpush1.msra.mxu0 %v414
  %416 = vmatprep.subr.mxu0 0.0
  %v417 = vand.u32 %v43, 4294901760
  %v418 = vsub.f32 %v43, %v417
  %419 = vmatpush1.msra.mxu0 %v418
  %420 = vmatprep.subr.mxu0 0.0
  %v421 = vand.u32 %v44, 4294901760
  %v422 = vsub.f32 %v44, %v421
  %423 = vmatpush1.msra.mxu0 %v422
  %424 = vmatprep.subr.mxu0 0.0
  %v425 = vand.u32 %v45, 4294901760
  %v426 = vsub.f32 %v45, %v425
  %427 = vmatpush1.msra.mxu0 %v426
  %428 = vmatprep.subr.mxu0 0.0
  %v429 = vand.u32 %v46, 4294901760
  %v430 = vsub.f32 %v46, %v429
  %431 = vmatpush1.msra.mxu0 %v430
  %432 = vmatprep.subr.mxu0 0.0
  %v433 = vand.u32 %v47, 4294901760
  %v434 = vsub.f32 %v47, %v433
  %435 = vmatpush1.msra.mxu0 %v434
  %436 = vmatprep.subr.mxu0 0.0
  %v437 = vand.u32 %v48, 4294901760
  %v438 = vsub.f32 %v48, %v437
  %439 = vmatpush1.msra.mxu0 %v438
  %440 = vmatprep.subr.mxu0 0.0
  %v441 = vand.u32 %v49, 4294901760
  %v442 = vsub.f32 %v49, %v441
  %443 = vmatpush1.msra.mxu0 %v442
  %444 = vmatprep.subr.mxu0 0.0
  %v445 = vand.u32 %v50, 4294901760
  %v446 = vsub.f32 %v50, %v445
  %447 = vmatpush1.msra.mxu0 %v446
  %448 = vmatprep.subr.mxu0 0.0
  %v449 = vand.u32 %v51, 4294901760
  %v450 = vsub.f32 %v51, %v449
  %451 = vmatpush1.msra.mxu0 %v450
  %452 = vmatprep.subr.mxu0 0.0
  %v453 = vand.u32 %v52, 4294901760
  %v454 = vsub.f32 %v52, %v453
  %455 = vmatpush1.msra.mxu0 %v454
  %456 = vmatprep.subr.mxu0 0.0
  %v457 = vand.u32 %v53, 4294901760
  %v458 = vsub.f32 %v53, %v457
  %459 = vmatpush1.msra.mxu0 %v458
  %460 = vmatprep.subr.mxu0 0.0
  %v461 = vand.u32 %v54, 4294901760
  %v462 = vsub.f32 %v54, %v461
  %463 = vmatpush1.msra.mxu0 %v462
  %464 = vmatprep.subr.mxu0 0.0
  %v465 = vand.u32 %v55, 4294901760
  %v466 = vsub.f32 %v55, %v465
  %467 = vmatpush1.msra.mxu0 %v466
  %468 = vmatprep.subr.mxu0 0.0
  %v469 = vand.u32 %v56, 4294901760
  %v470 = vsub.f32 %v56, %v469
  %471 = vmatpush1.msra.mxu0 %v470
  %472 = vmatprep.subr.mxu0 0.0
  %v473 = vand.u32 %v57, 4294901760
  %v474 = vsub.f32 %v57, %v473
  %475 = vmatpush1.msra.mxu0 %v474
  %476 = vmatprep.subr.mxu0 0.0
  %477 = vmatpush1.msra.mxu0 0.0
  %478 = vmatprep.subr.mxu0 0.0
  %479 = vmatpush1.msra.mxu0 0.0
  %480 = vmatprep.subr.mxu0 0.0
  %481 = vmatpush1.msra.mxu0 0.0
  %482 = vmatprep.subr.mxu0 0.0
  %483 = vmatpush1.msra.mxu0 0.0
  %484 = vmatprep.subr.mxu0 0.0
  %485 = vmatpush1.msra.mxu0 0.0
  %486 = vmatprep.subr.mxu0 0.0
  %487 = vmatpush1.msra.mxu0 0.0
  %488 = vmatprep.subr.mxu0 0.0
  %489 = vmatpush1.msra.mxu0 0.0
  %490 = vmatprep.subr.mxu0 0.0
  %491 = vmatpush1.msra.mxu0 0.0
  %492 = vmatprep.subr.mxu0 0.0
  %493 = vmatpush1.msra.mxu0 0.0
  %494 = vmatprep.subr.mxu0 0.0
  %495 = vmatpush1.msra.mxu0 0.0
  %496 = vmatprep.subr.mxu0 0.0
  %497 = vmatpush1.msra.mxu0 0.0
  %498 = vmatprep.subr.mxu0 0.0
  %499 = vmatpush1.msra.mxu0 0.0
  %500 = vmatprep.subr.mxu0 0.0
  %501 = vmatpush1.msra.mxu0 0.0
  %502 = vmatprep.subr.mxu0 0.0
  %503 = vmatpush1.msra.mxu0 0.0
  %504 = vmatprep.subr.mxu0 0.0
  %505 = vmatpush1.msra.mxu0 0.0
  %506 = vmatprep.subr.mxu0 0.0
  %507 = vmatpush1.msra.mxu0 0.0
  %508 = vmatprep.mubr.f32.mxu0 0.0
  %v509 = vand.u32 %v34, 4294901760
  %v510 = vsub.f32 %v34, %v509
  %511 = vmatmul.mubr.f32.gmra.mrb[0].mxu0 %v510
  %v512 = vpop.f32.mrb[0].mxu0
  %v513 = vadd.f32 %v367, %v512
  %v514 = vpop.f32.mrb[0].mxu0
  %515 = vmatprep.mubr.f32.mxu0 0.0
  %v516 = vand.u32 %v35, 4294901760
  %v517 = vsub.f32 %v35, %v516
  %518 = vmatmul.mubr.f32.gmra.mrb[0].mxu0 %v517
  %v519 = vpop.f32.mrb[0].mxu0
  %v520 = vadd.f32 %v373, %v519
  %v521 = vpop.f32.mrb[0].mxu0
  %522 = vmatprep.mubr.f32.mxu0 0.0
  %v523 = vand.u32 %v36, 4294901760
  %v524 = vsub.f32 %v36, %v523
  %525 = vmatmul.mubr.f32.gmra.mrb[0].mxu0 %v524
  %v526 = vpop.f32.mrb[0].mxu0
  %v527 = vadd.f32 %v379, %v526
  %v528 = vpop.f32.mrb[0].mxu0
  %529 = vmatprep.mubr.f32.mxu0 0.0
  %v530 = vand.u32 %v37, 4294901760
  %v531 = vsub.f32 %v37, %v530
  %532 = vmatmul.mubr.f32.gmra.mrb[0].mxu0 %v531
  %v533 = vpop.f32.mrb[0].mxu0
  %v534 = vadd.f32 %v385, %v533
  %v535 = vpop.f32.mrb[0].mxu0
  %536 = vmatprep.mubr.f32.mxu0 0.0
  %v537 = vand.u32 %v38, 4294901760
  %v538 = vsub.f32 %v38, %v537
  %539 = vmatmul.mubr.f32.gmra.mrb[0].mxu0 %v538
  %v540 = vpop.f32.mrb[0].mxu0
  %v541 = vadd.f32 %v391, %v540
  %v542 = vpop.f32.mrb[0].mxu0
  %543 = vmatprep.mubr.f32.mxu0 0.0
  %v544 = vand.u32 %v39, 4294901760
  %v545 = vsub.f32 %v39, %v544
  %546 = vmatmul.mubr.f32.gmra.mrb[0].mxu0 %v545
  %v547 = vpop.f32.mrb[0].mxu0
  %v548 = vadd.f32 %v397, %v547
  %v549 = vpop.f32.mrb[0].mxu0
  %550 = vmatprep.mubr.f32.mxu0 0.0
  %v551 = vand.u32 %v40, 4294901760
  %v552 = vsub.f32 %v40, %v551
  %553 = vmatmul.mubr.f32.gmra.mrb[0].mxu0 %v552
  %v554 = vpop.f32.mrb[0].mxu0
  %v555 = vadd.f32 %v403, %v554
  %v556 = vpop.f32.mrb[0].mxu0
  %557 = vmatprep.mubr.f32.mxu0 0.0
  %v558 = vand.u32 %v41, 4294901760
  %v559 = vsub.f32 %v41, %v558
  %560 = vmatmul.mubr.f32.gmra.mrb[0].mxu0 %v559
  %v561 = vpop.f32.mrb[0].mxu0
  %v562 = vadd.f32 %v409, %v561
  %v563 = vpop.f32.mrb[0].mxu0
  %564 = vdwg.mxu0
  %565 = vmatprep.subr.mxu0 0.0
  %v566 = vand.u32 %v42, 4294901760
  %567 = vmatpush1.msra.mxu0 %v566
  %568 = vmatprep.subr.mxu0 0.0
  %v569 = vand.u32 %v43, 4294901760
  %570 = vmatpush1.msra.mxu0 %v569
  %571 = vmatprep.subr.mxu0 0.0
  %v572 = vand.u32 %v44, 4294901760
  %573 = vmatpush1.msra.mxu0 %v572
  %574 = vmatprep.subr.mxu0 0.0
  %v575 = vand.u32 %v45, 4294901760
  %576 = vmatpush1.msra.mxu0 %v575
  %577 = vmatprep.subr.mxu0 0.0
  %v578 = vand.u32 %v46, 4294901760
  %579 = vmatpush1.msra.mxu0 %v578
  %580 = vmatprep.subr.mxu0 0.0
  %v581 = vand.u32 %v47, 4294901760
  %582 = vmatpush1.msra.mxu0 %v581
  %583 = vmatprep.subr.mxu0 0.0
  %v584 = vand.u32 %v48, 4294901760
  %585 = vmatpush1.msra.mxu0 %v584
  %586 = vmatprep.subr.mxu0 0.0
  %v587 = vand.u32 %v49, 4294901760
  %588 = vmatpush1.msra.mxu0 %v587
  %589 = vmatprep.subr.mxu0 0.0
  %v590 = vand.u32 %v50, 4294901760
  %591 = vmatpush1.msra.mxu0 %v590
  %592 = vmatprep.subr.mxu0 0.0
  %v593 = vand.u32 %v51, 4294901760
  %594 = vmatpush1.msra.mxu0 %v593
  %595 = vmatprep.subr.mxu0 0.0
  %v596 = vand.u32 %v52, 4294901760
  %597 = vmatpush1.msra.mxu0 %v596
  %598 = vmatprep.subr.mxu0 0.0
  %v599 = vand.u32 %v53, 4294901760
  %600 = vmatpush1.msra.mxu0 %v599
  %601 = vmatprep.subr.mxu0 0.0
  %v602 = vand.u32 %v54, 4294901760
  %603 = vmatpush1.msra.mxu0 %v602
  %604 = vmatprep.subr.mxu0 0.0
  %v605 = vand.u32 %v55, 4294901760
  %606 = vmatpush1.msra.mxu0 %v605
  %607 = vmatprep.subr.mxu0 0.0
  %v608 = vand.u32 %v56, 4294901760
  %609 = vmatpush1.msra.mxu0 %v608
  %610 = vmatprep.subr.mxu0 0.0
  %v611 = vand.u32 %v57, 4294901760
  %612 = vmatpush1.msra.mxu0 %v611
  %613 = vmatprep.subr.mxu0 0.0
  %614 = vmatpush1.msra.mxu0 0.0
  %615 = vmatprep.subr.mxu0 0.0
  %616 = vmatpush1.msra.mxu0 0.0
  %617 = vmatprep.subr.mxu0 0.0
  %618 = vmatpush1.msra.mxu0 0.0
  %619 = vmatprep.subr.mxu0 0.0
  %620 = vmatpush1.msra.mxu0 0.0
  %621 = vmatprep.subr.mxu0 0.0
  %622 = vmatpush1.msra.mxu0 0.0
  %623 = vmatprep.subr.mxu0 0.0
  %624 = vmatpush1.msra.mxu0 0.0
  %625 = vmatprep.subr.mxu0 0.0
  %626 = vmatpush1.msra.mxu0 0.0
  %627 = vmatprep.subr.mxu0 0.0
  %628 = vmatpush1.msra.mxu0 0.0
  %629 = vmatprep.subr.mxu0 0.0
  %630 = vmatpush1.msra.mxu0 0.0
  %631 = vmatprep.subr.mxu0 0.0
  %632 = vmatpush1.msra.mxu0 0.0
  %633 = vmatprep.subr.mxu0 0.0
  %634 = vmatpush1.msra.mxu0 0.0
  %635 = vmatprep.subr.mxu0 0.0
  %636 = vmatpush1.msra.mxu0 0.0
  %637 = vmatprep.subr.mxu0 0.0
  %638 = vmatpush1.msra.mxu0 0.0
  %639 = vmatprep.subr.mxu0 0.0
  %640 = vmatpush1.msra.mxu0 0.0
  %641 = vmatprep.subr.mxu0 0.0
  %642 = vmatpush1.msra.mxu0 0.0
  %643 = vmatprep.subr.mxu0 0.0
  %644 = vmatpush1.msra.mxu0 0.0
  %645 = vmatprep.mubr.f32.mxu0 0.0
  %v646 = vand.u32 %v34, 4294901760
  %v647 = vsub.f32 %v34, %v646
  %v648 = vand.u32 %v647, 4294901760
  %649 = vmatmul.mubr.f32.gmra.mrb[0].mxu0 %v648
  %v650 = vpop.f32.mrb[0].mxu0
  %v651 = vadd.f32 %v513, %v650
  %v652 = vpop.f32.mrb[0].mxu0
  %653 = vmatprep.mubr.f32.mxu0 0.0
  %v654 = vand.u32 %v35, 4294901760
  %v655 = vsub.f32 %v35, %v654
  %v656 = vand.u32 %v655, 4294901760
  %657 = vmatmul.mubr.f32.gmra.mrb[0].mxu0 %v656
  %v658 = vpop.f32.mrb[0].mxu0
  %v659 = vadd.f32 %v520, %v658
  %v660 = vpop.f32.mrb[0].mxu0
  %661 = vmatprep.mubr.f32.mxu0 0.0
  %v662 = vand.u32 %v36, 4294901760
  %v663 = vsub.f32 %v36, %v662
  %v664 = vand.u32 %v663, 4294901760
  %665 = vmatmul.mubr.f32.gmra.mrb[0].mxu0 %v664
  %v666 = vpop.f32.mrb[0].mxu0
  %v667 = vadd.f32 %v527, %v666
  %v668 = vpop.f32.mrb[0].mxu0
  %669 = vmatprep.mubr.f32.mxu0 0.0
  %v670 = vand.u32 %v37, 4294901760
  %v671 = vsub.f32 %v37, %v670
  %v672 = vand.u32 %v671, 4294901760
  %673 = vmatmul.mubr.f32.gmra.mrb[0].mxu0 %v672
  %v674 = vpop.f32.mrb[0].mxu0
  %v675 = vadd.f32 %v534, %v674
  %v676 = vpop.f32.mrb[0].mxu0
  %677 = vmatprep.mubr.f32.mxu0 0.0
  %v678 = vand.u32 %v38, 4294901760
  %v679 = vsub.f32 %v38, %v678
  %v680 = vand.u32 %v679, 4294901760
  %681 = vmatmul.mubr.f32.gmra.mrb[0].mxu0 %v680
  %v682 = vpop.f32.mrb[0].mxu0
  %v683 = vadd.f32 %v541, %v682
  %v684 = vpop.f32.mrb[0].mxu0
  %685 = vmatprep.mubr.f32.mxu0 0.0
  %v686 = vand.u32 %v39, 4294901760
  %v687 = vsub.f32 %v39, %v686
  %v688 = vand.u32 %v687, 4294901760
  %689 = vmatmul.mubr.f32.gmra.mrb[0].mxu0 %v688
  %v690 = vpop.f32.mrb[0].mxu0
  %v691 = vadd.f32 %v548, %v690
  %v692 = vpop.f32.mrb[0].mxu0
  %693 = vmatprep.mubr.f32.mxu0 0.0
  %v694 = vand.u32 %v40, 4294901760
  %v695 = vsub.f32 %v40, %v694
  %v696 = vand.u32 %v695, 4294901760
  %697 = vmatmul.mubr.f32.gmra.mrb[0].mxu0 %v696
  %v698 = vpop.f32.mrb[0].mxu0
  %v699 = vadd.f32 %v555, %v698
  %v700 = vpop.f32.mrb[0].mxu0
  %701 = vmatprep.mubr.f32.mxu0 0.0
  %v702 = vand.u32 %v41, 4294901760
  %v703 = vsub.f32 %v41, %v702
  %v704 = vand.u32 %v703, 4294901760
  %705 = vmatmul.mubr.f32.gmra.mrb[0].mxu0 %v704
  %v706 = vpop.f32.mrb[0].mxu0
  %v707 = vadd.f32 %v562, %v706
  %v708 = vpop.f32.mrb[0].mxu0
  %709 = vdwg.mxu0
  %710 = vmatprep.subr.mxu0 0.0
  %v711 = vand.u32 %v42, 4294901760
  %v712 = vsub.f32 %v42, %v711
  %v713 = vand.u32 %v712, 4294901760
  %714 = vmatpush1.msra.mxu0 %v713
  %715 = vmatprep.subr.mxu0 0.0
  %v716 = vand.u32 %v43, 4294901760
  %v717 = vsub.f32 %v43, %v716
  %v718 = vand.u32 %v717, 4294901760
  %719 = vmatpush1.msra.mxu0 %v718
  %720 = vmatprep.subr.mxu0 0.0
  %v721 = vand.u32 %v44, 4294901760
  %v722 = vsub.f32 %v44, %v721
  %v723 = vand.u32 %v722, 4294901760
  %724 = vmatpush1.msra.mxu0 %v723
  %725 = vmatprep.subr.mxu0 0.0
  %v726 = vand.u32 %v45, 4294901760
  %v727 = vsub.f32 %v45, %v726
  %v728 = vand.u32 %v727, 4294901760
  %729 = vmatpush1.msra.mxu0 %v728
  %730 = vmatprep.subr.mxu0 0.0
  %v731 = vand.u32 %v46, 4294901760
  %v732 = vsub.f32 %v46, %v731
  %v733 = vand.u32 %v732, 4294901760
  %734 = vmatpush1.msra.mxu0 %v733
  %735 = vmatprep.subr.mxu0 0.0
  %v736 = vand.u32 %v47, 4294901760
  %v737 = vsub.f32 %v47, %v736
  %v738 = vand.u32 %v737, 4294901760
  %739 = vmatpush1.msra.mxu0 %v738
  %740 = vmatprep.subr.mxu0 0.0
  %v741 = vand.u32 %v48, 4294901760
  %v742 = vsub.f32 %v48, %v741
  %v743 = vand.u32 %v742, 4294901760
  %744 = vmatpush1.msra.mxu0 %v743
  %745 = vmatprep.subr.mxu0 0.0
  %v746 = vand.u32 %v49, 4294901760
  %v747 = vsub.f32 %v49, %v746
  %v748 = vand.u32 %v747, 4294901760
  %749 = vmatpush1.msra.mxu0 %v748
  %750 = vmatprep.subr.mxu0 0.0
  %v751 = vand.u32 %v50, 4294901760
  %v752 = vsub.f32 %v50, %v751
  %v753 = vand.u32 %v752, 4294901760
  %754 = vmatpush1.msra.mxu0 %v753
  %755 = vmatprep.subr.mxu0 0.0
  %v756 = vand.u32 %v51, 4294901760
  %v757 = vsub.f32 %v51, %v756
  %v758 = vand.u32 %v757, 4294901760
  %759 = vmatpush1.msra.mxu0 %v758
  %760 = vmatprep.subr.mxu0 0.0
  %v761 = vand.u32 %v52, 4294901760
  %v762 = vsub.f32 %v52, %v761
  %v763 = vand.u32 %v762, 4294901760
  %764 = vmatpush1.msra.mxu0 %v763
  %765 = vmatprep.subr.mxu0 0.0
  %v766 = vand.u32 %v53, 4294901760
  %v767 = vsub.f32 %v53, %v766
  %v768 = vand.u32 %v767, 4294901760
  %769 = vmatpush1.msra.mxu0 %v768
  %770 = vmatprep.subr.mxu0 0.0
  %v771 = vand.u32 %v54, 4294901760
  %v772 = vsub.f32 %v54, %v771
  %v773 = vand.u32 %v772, 4294901760
  %774 = vmatpush1.msra.mxu0 %v773
  %775 = vmatprep.subr.mxu0 0.0
  %v776 = vand.u32 %v55, 4294901760
  %v777 = vsub.f32 %v55, %v776
  %v778 = vand.u32 %v777, 4294901760
  %779 = vmatpush1.msra.mxu0 %v778
  %780 = vmatprep.subr.mxu0 0.0
  %v781 = vand.u32 %v56, 4294901760
  %v782 = vsub.f32 %v56, %v781
  %v783 = vand.u32 %v782, 4294901760
  %784 = vmatpush1.msra.mxu0 %v783
  %785 = vmatprep.subr.mxu0 0.0
  %v786 = vand.u32 %v57, 4294901760
  %v787 = vsub.f32 %v57, %v786
  %v788 = vand.u32 %v787, 4294901760
  %789 = vmatpush1.msra.mxu0 %v788
  %790 = vmatprep.subr.mxu0 0.0
  %791 = vmatpush1.msra.mxu0 0.0
  %792 = vmatprep.subr.mxu0 0.0
  %793 = vmatpush1.msra.mxu0 0.0
  %794 = vmatprep.subr.mxu0 0.0
  %795 = vmatpush1.msra.mxu0 0.0
  %796 = vmatprep.subr.mxu0 0.0
  %797 = vmatpush1.msra.mxu0 0.0
  %798 = vmatprep.subr.mxu0 0.0
  %799 = vmatpush1.msra.mxu0 0.0
  %800 = vmatprep.subr.mxu0 0.0
  %801 = vmatpush1.msra.mxu0 0.0
  %802 = vmatprep.subr.mxu0 0.0
  %803 = vmatpush1.msra.mxu0 0.0
  %804 = vmatprep.subr.mxu0 0.0
  %805 = vmatpush1.msra.mxu0 0.0
  %806 = vmatprep.subr.mxu0 0.0
  %807 = vmatpush1.msra.mxu0 0.0
  %808 = vmatprep.subr.mxu0 0.0
  %809 = vmatpush1.msra.mxu0 0.0
  %810 = vmatprep.subr.mxu0 0.0
  %811 = vmatpush1.msra.mxu0 0.0
  %812 = vmatprep.subr.mxu0 0.0
  %813 = vmatpush1.msra.mxu0 0.0
  %814 = vmatprep.subr.mxu0 0.0
  %815 = vmatpush1.msra.mxu0 0.0
  %816 = vmatprep.subr.mxu0 0.0
  %817 = vmatpush1.msra.mxu0 0.0
  %818 = vmatprep.subr.mxu0 0.0
  %819 = vmatpush1.msra.mxu0 0.0
  %820 = vmatprep.subr.mxu0 0.0
  %821 = vmatpush1.msra.mxu0 0.0
  %822 = vmatprep.mubr.f32.mxu0 0.0
  %v823 = vand.u32 %v34, 4294901760
  %824 = vmatmul.mubr.f32.gmra.mrb[0].mxu0 %v823
  %v825 = vpop.f32.mrb[0].mxu0
  %v826 = vadd.f32 %v651, %v825
  %v827 = vpop.f32.mrb[0].mxu0
  %828 = vmatprep.mubr.f32.mxu0 0.0
  %v829 = vand.u32 %v35, 4294901760
  %830 = vmatmul.mubr.f32.gmra.mrb[0].mxu0 %v829
  %v831 = vpop.f32.mrb[0].mxu0
  %v832 = vadd.f32 %v659, %v831
  %v833 = vpop.f32.mrb[0].mxu0
  %834 = vmatprep.mubr.f32.mxu0 0.0
  %v835 = vand.u32 %v36, 4294901760
  %836 = vmatmul.mubr.f32.gmra.mrb[0].mxu0 %v835
  %v837 = vpop.f32.mrb[0].mxu0
  %v838 = vadd.f32 %v667, %v837
  %v839 = vpop.f32.mrb[0].mxu0
  %840 = vmatprep.mubr.f32.mxu0 0.0
  %v841 = vand.u32 %v37, 4294901760
  %842 = vmatmul.mubr.f32.gmra.mrb[0].mxu0 %v841
  %v843 = vpop.f32.mrb[0].mxu0
  %v844 = vadd.f32 %v675, %v843
  %v845 = vpop.f32.mrb[0].mxu0
  %846 = vmatprep.mubr.f32.mxu0 0.0
  %v847 = vand.u32 %v38, 4294901760
  %848 = vmatmul.mubr.f32.gmra.mrb[0].mxu0 %v847
  %v849 = vpop.f32.mrb[0].mxu0
  %v850 = vadd.f32 %v683, %v849
  %v851 = vpop.f32.mrb[0].mxu0
  %852 = vmatprep.mubr.f32.mxu0 0.0
  %v853 = vand.u32 %v39, 4294901760
  %854 = vmatmul.mubr.f32.gmra.mrb[0].mxu0 %v853
  %v855 = vpop.f32.mrb[0].mxu0
  %v856 = vadd.f32 %v691, %v855
  %v857 = vpop.f32.mrb[0].mxu0
  %858 = vmatprep.mubr.f32.mxu0 0.0
  %v859 = vand.u32 %v40, 4294901760
  %860 = vmatmul.mubr.f32.gmra.mrb[0].mxu0 %v859
  %v861 = vpop.f32.mrb[0].mxu0
  %v862 = vadd.f32 %v699, %v861
  %v863 = vpop.f32.mrb[0].mxu0
  %864 = vmatprep.mubr.f32.mxu0 0.0
  %v865 = vand.u32 %v41, 4294901760
  %866 = vmatmul.mubr.f32.gmra.mrb[0].mxu0 %v865
  %v867 = vpop.f32.mrb[0].mxu0
  %v868 = vadd.f32 %v707, %v867
  %v869 = vpop.f32.mrb[0].mxu0
  %870 = vdwg.mxu0
  %871 = vmatprep.subr.mxu0 0.0
  %v872 = vand.u32 %v42, 4294901760
  %873 = vmatpush1.msra.mxu0 %v872
  %874 = vmatprep.subr.mxu0 0.0
  %v875 = vand.u32 %v43, 4294901760
  %876 = vmatpush1.msra.mxu0 %v875
  %877 = vmatprep.subr.mxu0 0.0
  %v878 = vand.u32 %v44, 4294901760
  %879 = vmatpush1.msra.mxu0 %v878
  %880 = vmatprep.subr.mxu0 0.0
  %v881 = vand.u32 %v45, 4294901760
  %882 = vmatpush1.msra.mxu0 %v881
  %883 = vmatprep.subr.mxu0 0.0
  %v884 = vand.u32 %v46, 4294901760
  %885 = vmatpush1.msra.mxu0 %v884
  %886 = vmatprep.subr.mxu0 0.0
  %v887 = vand.u32 %v47, 4294901760
  %888 = vmatpush1.msra.mxu0 %v887
  %889 = vmatprep.subr.mxu0 0.0
  %v890 = vand.u32 %v48, 4294901760
  %891 = vmatpush1.msra.mxu0 %v890
  %892 = vmatprep.subr.mxu0 0.0
  %v893 = vand.u32 %v49, 4294901760
  %894 = vmatpush1.msra.mxu0 %v893
  %895 = vmatprep.subr.mxu0 0.0
  %v896 = vand.u32 %v50, 4294901760
  %897 = vmatpush1.msra.mxu0 %v896
  %898 = vmatprep.subr.mxu0 0.0
  %v899 = vand.u32 %v51, 4294901760
  %900 = vmatpush1.msra.mxu0 %v899
  %901 = vmatprep.subr.mxu0 0.0
  %v902 = vand.u32 %v52, 4294901760
  %903 = vmatpush1.msra.mxu0 %v902
  %904 = vmatprep.subr.mxu0 0.0
  %v905 = vand.u32 %v53, 4294901760
  %906 = vmatpush1.msra.mxu0 %v905
  %907 = vmatprep.subr.mxu0 0.0
  %v908 = vand.u32 %v54, 4294901760
  %909 = vmatpush1.msra.mxu0 %v908
  %910 = vmatprep.subr.mxu0 0.0
  %v911 = vand.u32 %v55, 4294901760
  %912 = vmatpush1.msra.mxu0 %v911
  %913 = vmatprep.subr.mxu0 0.0
  %v914 = vand.u32 %v56, 4294901760
  %915 = vmatpush1.msra.mxu0 %v914
  %916 = vmatprep.subr.mxu0 0.0
  %v917 = vand.u32 %v57, 4294901760
  %918 = vmatpush1.msra.mxu0 %v917
  %919 = vmatprep.subr.mxu0 0.0
  %920 = vmatpush1.msra.mxu0 0.0
  %921 = vmatprep.subr.mxu0 0.0
  %922 = vmatpush1.msra.mxu0 0.0
  %923 = vmatprep.subr.mxu0 0.0
  %924 = vmatpush1.msra.mxu0 0.0
  %925 = vmatprep.subr.mxu0 0.0
  %926 = vmatpush1.msra.mxu0 0.0
  %927 = vmatprep.subr.mxu0 0.0
  %928 = vmatpush1.msra.mxu0 0.0
  %929 = vmatprep.subr.mxu0 0.0
  %930 = vmatpush1.msra.mxu0 0.0
  %931 = vmatprep.subr.mxu0 0.0
  %932 = vmatpush1.msra.mxu0 0.0
  %933 = vmatprep.subr.mxu0 0.0
  %934 = vmatpush1.msra.mxu0 0.0
  %935 = vmatprep.subr.mxu0 0.0
  %936 = vmatpush1.msra.mxu0 0.0
  %937 = vmatprep.subr.mxu0 0.0
  %938 = vmatpush1.msra.mxu0 0.0
  %939 = vmatprep.subr.mxu0 0.0
  %940 = vmatpush1.msra.mxu0 0.0
  %941 = vmatprep.subr.mxu0 0.0
  %942 = vmatpush1.msra.mxu0 0.0
  %943 = vmatprep.subr.mxu0 0.0
  %944 = vmatpush1.msra.mxu0 0.0
  %945 = vmatprep.subr.mxu0 0.0
  %946 = vmatpush1.msra.mxu0 0.0
  %947 = vmatprep.subr.mxu0 0.0
  %948 = vmatpush1.msra.mxu0 0.0
  %949 = vmatprep.subr.mxu0 0.0
  %950 = vmatpush1.msra.mxu0 0.0
  %951 = vmatprep.mubr.f32.mxu0 0.0
  %v952 = vand.u32 %v34, 4294901760
  %953 = vmatmul.mubr.f32.gmra.mrb[0].mxu0 %v952
  %v954 = vpop.f32.mrb[0].mxu0
  %v955 = vadd.f32 %v826, %v954
  %v956 = vpop.f32.mrb[0].mxu0
  %957 = vmatprep.mubr.f32.mxu0 0.0
  %v958 = vand.u32 %v35, 4294901760
  %959 = vmatmul.mubr.f32.gmra.mrb[0].mxu0 %v958
  %v960 = vpop.f32.mrb[0].mxu0
  %v961 = vadd.f32 %v832, %v960
  %v962 = vpop.f32.mrb[0].mxu0
  %963 = vmatprep.mubr.f32.mxu0 0.0
  %v964 = vand.u32 %v36, 4294901760
  %965 = vmatmul.mubr.f32.gmra.mrb[0].mxu0 %v964
  %v966 = vpop.f32.mrb[0].mxu0
  %v967 = vadd.f32 %v838, %v966
  %v968 = vpop.f32.mrb[0].mxu0
  %969 = vmatprep.mubr.f32.mxu0 0.0
  %v970 = vand.u32 %v37, 4294901760
  %971 = vmatmul.mubr.f32.gmra.mrb[0].mxu0 %v970
  %v972 = vpop.f32.mrb[0].mxu0
  %v973 = vadd.f32 %v844, %v972
  %v974 = vpop.f32.mrb[0].mxu0
  %975 = vmatprep.mubr.f32.mxu0 0.0
  %v976 = vand.u32 %v38, 4294901760
  %977 = vmatmul.mubr.f32.gmra.mrb[0].mxu0 %v976
  %v978 = vpop.f32.mrb[0].mxu0
  %v979 = vadd.f32 %v850, %v978
  %v980 = vpop.f32.mrb[0].mxu0
  %981 = vmatprep.mubr.f32.mxu0 0.0
  %v982 = vand.u32 %v39, 4294901760
  %983 = vmatmul.mubr.f32.gmra.mrb[0].mxu0 %v982
  %v984 = vpop.f32.mrb[0].mxu0
  %v985 = vadd.f32 %v856, %v984
  %v986 = vpop.f32.mrb[0].mxu0
  %987 = vmatprep.mubr.f32.mxu0 0.0
  %v988 = vand.u32 %v40, 4294901760
  %989 = vmatmul.mubr.f32.gmra.mrb[0].mxu0 %v988
  %v990 = vpop.f32.mrb[0].mxu0
  %v991 = vadd.f32 %v862, %v990
  %v992 = vpop.f32.mrb[0].mxu0
  %993 = vmatprep.mubr.f32.mxu0 0.0
  %v994 = vand.u32 %v41, 4294901760
  %995 = vmatmul.mubr.f32.gmra.mrb[0].mxu0 %v994
  %v996 = vpop.f32.mrb[0].mxu0
  %v997 = vadd.f32 %v868, %v996
  %v998 = vpop.f32.mrb[0].mxu0
  %999 = vdwg.mxu0
  %v1000 = vadd.f32 %v26, %v955
  %v1001 = vadd.f32 %v27, %v961
  %v1002 = vadd.f32 %v28, %v967
  %v1003 = vadd.f32 %v29, %v973
  %v1004 = vadd.f32 %v30, %v979
  %v1005 = vadd.f32 %v31, %v985
  %v1006 = vadd.f32 %v32, %v991
  %v1007 = vadd.f32 %v33, %v997
  %1008 = vst [vmem:[#allocation2] sm:$0xff] %v1000
  %1009 = vst [vmem:[#allocation2 + $0x8] sm:$0xff] %v1001
  %1010 = vst [vmem:[#allocation2 + $0x10] sm:$0xff] %v1002
  %1011 = vst [vmem:[#allocation2 + $0x18] sm:$0xff] %v1003
  %1012 = vst [vmem:[#allocation2 + $0x20] sm:$0xff] %v1004
  %1013 = vst [vmem:[#allocation2 + $0x28] sm:$0xff] %v1005
  %1014 = vst [vmem:[#allocation2 + $0x30] sm:$0xff] %v1006
  %1015 = vst [vmem:[#allocation2 + $0x38] sm:$0xff] %v1007
  // Predicated region
  $region18: #{_lambda_.10} parent=0 // pred_check
    %p1016 = pneg %p14
  $region19: #{_lambda_.10} parent=0 // pred_check_branch
    %1018 = sbr.rel (%p1016) target = $region21
  $region20: #{_lambda_.10} parent=0 // pred_region
    %v1019 = vld [vmem:[#allocation2] sm:$0xff]
    %v1020 = vld [vmem:[#allocation2 + $0x8] sm:$0xff]
    %v1021 = vld [vmem:[#allocation2 + $0x10] sm:$0xff]
    %v1022 = vld [vmem:[#allocation2 + $0x18] sm:$0xff]
    %v1023 = vld [vmem:[#allocation2 + $0x20] sm:$0xff]
    %v1024 = vld [vmem:[#allocation2 + $0x28] sm:$0xff]
    %v1025 = vld [vmem:[#allocation2 + $0x30] sm:$0xff]
    %v1026 = vld [vmem:[#allocation2 + $0x38] sm:$0xff]
    %v1027 = vld [vmem:[%s2] sm:$0x1]
    %v1029 = vlaneseq
    %v1030 = vshrl.u32 %v1029, 7
    %v1031 = vsub.s32 0, %v1030
    %v1032 = vrot.slane %v1027, %v1031
    %v1034 = vadd.f32 %v1019, %v1032
    %v1035 = vadd.f32 %v1020, %v1032
    %v1036 = vadd.f32 %v1021, %v1032
    %v1037 = vadd.f32 %v1022, %v1032
    %v1038 = vadd.f32 %v1023, %v1032
    %v1039 = vadd.f32 %v1024, %v1032
    %v1040 = vadd.f32 %v1025, %v1032
    %v1041 = vadd.f32 %v1026, %v1032
    %1042 = vst [vmem:[%s3] sm:$0xff] %v1034
    %1043 = vst [vmem:[%s3 + $0x8] sm:$0xff] %v1035
    %1044 = vst [vmem:[%s3 + $0x10] sm:$0xff] %v1036
    %1045 = vst [vmem:[%s3 + $0x18] sm:$0xff] %v1037
    %1046 = vst [vmem:[%s3 + $0x20] sm:$0xff] %v1038
    %1047 = vst [vmem:[%s3 + $0x28] sm:$0xff] %v1039
    %1048 = vst [vmem:[%s3 + $0x30] sm:$0xff] %v1040
    %1049 = vst [vmem:[%s3 + $0x38] sm:$0xff] %v1041
  $region21: #{_lambda_.10} parent=0 // pred_fallthru
    _
  // Predicated region
  $region22: #{_lambda_.10} parent=0 // pred_check
    _
  $region23: #{_lambda_.10} parent=0 // pred_check_branch
    %1051 = sbr.rel (0) target = $region25
  $region24: #{_lambda_.10} parent=0 // pred_region
    _
  $region25: #{_lambda_.10} parent=0 // pred_fallthru
    _
  // Predicated region
  $region26: #{_lambda_.10} parent=0 // pred_check
    _
  $region27: #{_lambda_.10} parent=0 // pred_check_branch
    %1053 = sbr.rel (0) target = $region29
  $region28: #{_lambda_.10} parent=0 // pred_region
    _
  $region29: #{_lambda_.10} parent=0 // pred_fallthru
    _

// kernel: _lambda_.11
$region0: #{_lambda_.11}
  #allocation0 [shape = 'u32[]', space=smem, size = 0x4, offset = 0x4, fixed_abs, tag = 'smem constant byte address 0x4 - core index']
  #allocation1 [shape = 'u32[144,128]{1,0:T(1,128)}', space=vmem, size = 0x12000, scoped, tag = 'internal scratch']
  %s0 = inlined_call_operand.vmem [shape: f32[64,32], index: 0, kind: input, shape index: {}]
  %s1 = inlined_call_operand.vmem [shape: f32[64,32], index: 1, kind: input, shape index: {}]
  %s2 = inlined_call_operand.vmem [shape: f32[1,32], index: 2, kind: input, shape index: {}]
  %s3 = inlined_call_operand.vmem [shape: f32[1,32], index: 3, kind: input, shape index: {}]
  %s4 = inlined_call_operand.vmem [shape: f32[64,32], index: 4, kind: output, shape index: {}]
  %s5 = sld [smem:[#allocation0]]
  $region26: #{_lambda_.11} parent=0
    _
  %s7 = ssub.s32 1, %s5
  %s8 = scalar_select 0, %s7, %s5
  // Predicated region
  $region2: #{_lambda_.11} parent=0 // pred_check
    _
  $region3: #{_lambda_.11} parent=0 // pred_check_branch
    %10 = sbr.rel (0) target = $region5
  $region4: #{_lambda_.11} parent=0 // pred_region
    _
  $region5: #{_lambda_.11} parent=0 // pred_fallthru
    _
  // Predicated region
  $region6: #{_lambda_.11} parent=0 // pred_check
    _
  $region7: #{_lambda_.11} parent=0 // pred_check_branch
    %12 = sbr.rel (0) target = $region9
  $region8: #{_lambda_.11} parent=0 // pred_region
    _
  $region9: #{_lambda_.11} parent=0 // pred_fallthru
    _
  // Predicated region
  $region10: #{_lambda_.11} parent=0 // pred_check
    _
  $region11: #{_lambda_.11} parent=0 // pred_check_branch
    %14 = sbr.rel (0) target = $region13
  $region12: #{_lambda_.11} parent=0 // pred_region
    _
  $region13: #{_lambda_.11} parent=0 // pred_fallthru
    _
  // Predicated region
  $region14: #{_lambda_.11} parent=0 // pred_check
    _
  $region15: #{_lambda_.11} parent=0 // pred_check_branch
    %16 = sbr.rel (0) target = $region17
  $region16: #{_lambda_.11} parent=0 // pred_region
    _
  $region17: #{_lambda_.11} parent=0 // pred_fallthru
    _
  %v17 = vld [vmem:[%s0] sm:$0xff]
  %v18 = vld [vmem:[%s0 + $0x8] sm:$0xff]
  %v19 = vld [vmem:[%s0 + $0x10] sm:$0xff]
  %v20 = vld [vmem:[%s0 + $0x18] sm:$0xff]
  %v21 = vld [vmem:[%s0 + $0x20] sm:$0xff]
  %v22 = vld [vmem:[%s0 + $0x28] sm:$0xff]
  %v23 = vld [vmem:[%s0 + $0x30] sm:$0xff]
  %v24 = vld [vmem:[%s0 + $0x38] sm:$0xff]
  %v25 = vld [vmem:[%s1] sm:$0xff]
  %v26 = vld [vmem:[%s1 + $0x8] sm:$0xff]
  %v27 = vld [vmem:[%s1 + $0x10] sm:$0xff]
  %v28 = vld [vmem:[%s1 + $0x18] sm:$0xff]
  %v29 = vld [vmem:[%s1 + $0x20] sm:$0xff]
  %v30 = vld [vmem:[%s1 + $0x28] sm:$0xff]
  %v31 = vld [vmem:[%s1 + $0x30] sm:$0xff]
  %v32 = vld [vmem:[%s1 + $0x38] sm:$0xff]
  %v33 = vadd.f32 %v17, %v25
  %v34 = vadd.f32 %v18, %v26
  %v35 = vadd.f32 %v19, %v27
  %v36 = vadd.f32 %v20, %v28
  %v37 = vadd.f32 %v21, %v29
  %v38 = vadd.f32 %v22, %v30
  %v39 = vadd.f32 %v23, %v31
  %v40 = vadd.f32 %v24, %v32
  %vm41 = vcmask 261120
  %v42 = vsel %vm41, %v33, 0.0
  %43 = vadd.xlane.f32.xlu0 %v42
  %v44 = vpop.xlane.xlu0 %43
  %v45 = vsel %vm41, %v34, 0.0
  %46 = vadd.xlane.f32.xlu0 %v45
  %v47 = vpop.xlane.xlu0 %46
  %v48 = vsel %vm41, %v35, 0.0
  %49 = vadd.xlane.f32.xlu0 %v48
  %v50 = vpop.xlane.xlu0 %49
  %v51 = vsel %vm41, %v36, 0.0
  %52 = vadd.xlane.f32.xlu0 %v51
  %v53 = vpop.xlane.xlu0 %52
  %v54 = vsel %vm41, %v37, 0.0
  %55 = vadd.xlane.f32.xlu0 %v54
  %v56 = vpop.xlane.xlu0 %55
  %v57 = vsel %vm41, %v38, 0.0
  %58 = vadd.xlane.f32.xlu0 %v57
  %v59 = vpop.xlane.xlu0 %58
  %v60 = vsel %vm41, %v39, 0.0
  %61 = vadd.xlane.f32.xlu0 %v60
  %v62 = vpop.xlane.xlu0 %61
  %v63 = vsel %vm41, %v40, 0.0
  %64 = vadd.xlane.f32.xlu0 %v63
  %v65 = vpop.xlane.xlu0 %64
  %v66 = vrcp.pop 32.0
  %v67 = vmul.f32 %v44, %v66
  %v68 = vmul.f32 %v47, %v66
  %v69 = vmul.f32 %v50, %v66
  %v70 = vmul.f32 %v53, %v66
  %v71 = vmul.f32 %v56, %v66
  %v72 = vmul.f32 %v59, %v66
  %v73 = vmul.f32 %v62, %v66
  %v74 = vmul.f32 %v65, %v66
  %v75 = vsub.f32 %v33, %v67
  %v76 = vsub.f32 %v34, %v68
  %v77 = vsub.f32 %v35, %v69
  %v78 = vsub.f32 %v36, %v70
  %v79 = vsub.f32 %v37, %v71
  %v80 = vsub.f32 %v38, %v72
  %v81 = vsub.f32 %v39, %v73
  %v82 = vsub.f32 %v40, %v74
  %v83 = vmul.f32 %v75, %v75
  %v84 = vmul.f32 %v76, %v76
  %v85 = vmul.f32 %v77, %v77
  %v86 = vmul.f32 %v78, %v78
  %v87 = vmul.f32 %v79, %v79
  %v88 = vmul.f32 %v80, %v80
  %v89 = vmul.f32 %v81, %v81
  %v90 = vmul.f32 %v82, %v82
  %v91 = vsel %vm41, %v83, 0.0
  %92 = vadd.xlane.f32.xlu0 %v91
  %v93 = vpop.xlane.xlu0 %92
  %v94 = vsel %vm41, %v84, 0.0
  %95 = vadd.xlane.f32.xlu0 %v94
  %v96 = vpop.xlane.xlu0 %95
  %v97 = vsel %vm41, %v85, 0.0
  %98 = vadd.xlane.f32.xlu0 %v97
  %v99 = vpop.xlane.xlu0 %98
  %v100 = vsel %vm41, %v86, 0.0
  %101 = vadd.xlane.f32.xlu0 %v100
  %v102 = vpop.xlane.xlu0 %101
  %v103 = vsel %vm41, %v87, 0.0
  %104 = vadd.xlane.f32.xlu0 %v103
  %v105 = vpop.xlane.xlu0 %104
  %v106 = vsel %vm41, %v88, 0.0
  %107 = vadd.xlane.f32.xlu0 %v106
  %v108 = vpop.xlane.xlu0 %107
  %v109 = vsel %vm41, %v89, 0.0
  %110 = vadd.xlane.f32.xlu0 %v109
  %v111 = vpop.xlane.xlu0 %110
  %v112 = vsel %vm41, %v90, 0.0
  %113 = vadd.xlane.f32.xlu0 %v112
  %v114 = vpop.xlane.xlu0 %113
  %v115 = vmul.f32 %v93, %v66
  %v116 = vmul.f32 %v96, %v66
  %v117 = vmul.f32 %v99, %v66
  %v118 = vmul.f32 %v102, %v66
  %v119 = vmul.f32 %v105, %v66
  %v120 = vmul.f32 %v108, %v66
  %v121 = vmul.f32 %v111, %v66
  %v122 = vmul.f32 %v114, %v66
  %v123 = vadd.f32 %v115, 1e-05
  %v124 = vadd.f32 %v116, 1e-05
  %v125 = vadd.f32 %v117, 1e-05
  %v126 = vadd.f32 %v118, 1e-05
  %v127 = vadd.f32 %v119, 1e-05
  %v128 = vadd.f32 %v120, 1e-05
  %v129 = vadd.f32 %v121, 1e-05
  %v130 = vadd.f32 %v122, 1e-05
  %v131 = vrsqrt.pop %v123
  %v132 = vrsqrt.pop %v124
  %v133 = vrsqrt.pop %v125
  %v134 = vrsqrt.pop %v126
  %v135 = vrsqrt.pop %v127
  %v136 = vrsqrt.pop %v128
  %v137 = vrsqrt.pop %v129
  %v138 = vrsqrt.pop %v130
  %v139 = vmul.f32 %v75, %v131
  %v140 = vmul.f32 %v76, %v132
  %v141 = vmul.f32 %v77, %v133
  %v142 = vmul.f32 %v78, %v134
  %v143 = vmul.f32 %v79, %v135
  %v144 = vmul.f32 %v80, %v136
  %v145 = vmul.f32 %v81, %v137
  %v146 = vmul.f32 %v82, %v138
  %v147 = vld [vmem:[%s2] sm:$0x1]
  %v149 = vlaneseq
  %v150 = vshrl.u32 %v149, 7
  %v151 = vsub.s32 0, %v150
  %v152 = vrot.slane %v147, %v151
  %v154 = vmul.f32 %v139, %v152
  %v155 = vmul.f32 %v140, %v152
  %v156 = vmul.f32 %v141, %v152
  %v157 = vmul.f32 %v142, %v152
  %v158 = vmul.f32 %v143, %v152
  %v159 = vmul.f32 %v144, %v152
  %v160 = vmul.f32 %v145, %v152
  %v161 = vmul.f32 %v146, %v152
  %v162 = vld [vmem:[%s3] sm:$0x1]
  %v164 = vlaneseq
  %v165 = vshrl.u32 %v164, 7
  %v166 = vsub.s32 0, %v165
  %v167 = vrot.slane %v162, %v166
  %v169 = vadd.f32 %v154, %v167
  %v170 = vadd.f32 %v155, %v167
  %v171 = vadd.f32 %v156, %v167
  %v172 = vadd.f32 %v157, %v167
  %v173 = vadd.f32 %v158, %v167
  %v174 = vadd.f32 %v159, %v167
  %v175 = vadd.f32 %v160, %v167
  %v176 = vadd.f32 %v161, %v167
  %177 = vst.msk [vmem:[%s4] sm:$0xff] %vm41, %v169
  %178 = vst.msk [vmem:[%s4 + $0x8] sm:$0xff] %vm41, %v170
  %179 = vst.msk [vmem:[%s4 + $0x10] sm:$0xff] %vm41, %v171
  %180 = vst.msk [vmem:[%s4 + $0x18] sm:$0xff] %vm41, %v172
  %181 = vst.msk [vmem:[%s4 + $0x20] sm:$0xff] %vm41, %v173
  %182 = vst.msk [vmem:[%s4 + $0x28] sm:$0xff] %vm41, %v174
  %183 = vst.msk [vmem:[%s4 + $0x30] sm:$0xff] %vm41, %v175
  %184 = vst.msk [vmem:[%s4 + $0x38] sm:$0xff] %vm41, %v176
  // Predicated region
  $region18: #{_lambda_.11} parent=0 // pred_check
    _
  $region19: #{_lambda_.11} parent=0 // pred_check_branch
    %186 = sbr.rel (0) target = $region21
  $region20: #{_lambda_.11} parent=0 // pred_region
    _
  $region21: #{_lambda_.11} parent=0 // pred_fallthru
    _
  // Predicated region
  $region22: #{_lambda_.11} parent=0 // pred_check
    _
  $region23: #{_lambda_.11} parent=0 // pred_check_branch
    %188 = sbr.rel (0) target = $region25
  $region24: #{_lambda_.11} parent=0 // pred_region
    _
  $region25: #{_lambda_.11} parent=0 // pred_fallthru
    _

// kernel: _lambda_.12
$region0: #{_lambda_.12}
  #allocation0 [shape = 'u32[]', space=smem, size = 0x4, offset = 0x4, fixed_abs, tag = 'smem constant byte address 0x4 - core index']
  #allocation1 [shape = 'u32[144,128]{1,0:T(1,128)}', space=vmem, size = 0x12000, scoped, tag = 'internal scratch']
  #allocation2 [shape = 'f32[64,128]{1,0:T(8,128)}', space=vmem, size = 0x8000, scoped, tag = 'scratch operand']
  %s0 = inlined_call_operand.vmem [shape: f32[64,128], index: 0, kind: input, shape index: {}]
  %s1 = inlined_call_operand.vmem [shape: f32[128,128], index: 1, kind: input, shape index: {}]
  %s2 = inlined_call_operand.vmem [shape: f32[1,128], index: 2, kind: input, shape index: {}]
  %s3 = inlined_call_operand.vmem [shape: f32[64,128], index: 3, kind: output, shape index: {}]
  %s4 = sld [smem:[#allocation0]]
  $region30: #{_lambda_.12} parent=0
    _
  %s6 = ssub.s32 1, %s4
  %s7 = scalar_select 0, %s6, %s4
  // Predicated region
  $region2: #{_lambda_.12} parent=0 // pred_check
    _
  $region3: #{_lambda_.12} parent=0 // pred_check_branch
    %9 = sbr.rel (0) target = $region5
  $region4: #{_lambda_.12} parent=0 // pred_region
    _
  $region5: #{_lambda_.12} parent=0 // pred_fallthru
    _
  // Predicated region
  $region6: #{_lambda_.12} parent=0 // pred_check
    _
  $region7: #{_lambda_.12} parent=0 // pred_check_branch
    %11 = sbr.rel (0) target = $region9
  $region8: #{_lambda_.12} parent=0 // pred_region
    _
  $region9: #{_lambda_.12} parent=0 // pred_fallthru
    _
  // Predicated region
  $region10: #{_lambda_.12} parent=0 // pred_check
    _
  $region11: #{_lambda_.12} parent=0 // pred_check_branch
    %13 = sbr.rel (0) target = $region13
  $region12: #{_lambda_.12} parent=0 // pred_region
    _
  $region13: #{_lambda_.12} parent=0 // pred_fallthru
    _
  %p14 = scmp.eq.s32.totalorder 0, 0
  // Predicated region
  $region14: #{_lambda_.12} parent=0 // pred_check
    %p15 = pneg %p14
  $region15: #{_lambda_.12} parent=0 // pred_check_branch
    %17 = sbr.rel (%p15) target = $region17
  $region16: #{_lambda_.12} parent=0 // pred_region
    %18 = vst [vmem:[#allocation2] sm:$0xff] 0.0
    %19 = vst [vmem:[#allocation2 + $0x8] sm:$0xff] 0.0
    %20 = vst [vmem:[#allocation2 + $0x10] sm:$0xff] 0.0
    %21 = vst [vmem:[#allocation2 + $0x18] sm:$0xff] 0.0
    %22 = vst [vmem:[#allocation2 + $0x20] sm:$0xff] 0.0
    %23 = vst [vmem:[#allocation2 + $0x28] sm:$0xff] 0.0
    %24 = vst [vmem:[#allocation2 + $0x30] sm:$0xff] 0.0
    %25 = vst [vmem:[#allocation2 + $0x38] sm:$0xff] 0.0
  $region17: #{_lambda_.12} parent=0 // pred_fallthru
    _
  %v26 = vld [vmem:[#allocation2] sm:$0xff]
  %v27 = vld [vmem:[#allocation2 + $0x8] sm:$0xff]
  %v28 = vld [vmem:[#allocation2 + $0x10] sm:$0xff]
  %v29 = vld [vmem:[#allocation2 + $0x18] sm:$0xff]
  %v30 = vld [vmem:[#allocation2 + $0x20] sm:$0xff]
  %v31 = vld [vmem:[#allocation2 + $0x28] sm:$0xff]
  %v32 = vld [vmem:[#allocation2 + $0x30] sm:$0xff]
  %v33 = vld [vmem:[#allocation2 + $0x38] sm:$0xff]
  %v34 = vld [vmem:[%s0] sm:$0xff]
  %v35 = vld [vmem:[%s0 + $0x8] sm:$0xff]
  %v36 = vld [vmem:[%s0 + $0x10] sm:$0xff]
  %v37 = vld [vmem:[%s0 + $0x18] sm:$0xff]
  %v38 = vld [vmem:[%s0 + $0x20] sm:$0xff]
  %v39 = vld [vmem:[%s0 + $0x28] sm:$0xff]
  %v40 = vld [vmem:[%s0 + $0x30] sm:$0xff]
  %v41 = vld [vmem:[%s0 + $0x38] sm:$0xff]
  %v42 = vld [vmem:[%s1] sm:$0xff]
  %v43 = vld [vmem:[%s1 + $0x8] sm:$0xff]
  %v44 = vld [vmem:[%s1 + $0x10] sm:$0xff]
  %v45 = vld [vmem:[%s1 + $0x18] sm:$0xff]
  %v46 = vld [vmem:[%s1 + $0x20] sm:$0xff]
  %v47 = vld [vmem:[%s1 + $0x28] sm:$0xff]
  %v48 = vld [vmem:[%s1 + $0x30] sm:$0xff]
  %v49 = vld [vmem:[%s1 + $0x38] sm:$0xff]
  %v50 = vld [vmem:[%s1 + $0x40] sm:$0xff]
  %v51 = vld [vmem:[%s1 + $0x48] sm:$0xff]
  %v52 = vld [vmem:[%s1 + $0x50] sm:$0xff]
  %v53 = vld [vmem:[%s1 + $0x58] sm:$0xff]
  %v54 = vld [vmem:[%s1 + $0x60] sm:$0xff]
  %v55 = vld [vmem:[%s1 + $0x68] sm:$0xff]
  %v56 = vld [vmem:[%s1 + $0x70] sm:$0xff]
  %v57 = vld [vmem:[%s1 + $0x78] sm:$0xff]
  %58 = vmatprep.subr.mxu0 0.0
  %v59 = vand.u32 %v42, 4294901760
  %60 = vmatpush1.msra.mxu0 %v59
  %61 = vmatprep.subr.mxu0 0.0
  %v62 = vand.u32 %v43, 4294901760
  %63 = vmatpush1.msra.mxu0 %v62
  %64 = vmatprep.subr.mxu0 0.0
  %v65 = vand.u32 %v44, 4294901760
  %66 = vmatpush1.msra.mxu0 %v65
  %67 = vmatprep.subr.mxu0 0.0
  %v68 = vand.u32 %v45, 4294901760
  %69 = vmatpush1.msra.mxu0 %v68
  %70 = vmatprep.subr.mxu0 0.0
  %v71 = vand.u32 %v46, 4294901760
  %72 = vmatpush1.msra.mxu0 %v71
  %73 = vmatprep.subr.mxu0 0.0
  %v74 = vand.u32 %v47, 4294901760
  %75 = vmatpush1.msra.mxu0 %v74
  %76 = vmatprep.subr.mxu0 0.0
  %v77 = vand.u32 %v48, 4294901760
  %78 = vmatpush1.msra.mxu0 %v77
  %79 = vmatprep.subr.mxu0 0.0
  %v80 = vand.u32 %v49, 4294901760
  %81 = vmatpush1.msra.mxu0 %v80
  %82 = vmatprep.subr.mxu0 0.0
  %v83 = vand.u32 %v50, 4294901760
  %84 = vmatpush1.msra.mxu0 %v83
  %85 = vmatprep.subr.mxu0 0.0
  %v86 = vand.u32 %v51, 4294901760
  %87 = vmatpush1.msra.mxu0 %v86
  %88 = vmatprep.subr.mxu0 0.0
  %v89 = vand.u32 %v52, 4294901760
  %90 = vmatpush1.msra.mxu0 %v89
  %91 = vmatprep.subr.mxu0 0.0
  %v92 = vand.u32 %v53, 4294901760
  %93 = vmatpush1.msra.mxu0 %v92
  %94 = vmatprep.subr.mxu0 0.0
  %v95 = vand.u32 %v54, 4294901760
  %96 = vmatpush1.msra.mxu0 %v95
  %97 = vmatprep.subr.mxu0 0.0
  %v98 = vand.u32 %v55, 4294901760
  %99 = vmatpush1.msra.mxu0 %v98
  %100 = vmatprep.subr.mxu0 0.0
  %v101 = vand.u32 %v56, 4294901760
  %102 = vmatpush1.msra.mxu0 %v101
  %103 = vmatprep.subr.mxu0 0.0
  %v104 = vand.u32 %v57, 4294901760
  %105 = vmatpush1.msra.mxu0 %v104
  %106 = vmatprep.subr.mxu0 0.0
  %107 = vmatpush1.msra.mxu0 0.0
  %108 = vmatprep.subr.mxu0 0.0
  %109 = vmatpush1.msra.mxu0 0.0
  %110 = vmatprep.subr.mxu0 0.0
  %111 = vmatpush1.msra.mxu0 0.0
  %112 = vmatprep.subr.mxu0 0.0
  %113 = vmatpush1.msra.mxu0 0.0
  %114 = vmatprep.subr.mxu0 0.0
  %115 = vmatpush1.msra.mxu0 0.0
  %116 = vmatprep.subr.mxu0 0.0
  %117 = vmatpush1.msra.mxu0 0.0
  %118 = vmatprep.subr.mxu0 0.0
  %119 = vmatpush1.msra.mxu0 0.0
  %120 = vmatprep.subr.mxu0 0.0
  %121 = vmatpush1.msra.mxu0 0.0
  %122 = vmatprep.subr.mxu0 0.0
  %123 = vmatpush1.msra.mxu0 0.0
  %124 = vmatprep.subr.mxu0 0.0
  %125 = vmatpush1.msra.mxu0 0.0
  %126 = vmatprep.subr.mxu0 0.0
  %127 = vmatpush1.msra.mxu0 0.0
  %128 = vmatprep.subr.mxu0 0.0
  %129 = vmatpush1.msra.mxu0 0.0
  %130 = vmatprep.subr.mxu0 0.0
  %131 = vmatpush1.msra.mxu0 0.0
  %132 = vmatprep.subr.mxu0 0.0
  %133 = vmatpush1.msra.mxu0 0.0
  %134 = vmatprep.subr.mxu0 0.0
  %135 = vmatpush1.msra.mxu0 0.0
  %136 = vmatprep.subr.mxu0 0.0
  %137 = vmatpush1.msra.mxu0 0.0
  %138 = vmatprep.mubr.f32.mxu0 0.0
  %v139 = vand.u32 %v34, 4294901760
  %v140 = vsub.f32 %v34, %v139
  %v141 = vand.u32 %v140, 4294901760
  %v142 = vsub.f32 %v140, %v141
  %v143 = vand.u32 %v142, 4294901760
  %144 = vmatmul.mubr.f32.gmra.mrb[0].mxu0 %v143
  %v145 = vpop.f32.mrb[0].mxu0
  %v146 = vadd.f32 0.0, %v145
  %v147 = vpop.f32.mrb[0].mxu0
  %148 = vmatprep.mubr.f32.mxu0 0.0
  %v149 = vand.u32 %v35, 4294901760
  %v150 = vsub.f32 %v35, %v149
  %v151 = vand.u32 %v150, 4294901760
  %v152 = vsub.f32 %v150, %v151
  %v153 = vand.u32 %v152, 4294901760
  %154 = vmatmul.mubr.f32.gmra.mrb[0].mxu0 %v153
  %v155 = vpop.f32.mrb[0].mxu0
  %v156 = vadd.f32 0.0, %v155
  %v157 = vpop.f32.mrb[0].mxu0
  %158 = vmatprep.mubr.f32.mxu0 0.0
  %v159 = vand.u32 %v36, 4294901760
  %v160 = vsub.f32 %v36, %v159
  %v161 = vand.u32 %v160, 4294901760
  %v162 = vsub.f32 %v160, %v161
  %v163 = vand.u32 %v162, 4294901760
  %164 = vmatmul.mubr.f32.gmra.mrb[0].mxu0 %v163
  %v165 = vpop.f32.mrb[0].mxu0
  %v166 = vadd.f32 0.0, %v165
  %v167 = vpop.f32.mrb[0].mxu0
  %168 = vmatprep.mubr.f32.mxu0 0.0
  %v169 = vand.u32 %v37, 4294901760
  %v170 = vsub.f32 %v37, %v169
  %v171 = vand.u32 %v170, 4294901760
  %v172 = vsub.f32 %v170, %v171
  %v173 = vand.u32 %v172, 4294901760
  %174 = vmatmul.mubr.f32.gmra.mrb[0].mxu0 %v173
  %v175 = vpop.f32.mrb[0].mxu0
  %v176 = vadd.f32 0.0, %v175
  %v177 = vpop.f32.mrb[0].mxu0
  %178 = vmatprep.mubr.f32.mxu0 0.0
  %v179 = vand.u32 %v38, 4294901760
  %v180 = vsub.f32 %v38, %v179
  %v181 = vand.u32 %v180, 4294901760
  %v182 = vsub.f32 %v180, %v181
  %v183 = vand.u32 %v182, 4294901760
  %184 = vmatmul.mubr.f32.gmra.mrb[0].mxu0 %v183
  %v185 = vpop.f32.mrb[0].mxu0
  %v186 = vadd.f32 0.0, %v185
  %v187 = vpop.f32.mrb[0].mxu0
  %188 = vmatprep.mubr.f32.mxu0 0.0
  %v189 = vand.u32 %v39, 4294901760
  %v190 = vsub.f32 %v39, %v189
  %v191 = vand.u32 %v190, 4294901760
  %v192 = vsub.f32 %v190, %v191
  %v193 = vand.u32 %v192, 4294901760
  %194 = vmatmul.mubr.f32.gmra.mrb[0].mxu0 %v193
  %v195 = vpop.f32.mrb[0].mxu0
  %v196 = vadd.f32 0.0, %v195
  %v197 = vpop.f32.mrb[0].mxu0
  %198 = vmatprep.mubr.f32.mxu0 0.0
  %v199 = vand.u32 %v40, 4294901760
  %v200 = vsub.f32 %v40, %v199
  %v201 = vand.u32 %v200, 4294901760
  %v202 = vsub.f32 %v200, %v201
  %v203 = vand.u32 %v202, 4294901760
  %204 = vmatmul.mubr.f32.gmra.mrb[0].mxu0 %v203
  %v205 = vpop.f32.mrb[0].mxu0
  %v206 = vadd.f32 0.0, %v205
  %v207 = vpop.f32.mrb[0].mxu0
  %208 = vmatprep.mubr.f32.mxu0 0.0
  %v209 = vand.u32 %v41, 4294901760
  %v210 = vsub.f32 %v41, %v209
  %v211 = vand.u32 %v210, 4294901760
  %v212 = vsub.f32 %v210, %v211
  %v213 = vand.u32 %v212, 4294901760
  %214 = vmatmul.mubr.f32.gmra.mrb[0].mxu0 %v213
  %v215 = vpop.f32.mrb[0].mxu0
  %v216 = vadd.f32 0.0, %v215
  %v217 = vpop.f32.mrb[0].mxu0
  %218 = vdwg.mxu0
  %219 = vmatprep.subr.mxu0 0.0
  %v220 = vand.u32 %v42, 4294901760
  %v221 = vsub.f32 %v42, %v220
  %v222 = vand.u32 %v221, 4294901760
  %v223 = vsub.f32 %v221, %v222
  %v224 = vand.u32 %v223, 4294901760
  %225 = vmatpush1.msra.mxu0 %v224
  %226 = vmatprep.subr.mxu0 0.0
  %v227 = vand.u32 %v43, 4294901760
  %v228 = vsub.f32 %v43, %v227
  %v229 = vand.u32 %v228, 4294901760
  %v230 = vsub.f32 %v228, %v229
  %v231 = vand.u32 %v230, 4294901760
  %232 = vmatpush1.msra.mxu0 %v231
  %233 = vmatprep.subr.mxu0 0.0
  %v234 = vand.u32 %v44, 4294901760
  %v235 = vsub.f32 %v44, %v234
  %v236 = vand.u32 %v235, 4294901760
  %v237 = vsub.f32 %v235, %v236
  %v238 = vand.u32 %v237, 4294901760
  %239 = vmatpush1.msra.mxu0 %v238
  %240 = vmatprep.subr.mxu0 0.0
  %v241 = vand.u32 %v45, 4294901760
  %v242 = vsub.f32 %v45, %v241
  %v243 = vand.u32 %v242, 4294901760
  %v244 = vsub.f32 %v242, %v243
  %v245 = vand.u32 %v244, 4294901760
  %246 = vmatpush1.msra.mxu0 %v245
  %247 = vmatprep.subr.mxu0 0.0
  %v248 = vand.u32 %v46, 4294901760
  %v249 = vsub.f32 %v46, %v248
  %v250 = vand.u32 %v249, 4294901760
  %v251 = vsub.f32 %v249, %v250
  %v252 = vand.u32 %v251, 4294901760
  %253 = vmatpush1.msra.mxu0 %v252
  %254 = vmatprep.subr.mxu0 0.0
  %v255 = vand.u32 %v47, 4294901760
  %v256 = vsub.f32 %v47, %v255
  %v257 = vand.u32 %v256, 4294901760
  %v258 = vsub.f32 %v256, %v257
  %v259 = vand.u32 %v258, 4294901760
  %260 = vmatpush1.msra.mxu0 %v259
  %261 = vmatprep.subr.mxu0 0.0
  %v262 = vand.u32 %v48, 4294901760
  %v263 = vsub.f32 %v48, %v262
  %v264 = vand.u32 %v263, 4294901760
  %v265 = vsub.f32 %v263, %v264
  %v266 = vand.u32 %v265, 4294901760
  %267 = vmatpush1.msra.mxu0 %v266
  %268 = vmatprep.subr.mxu0 0.0
  %v269 = vand.u32 %v49, 4294901760
  %v270 = vsub.f32 %v49, %v269
  %v271 = vand.u32 %v270, 4294901760
  %v272 = vsub.f32 %v270, %v271
  %v273 = vand.u32 %v272, 4294901760
  %274 = vmatpush1.msra.mxu0 %v273
  %275 = vmatprep.subr.mxu0 0.0
  %v276 = vand.u32 %v50, 4294901760
  %v277 = vsub.f32 %v50, %v276
  %v278 = vand.u32 %v277, 4294901760
  %v279 = vsub.f32 %v277, %v278
  %v280 = vand.u32 %v279, 4294901760
  %281 = vmatpush1.msra.mxu0 %v280
  %282 = vmatprep.subr.mxu0 0.0
  %v283 = vand.u32 %v51, 4294901760
  %v284 = vsub.f32 %v51, %v283
  %v285 = vand.u32 %v284, 4294901760
  %v286 = vsub.f32 %v284, %v285
  %v287 = vand.u32 %v286, 4294901760
  %288 = vmatpush1.msra.mxu0 %v287
  %289 = vmatprep.subr.mxu0 0.0
  %v290 = vand.u32 %v52, 4294901760
  %v291 = vsub.f32 %v52, %v290
  %v292 = vand.u32 %v291, 4294901760
  %v293 = vsub.f32 %v291, %v292
  %v294 = vand.u32 %v293, 4294901760
  %295 = vmatpush1.msra.mxu0 %v294
  %296 = vmatprep.subr.mxu0 0.0
  %v297 = vand.u32 %v53, 4294901760
  %v298 = vsub.f32 %v53, %v297
  %v299 = vand.u32 %v298, 4294901760
  %v300 = vsub.f32 %v298, %v299
  %v301 = vand.u32 %v300, 4294901760
  %302 = vmatpush1.msra.mxu0 %v301
  %303 = vmatprep.subr.mxu0 0.0
  %v304 = vand.u32 %v54, 4294901760
  %v305 = vsub.f32 %v54, %v304
  %v306 = vand.u32 %v305, 4294901760
  %v307 = vsub.f32 %v305, %v306
  %v308 = vand.u32 %v307, 4294901760
  %309 = vmatpush1.msra.mxu0 %v308
  %310 = vmatprep.subr.mxu0 0.0
  %v311 = vand.u32 %v55, 4294901760
  %v312 = vsub.f32 %v55, %v311
  %v313 = vand.u32 %v312, 4294901760
  %v314 = vsub.f32 %v312, %v313
  %v315 = vand.u32 %v314, 4294901760
  %316 = vmatpush1.msra.mxu0 %v315
  %317 = vmatprep.subr.mxu0 0.0
  %v318 = vand.u32 %v56, 4294901760
  %v319 = vsub.f32 %v56, %v318
  %v320 = vand.u32 %v319, 4294901760
  %v321 = vsub.f32 %v319, %v320
  %v322 = vand.u32 %v321, 4294901760
  %323 = vmatpush1.msra.mxu0 %v322
  %324 = vmatprep.subr.mxu0 0.0
  %v325 = vand.u32 %v57, 4294901760
  %v326 = vsub.f32 %v57, %v325
  %v327 = vand.u32 %v326, 4294901760
  %v328 = vsub.f32 %v326, %v327
  %v329 = vand.u32 %v328, 4294901760
  %330 = vmatpush1.msra.mxu0 %v329
  %331 = vmatprep.subr.mxu0 0.0
  %332 = vmatpush1.msra.mxu0 0.0
  %333 = vmatprep.subr.mxu0 0.0
  %334 = vmatpush1.msra.mxu0 0.0
  %335 = vmatprep.subr.mxu0 0.0
  %336 = vmatpush1.msra.mxu0 0.0
  %337 = vmatprep.subr.mxu0 0.0
  %338 = vmatpush1.msra.mxu0 0.0
  %339 = vmatprep.subr.mxu0 0.0
  %340 = vmatpush1.msra.mxu0 0.0
  %341 = vmatprep.subr.mxu0 0.0
  %342 = vmatpush1.msra.mxu0 0.0
  %343 = vmatprep.subr.mxu0 0.0
  %344 = vmatpush1.msra.mxu0 0.0
  %345 = vmatprep.subr.mxu0 0.0
  %346 = vmatpush1.msra.mxu0 0.0
  %347 = vmatprep.subr.mxu0 0.0
  %348 = vmatpush1.msra.mxu0 0.0
  %349 = vmatprep.subr.mxu0 0.0
  %350 = vmatpush1.msra.mxu0 0.0
  %351 = vmatprep.subr.mxu0 0.0
  %352 = vmatpush1.msra.mxu0 0.0
  %353 = vmatprep.subr.mxu0 0.0
  %354 = vmatpush1.msra.mxu0 0.0
  %355 = vmatprep.subr.mxu0 0.0
  %356 = vmatpush1.msra.mxu0 0.0
  %357 = vmatprep.subr.mxu0 0.0
  %358 = vmatpush1.msra.mxu0 0.0
  %359 = vmatprep.subr.mxu0 0.0
  %360 = vmatpush1.msra.mxu0 0.0
  %361 = vmatprep.subr.mxu0 0.0
  %362 = vmatpush1.msra.mxu0 0.0
  %363 = vmatprep.mubr.f32.mxu0 0.0
  %v364 = vand.u32 %v34, 4294901760
  %365 = vmatmul.mubr.f32.gmra.mrb[0].mxu0 %v364
  %v366 = vpop.f32.mrb[0].mxu0
  %v367 = vadd.f32 %v146, %v366
  %v368 = vpop.f32.mrb[0].mxu0
  %369 = vmatprep.mubr.f32.mxu0 0.0
  %v370 = vand.u32 %v35, 4294901760
  %371 = vmatmul.mubr.f32.gmra.mrb[0].mxu0 %v370
  %v372 = vpop.f32.mrb[0].mxu0
  %v373 = vadd.f32 %v156, %v372
  %v374 = vpop.f32.mrb[0].mxu0
  %375 = vmatprep.mubr.f32.mxu0 0.0
  %v376 = vand.u32 %v36, 4294901760
  %377 = vmatmul.mubr.f32.gmra.mrb[0].mxu0 %v376
  %v378 = vpop.f32.mrb[0].mxu0
  %v379 = vadd.f32 %v166, %v378
  %v380 = vpop.f32.mrb[0].mxu0
  %381 = vmatprep.mubr.f32.mxu0 0.0
  %v382 = vand.u32 %v37, 4294901760
  %383 = vmatmul.mubr.f32.gmra.mrb[0].mxu0 %v382
  %v384 = vpop.f32.mrb[0].mxu0
  %v385 = vadd.f32 %v176, %v384
  %v386 = vpop.f32.mrb[0].mxu0
  %387 = vmatprep.mubr.f32.mxu0 0.0
  %v388 = vand.u32 %v38, 4294901760
  %389 = vmatmul.mubr.f32.gmra.mrb[0].mxu0 %v388
  %v390 = vpop.f32.mrb[0].mxu0
  %v391 = vadd.f32 %v186, %v390
  %v392 = vpop.f32.mrb[0].mxu0
  %393 = vmatprep.mubr.f32.mxu0 0.0
  %v394 = vand.u32 %v39, 4294901760
  %395 = vmatmul.mubr.f32.gmra.mrb[0].mxu0 %v394
  %v396 = vpop.f32.mrb[0].mxu0
  %v397 = vadd.f32 %v196, %v396
  %v398 = vpop.f32.mrb[0].mxu0
  %399 = vmatprep.mubr.f32.mxu0 0.0
  %v400 = vand.u32 %v40, 4294901760
  %401 = vmatmul.mubr.f32.gmra.mrb[0].mxu0 %v400
  %v402 = vpop.f32.mrb[0].mxu0
  %v403 = vadd.f32 %v206, %v402
  %v404 = vpop.f32.mrb[0].mxu0
  %405 = vmatprep.mubr.f32.mxu0 0.0
  %v406 = vand.u32 %v41, 4294901760
  %407 = vmatmul.mubr.f32.gmra.mrb[0].mxu0 %v406
  %v408 = vpop.f32.mrb[0].mxu0
  %v409 = vadd.f32 %v216, %v408
  %v410 = vpop.f32.mrb[0].mxu0
  %411 = vdwg.mxu0
  %412 = vmatprep.subr.mxu0 0.0
  %v413 = vand.u32 %v42, 4294901760
  %v414 = vsub.f32 %v42, %v413
  %415 = vmatpush1.msra.mxu0 %v414
  %416 = vmatprep.subr.mxu0 0.0
  %v417 = vand.u32 %v43, 4294901760
  %v418 = vsub.f32 %v43, %v417
  %419 = vmatpush1.msra.mxu0 %v418
  %420 = vmatprep.subr.mxu0 0.0
  %v421 = vand.u32 %v44, 4294901760
  %v422 = vsub.f32 %v44, %v421
  %423 = vmatpush1.msra.mxu0 %v422
  %424 = vmatprep.subr.mxu0 0.0
  %v425 = vand.u32 %v45, 4294901760
  %v426 = vsub.f32 %v45, %v425
  %427 = vmatpush1.msra.mxu0 %v426
  %428 = vmatprep.subr.mxu0 0.0
  %v429 = vand.u32 %v46, 4294901760
  %v430 = vsub.f32 %v46, %v429
  %431 = vmatpush1.msra.mxu0 %v430
  %432 = vmatprep.subr.mxu0 0.0
  %v433 = vand.u32 %v47, 4294901760
  %v434 = vsub.f32 %v47, %v433
  %435 = vmatpush1.msra.mxu0 %v434
  %436 = vmatprep.subr.mxu0 0.0
  %v437 = vand.u32 %v48, 4294901760
  %v438 = vsub.f32 %v48, %v437
  %439 = vmatpush1.msra.mxu0 %v438
  %440 = vmatprep.subr.mxu0 0.0
  %v441 = vand.u32 %v49, 4294901760
  %v442 = vsub.f32 %v49, %v441
  %443 = vmatpush1.msra.mxu0 %v442
  %444 = vmatprep.subr.mxu0 0.0
  %v445 = vand.u32 %v50, 4294901760
  %v446 = vsub.f32 %v50, %v445
  %447 = vmatpush1.msra.mxu0 %v446
  %448 = vmatprep.subr.mxu0 0.0
  %v449 = vand.u32 %v51, 4294901760
  %v450 = vsub.f32 %v51, %v449
  %451 = vmatpush1.msra.mxu0 %v450
  %452 = vmatprep.subr.mxu0 0.0
  %v453 = vand.u32 %v52, 4294901760
  %v454 = vsub.f32 %v52, %v453
  %455 = vmatpush1.msra.mxu0 %v454
  %456 = vmatprep.subr.mxu0 0.0
  %v457 = vand.u32 %v53, 4294901760
  %v458 = vsub.f32 %v53, %v457
  %459 = vmatpush1.msra.mxu0 %v458
  %460 = vmatprep.subr.mxu0 0.0
  %v461 = vand.u32 %v54, 4294901760
  %v462 = vsub.f32 %v54, %v461
  %463 = vmatpush1.msra.mxu0 %v462
  %464 = vmatprep.subr.mxu0 0.0
  %v465 = vand.u32 %v55, 4294901760
  %v466 = vsub.f32 %v55, %v465
  %467 = vmatpush1.msra.mxu0 %v466
  %468 = vmatprep.subr.mxu0 0.0
  %v469 = vand.u32 %v56, 4294901760
  %v470 = vsub.f32 %v56, %v469
  %471 = vmatpush1.msra.mxu0 %v470
  %472 = vmatprep.subr.mxu0 0.0
  %v473 = vand.u32 %v57, 4294901760
  %v474 = vsub.f32 %v57, %v473
  %475 = vmatpush1.msra.mxu0 %v474
  %476 = vmatprep.subr.mxu0 0.0
  %477 = vmatpush1.msra.mxu0 0.0
  %478 = vmatprep.subr.mxu0 0.0
  %479 = vmatpush1.msra.mxu0 0.0
  %480 = vmatprep.subr.mxu0 0.0
  %481 = vmatpush1.msra.mxu0 0.0
  %482 = vmatprep.subr.mxu0 0.0
  %483 = vmatpush1.msra.mxu0 0.0
  %484 = vmatprep.subr.mxu0 0.0
  %485 = vmatpush1.msra.mxu0 0.0
  %486 = vmatprep.subr.mxu0 0.0
  %487 = vmatpush1.msra.mxu0 0.0
  %488 = vmatprep.subr.mxu0 0.0
  %489 = vmatpush1.msra.mxu0 0.0
  %490 = vmatprep.subr.mxu0 0.0
  %491 = vmatpush1.msra.mxu0 0.0
  %492 = vmatprep.subr.mxu0 0.0
  %493 = vmatpush1.msra.mxu0 0.0
  %494 = vmatprep.subr.mxu0 0.0
  %495 = vmatpush1.msra.mxu0 0.0
  %496 = vmatprep.subr.mxu0 0.0
  %497 = vmatpush1.msra.mxu0 0.0
  %498 = vmatprep.subr.mxu0 0.0
  %499 = vmatpush1.msra.mxu0 0.0
  %500 = vmatprep.subr.mxu0 0.0
  %501 = vmatpush1.msra.mxu0 0.0
  %502 = vmatprep.subr.mxu0 0.0
  %503 = vmatpush1.msra.mxu0 0.0
  %504 = vmatprep.subr.mxu0 0.0
  %505 = vmatpush1.msra.mxu0 0.0
  %506 = vmatprep.subr.mxu0 0.0
  %507 = vmatpush1.msra.mxu0 0.0
  %508 = vmatprep.mubr.f32.mxu0 0.0
  %v509 = vand.u32 %v34, 4294901760
  %v510 = vsub.f32 %v34, %v509
  %511 = vmatmul.mubr.f32.gmra.mrb[0].mxu0 %v510
  %v512 = vpop.f32.mrb[0].mxu0
  %v513 = vadd.f32 %v367, %v512
  %v514 = vpop.f32.mrb[0].mxu0
  %515 = vmatprep.mubr.f32.mxu0 0.0
  %v516 = vand.u32 %v35, 4294901760
  %v517 = vsub.f32 %v35, %v516
  %518 = vmatmul.mubr.f32.gmra.mrb[0].mxu0 %v517
  %v519 = vpop.f32.mrb[0].mxu0
  %v520 = vadd.f32 %v373, %v519
  %v521 = vpop.f32.mrb[0].mxu0
  %522 = vmatprep.mubr.f32.mxu0 0.0
  %v523 = vand.u32 %v36, 4294901760
  %v524 = vsub.f32 %v36, %v523
  %525 = vmatmul.mubr.f32.gmra.mrb[0].mxu0 %v524
  %v526 = vpop.f32.mrb[0].mxu0
  %v527 = vadd.f32 %v379, %v526
  %v528 = vpop.f32.mrb[0].mxu0
  %529 = vmatprep.mubr.f32.mxu0 0.0
  %v530 = vand.u32 %v37, 4294901760
  %v531 = vsub.f32 %v37, %v530
  %532 = vmatmul.mubr.f32.gmra.mrb[0].mxu0 %v531
  %v533 = vpop.f32.mrb[0].mxu0
  %v534 = vadd.f32 %v385, %v533
  %v535 = vpop.f32.mrb[0].mxu0
  %536 = vmatprep.mubr.f32.mxu0 0.0
  %v537 = vand.u32 %v38, 4294901760
  %v538 = vsub.f32 %v38, %v537
  %539 = vmatmul.mubr.f32.gmra.mrb[0].mxu0 %v538
  %v540 = vpop.f32.mrb[0].mxu0
  %v541 = vadd.f32 %v391, %v540
  %v542 = vpop.f32.mrb[0].mxu0
  %543 = vmatprep.mubr.f32.mxu0 0.0
  %v544 = vand.u32 %v39, 4294901760
  %v545 = vsub.f32 %v39, %v544
  %546 = vmatmul.mubr.f32.gmra.mrb[0].mxu0 %v545
  %v547 = vpop.f32.mrb[0].mxu0
  %v548 = vadd.f32 %v397, %v547
  %v549 = vpop.f32.mrb[0].mxu0
  %550 = vmatprep.mubr.f32.mxu0 0.0
  %v551 = vand.u32 %v40, 4294901760
  %v552 = vsub.f32 %v40, %v551
  %553 = vmatmul.mubr.f32.gmra.mrb[0].mxu0 %v552
  %v554 = vpop.f32.mrb[0].mxu0
  %v555 = vadd.f32 %v403, %v554
  %v556 = vpop.f32.mrb[0].mxu0
  %557 = vmatprep.mubr.f32.mxu0 0.0
  %v558 = vand.u32 %v41, 4294901760
  %v559 = vsub.f32 %v41, %v558
  %560 = vmatmul.mubr.f32.gmra.mrb[0].mxu0 %v559
  %v561 = vpop.f32.mrb[0].mxu0
  %v562 = vadd.f32 %v409, %v561
  %v563 = vpop.f32.mrb[0].mxu0
  %564 = vdwg.mxu0
  %565 = vmatprep.subr.mxu0 0.0
  %v566 = vand.u32 %v42, 4294901760
  %567 = vmatpush1.msra.mxu0 %v566
  %568 = vmatprep.subr.mxu0 0.0
  %v569 = vand.u32 %v43, 4294901760
  %570 = vmatpush1.msra.mxu0 %v569
  %571 = vmatprep.subr.mxu0 0.0
  %v572 = vand.u32 %v44, 4294901760
  %573 = vmatpush1.msra.mxu0 %v572
  %574 = vmatprep.subr.mxu0 0.0
  %v575 = vand.u32 %v45, 4294901760
  %576 = vmatpush1.msra.mxu0 %v575
  %577 = vmatprep.subr.mxu0 0.0
  %v578 = vand.u32 %v46, 4294901760
  %579 = vmatpush1.msra.mxu0 %v578
  %580 = vmatprep.subr.mxu0 0.0
  %v581 = vand.u32 %v47, 4294901760
  %582 = vmatpush1.msra.mxu0 %v581
  %583 = vmatprep.subr.mxu0 0.0
  %v584 = vand.u32 %v48, 4294901760
  %585 = vmatpush1.msra.mxu0 %v584
  %586 = vmatprep.subr.mxu0 0.0
  %v587 = vand.u32 %v49, 4294901760
  %588 = vmatpush1.msra.mxu0 %v587
  %589 = vmatprep.subr.mxu0 0.0
  %v590 = vand.u32 %v50, 4294901760
  %591 = vmatpush1.msra.mxu0 %v590
  %592 = vmatprep.subr.mxu0 0.0
  %v593 = vand.u32 %v51, 4294901760
  %594 = vmatpush1.msra.mxu0 %v593
  %595 = vmatprep.subr.mxu0 0.0
  %v596 = vand.u32 %v52, 4294901760
  %597 = vmatpush1.msra.mxu0 %v596
  %598 = vmatprep.subr.mxu0 0.0
  %v599 = vand.u32 %v53, 4294901760
  %600 = vmatpush1.msra.mxu0 %v599
  %601 = vmatprep.subr.mxu0 0.0
  %v602 = vand.u32 %v54, 4294901760
  %603 = vmatpush1.msra.mxu0 %v602
  %604 = vmatprep.subr.mxu0 0.0
  %v605 = vand.u32 %v55, 4294901760
  %606 = vmatpush1.msra.mxu0 %v605
  %607 = vmatprep.subr.mxu0 0.0
  %v608 = vand.u32 %v56, 4294901760
  %609 = vmatpush1.msra.mxu0 %v608
  %610 = vmatprep.subr.mxu0 0.0
  %v611 = vand.u32 %v57, 4294901760
  %612 = vmatpush1.msra.mxu0 %v611
  %613 = vmatprep.subr.mxu0 0.0
  %614 = vmatpush1.msra.mxu0 0.0
  %615 = vmatprep.subr.mxu0 0.0
  %616 = vmatpush1.msra.mxu0 0.0
  %617 = vmatprep.subr.mxu0 0.0
  %618 = vmatpush1.msra.mxu0 0.0
  %619 = vmatprep.subr.mxu0 0.0
  %620 = vmatpush1.msra.mxu0 0.0
  %621 = vmatprep.subr.mxu0 0.0
  %622 = vmatpush1.msra.mxu0 0.0
  %623 = vmatprep.subr.mxu0 0.0
  %624 = vmatpush1.msra.mxu0 0.0
  %625 = vmatprep.subr.mxu0 0.0
  %626 = vmatpush1.msra.mxu0 0.0
  %627 = vmatprep.subr.mxu0 0.0
  %628 = vmatpush1.msra.mxu0 0.0
  %629 = vmatprep.subr.mxu0 0.0
  %630 = vmatpush1.msra.mxu0 0.0
  %631 = vmatprep.subr.mxu0 0.0
  %632 = vmatpush1.msra.mxu0 0.0
  %633 = vmatprep.subr.mxu0 0.0
  %634 = vmatpush1.msra.mxu0 0.0
  %635 = vmatprep.subr.mxu0 0.0
  %636 = vmatpush1.msra.mxu0 0.0
  %637 = vmatprep.subr.mxu0 0.0
  %638 = vmatpush1.msra.mxu0 0.0
  %639 = vmatprep.subr.mxu0 0.0
  %640 = vmatpush1.msra.mxu0 0.0
  %641 = vmatprep.subr.mxu0 0.0
  %642 = vmatpush1.msra.mxu0 0.0
  %643 = vmatprep.subr.mxu0 0.0
  %644 = vmatpush1.msra.mxu0 0.0
  %645 = vmatprep.mubr.f32.mxu0 0.0
  %v646 = vand.u32 %v34, 4294901760
  %v647 = vsub.f32 %v34, %v646
  %v648 = vand.u32 %v647, 4294901760
  %649 = vmatmul.mubr.f32.gmra.mrb[0].mxu0 %v648
  %v650 = vpop.f32.mrb[0].mxu0
  %v651 = vadd.f32 %v513, %v650
  %v652 = vpop.f32.mrb[0].mxu0
  %653 = vmatprep.mubr.f32.mxu0 0.0
  %v654 = vand.u32 %v35, 4294901760
  %v655 = vsub.f32 %v35, %v654
  %v656 = vand.u32 %v655, 4294901760
  %657 = vmatmul.mubr.f32.gmra.mrb[0].mxu0 %v656
  %v658 = vpop.f32.mrb[0].mxu0
  %v659 = vadd.f32 %v520, %v658
  %v660 = vpop.f32.mrb[0].mxu0
  %661 = vmatprep.mubr.f32.mxu0 0.0
  %v662 = vand.u32 %v36, 4294901760
  %v663 = vsub.f32 %v36, %v662
  %v664 = vand.u32 %v663, 4294901760
  %665 = vmatmul.mubr.f32.gmra.mrb[0].mxu0 %v664
  %v666 = vpop.f32.mrb[0].mxu0
  %v667 = vadd.f32 %v527, %v666
  %v668 = vpop.f32.mrb[0].mxu0
  %669 = vmatprep.mubr.f32.mxu0 0.0
  %v670 = vand.u32 %v37, 4294901760
  %v671 = vsub.f32 %v37, %v670
  %v672 = vand.u32 %v671, 4294901760
  %673 = vmatmul.mubr.f32.gmra.mrb[0].mxu0 %v672
  %v674 = vpop.f32.mrb[0].mxu0
  %v675 = vadd.f32 %v534, %v674
  %v676 = vpop.f32.mrb[0].mxu0
  %677 = vmatprep.mubr.f32.mxu0 0.0
  %v678 = vand.u32 %v38, 4294901760
  %v679 = vsub.f32 %v38, %v678
  %v680 = vand.u32 %v679, 4294901760
  %681 = vmatmul.mubr.f32.gmra.mrb[0].mxu0 %v680
  %v682 = vpop.f32.mrb[0].mxu0
  %v683 = vadd.f32 %v541, %v682
  %v684 = vpop.f32.mrb[0].mxu0
  %685 = vmatprep.mubr.f32.mxu0 0.0
  %v686 = vand.u32 %v39, 4294901760
  %v687 = vsub.f32 %v39, %v686
  %v688 = vand.u32 %v687, 4294901760
  %689 = vmatmul.mubr.f32.gmra.mrb[0].mxu0 %v688
  %v690 = vpop.f32.mrb[0].mxu0
  %v691 = vadd.f32 %v548, %v690
  %v692 = vpop.f32.mrb[0].mxu0
  %693 = vmatprep.mubr.f32.mxu0 0.0
  %v694 = vand.u32 %v40, 4294901760
  %v695 = vsub.f32 %v40, %v694
  %v696 = vand.u32 %v695, 4294901760
  %697 = vmatmul.mubr.f32.gmra.mrb[0].mxu0 %v696
  %v698 = vpop.f32.mrb[0].mxu0
  %v699 = vadd.f32 %v555, %v698
  %v700 = vpop.f32.mrb[0].mxu0
  %701 = vmatprep.mubr.f32.mxu0 0.0
  %v702 = vand.u32 %v41, 4294901760
  %v703 = vsub.f32 %v41, %v702
  %v704 = vand.u32 %v703, 4294901760
  %705 = vmatmul.mubr.f32.gmra.mrb[0].mxu0 %v704
  %v706 = vpop.f32.mrb[0].mxu0
  %v707 = vadd.f32 %v562, %v706
  %v708 = vpop.f32.mrb[0].mxu0
  %709 = vdwg.mxu0
  %710 = vmatprep.subr.mxu0 0.0
  %v711 = vand.u32 %v42, 4294901760
  %v712 = vsub.f32 %v42, %v711
  %v713 = vand.u32 %v712, 4294901760
  %714 = vmatpush1.msra.mxu0 %v713
  %715 = vmatprep.subr.mxu0 0.0
  %v716 = vand.u32 %v43, 4294901760
  %v717 = vsub.f32 %v43, %v716
  %v718 = vand.u32 %v717, 4294901760
  %719 = vmatpush1.msra.mxu0 %v718
  %720 = vmatprep.subr.mxu0 0.0
  %v721 = vand.u32 %v44, 4294901760
  %v722 = vsub.f32 %v44, %v721
  %v723 = vand.u32 %v722, 4294901760
  %724 = vmatpush1.msra.mxu0 %v723
  %725 = vmatprep.subr.mxu0 0.0
  %v726 = vand.u32 %v45, 4294901760
  %v727 = vsub.f32 %v45, %v726
  %v728 = vand.u32 %v727, 4294901760
  %729 = vmatpush1.msra.mxu0 %v728
  %730 = vmatprep.subr.mxu0 0.0
  %v731 = vand.u32 %v46, 4294901760
  %v732 = vsub.f32 %v46, %v731
  %v733 = vand.u32 %v732, 4294901760
  %734 = vmatpush1.msra.mxu0 %v733
  %735 = vmatprep.subr.mxu0 0.0
  %v736 = vand.u32 %v47, 4294901760
  %v737 = vsub.f32 %v47, %v736
  %v738 = vand.u32 %v737, 4294901760
  %739 = vmatpush1.msra.mxu0 %v738
  %740 = vmatprep.subr.mxu0 0.0
  %v741 = vand.u32 %v48, 4294901760
  %v742 = vsub.f32 %v48, %v741
  %v743 = vand.u32 %v742, 4294901760
  %744 = vmatpush1.msra.mxu0 %v743
  %745 = vmatprep.subr.mxu0 0.0
  %v746 = vand.u32 %v49, 4294901760
  %v747 = vsub.f32 %v49, %v746
  %v748 = vand.u32 %v747, 4294901760
  %749 = vmatpush1.msra.mxu0 %v748
  %750 = vmatprep.subr.mxu0 0.0
  %v751 = vand.u32 %v50, 4294901760
  %v752 = vsub.f32 %v50, %v751
  %v753 = vand.u32 %v752, 4294901760
  %754 = vmatpush1.msra.mxu0 %v753
  %755 = vmatprep.subr.mxu0 0.0
  %v756 = vand.u32 %v51, 4294901760
  %v757 = vsub.f32 %v51, %v756
  %v758 = vand.u32 %v757, 4294901760
  %759 = vmatpush1.msra.mxu0 %v758
  %760 = vmatprep.subr.mxu0 0.0
  %v761 = vand.u32 %v52, 4294901760
  %v762 = vsub.f32 %v52, %v761
  %v763 = vand.u32 %v762, 4294901760
  %764 = vmatpush1.msra.mxu0 %v763
  %765 = vmatprep.subr.mxu0 0.0
  %v766 = vand.u32 %v53, 4294901760
  %v767 = vsub.f32 %v53, %v766
  %v768 = vand.u32 %v767, 4294901760
  %769 = vmatpush1.msra.mxu0 %v768
  %770 = vmatprep.subr.mxu0 0.0
  %v771 = vand.u32 %v54, 4294901760
  %v772 = vsub.f32 %v54, %v771
  %v773 = vand.u32 %v772, 4294901760
  %774 = vmatpush1.msra.mxu0 %v773
  %775 = vmatprep.subr.mxu0 0.0
  %v776 = vand.u32 %v55, 4294901760
  %v777 = vsub.f32 %v55, %v776
  %v778 = vand.u32 %v777, 4294901760
  %779 = vmatpush1.msra.mxu0 %v778
  %780 = vmatprep.subr.mxu0 0.0
  %v781 = vand.u32 %v56, 4294901760
  %v782 = vsub.f32 %v56, %v781
  %v783 = vand.u32 %v782, 4294901760
  %784 = vmatpush1.msra.mxu0 %v783
  %785 = vmatprep.subr.mxu0 0.0
  %v786 = vand.u32 %v57, 4294901760
  %v787 = vsub.f32 %v57, %v786
  %v788 = vand.u32 %v787, 4294901760
  %789 = vmatpush1.msra.mxu0 %v788
  %790 = vmatprep.subr.mxu0 0.0
  %791 = vmatpush1.msra.mxu0 0.0
  %792 = vmatprep.subr.mxu0 0.0
  %793 = vmatpush1.msra.mxu0 0.0
  %794 = vmatprep.subr.mxu0 0.0
  %795 = vmatpush1.msra.mxu0 0.0
  %796 = vmatprep.subr.mxu0 0.0
  %797 = vmatpush1.msra.mxu0 0.0
  %798 = vmatprep.subr.mxu0 0.0
  %799 = vmatpush1.msra.mxu0 0.0
  %800 = vmatprep.subr.mxu0 0.0
  %801 = vmatpush1.msra.mxu0 0.0
  %802 = vmatprep.subr.mxu0 0.0
  %803 = vmatpush1.msra.mxu0 0.0
  %804 = vmatprep.subr.mxu0 0.0
  %805 = vmatpush1.msra.mxu0 0.0
  %806 = vmatprep.subr.mxu0 0.0
  %807 = vmatpush1.msra.mxu0 0.0
  %808 = vmatprep.subr.mxu0 0.0
  %809 = vmatpush1.msra.mxu0 0.0
  %810 = vmatprep.subr.mxu0 0.0
  %811 = vmatpush1.msra.mxu0 0.0
  %812 = vmatprep.subr.mxu0 0.0
  %813 = vmatpush1.msra.mxu0 0.0
  %814 = vmatprep.subr.mxu0 0.0
  %815 = vmatpush1.msra.mxu0 0.0
  %816 = vmatprep.subr.mxu0 0.0
  %817 = vmatpush1.msra.mxu0 0.0
  %818 = vmatprep.subr.mxu0 0.0
  %819 = vmatpush1.msra.mxu0 0.0
  %820 = vmatprep.subr.mxu0 0.0
  %821 = vmatpush1.msra.mxu0 0.0
  %822 = vmatprep.mubr.f32.mxu0 0.0
  %v823 = vand.u32 %v34, 4294901760
  %824 = vmatmul.mubr.f32.gmra.mrb[0].mxu0 %v823
  %v825 = vpop.f32.mrb[0].mxu0
  %v826 = vadd.f32 %v651, %v825
  %v827 = vpop.f32.mrb[0].mxu0
  %828 = vmatprep.mubr.f32.mxu0 0.0
  %v829 = vand.u32 %v35, 4294901760
  %830 = vmatmul.mubr.f32.gmra.mrb[0].mxu0 %v829
  %v831 = vpop.f32.mrb[0].mxu0
  %v832 = vadd.f32 %v659, %v831
  %v833 = vpop.f32.mrb[0].mxu0
  %834 = vmatprep.mubr.f32.mxu0 0.0
  %v835 = vand.u32 %v36, 4294901760
  %836 = vmatmul.mubr.f32.gmra.mrb[0].mxu0 %v835
  %v837 = vpop.f32.mrb[0].mxu0
  %v838 = vadd.f32 %v667, %v837
  %v839 = vpop.f32.mrb[0].mxu0
  %840 = vmatprep.mubr.f32.mxu0 0.0
  %v841 = vand.u32 %v37, 4294901760
  %842 = vmatmul.mubr.f32.gmra.mrb[0].mxu0 %v841
  %v843 = vpop.f32.mrb[0].mxu0
  %v844 = vadd.f32 %v675, %v843
  %v845 = vpop.f32.mrb[0].mxu0
  %846 = vmatprep.mubr.f32.mxu0 0.0
  %v847 = vand.u32 %v38, 4294901760
  %848 = vmatmul.mubr.f32.gmra.mrb[0].mxu0 %v847
  %v849 = vpop.f32.mrb[0].mxu0
  %v850 = vadd.f32 %v683, %v849
  %v851 = vpop.f32.mrb[0].mxu0
  %852 = vmatprep.mubr.f32.mxu0 0.0
  %v853 = vand.u32 %v39, 4294901760
  %854 = vmatmul.mubr.f32.gmra.mrb[0].mxu0 %v853
  %v855 = vpop.f32.mrb[0].mxu0
  %v856 = vadd.f32 %v691, %v855
  %v857 = vpop.f32.mrb[0].mxu0
  %858 = vmatprep.mubr.f32.mxu0 0.0
  %v859 = vand.u32 %v40, 4294901760
  %860 = vmatmul.mubr.f32.gmra.mrb[0].mxu0 %v859
  %v861 = vpop.f32.mrb[0].mxu0
  %v862 = vadd.f32 %v699, %v861
  %v863 = vpop.f32.mrb[0].mxu0
  %864 = vmatprep.mubr.f32.mxu0 0.0
  %v865 = vand.u32 %v41, 4294901760
  %866 = vmatmul.mubr.f32.gmra.mrb[0].mxu0 %v865
  %v867 = vpop.f32.mrb[0].mxu0
  %v868 = vadd.f32 %v707, %v867
  %v869 = vpop.f32.mrb[0].mxu0
  %870 = vdwg.mxu0
  %871 = vmatprep.subr.mxu0 0.0
  %v872 = vand.u32 %v42, 4294901760
  %873 = vmatpush1.msra.mxu0 %v872
  %874 = vmatprep.subr.mxu0 0.0
  %v875 = vand.u32 %v43, 4294901760
  %876 = vmatpush1.msra.mxu0 %v875
  %877 = vmatprep.subr.mxu0 0.0
  %v878 = vand.u32 %v44, 4294901760
  %879 = vmatpush1.msra.mxu0 %v878
  %880 = vmatprep.subr.mxu0 0.0
  %v881 = vand.u32 %v45, 4294901760
  %882 = vmatpush1.msra.mxu0 %v881
  %883 = vmatprep.subr.mxu0 0.0
  %v884 = vand.u32 %v46, 4294901760
  %885 = vmatpush1.msra.mxu0 %v884
  %886 = vmatprep.subr.mxu0 0.0
  %v887 = vand.u32 %v47, 4294901760
  %888 = vmatpush1.msra.mxu0 %v887
  %889 = vmatprep.subr.mxu0 0.0
  %v890 = vand.u32 %v48, 4294901760
  %891 = vmatpush1.msra.mxu0 %v890
  %892 = vmatprep.subr.mxu0 0.0
  %v893 = vand.u32 %v49, 4294901760
  %894 = vmatpush1.msra.mxu0 %v893
  %895 = vmatprep.subr.mxu0 0.0
  %v896 = vand.u32 %v50, 4294901760
  %897 = vmatpush1.msra.mxu0 %v896
  %898 = vmatprep.subr.mxu0 0.0
  %v899 = vand.u32 %v51, 4294901760
  %900 = vmatpush1.msra.mxu0 %v899
  %901 = vmatprep.subr.mxu0 0.0
  %v902 = vand.u32 %v52, 4294901760
  %903 = vmatpush1.msra.mxu0 %v902
  %904 = vmatprep.subr.mxu0 0.0
  %v905 = vand.u32 %v53, 4294901760
  %906 = vmatpush1.msra.mxu0 %v905
  %907 = vmatprep.subr.mxu0 0.0
  %v908 = vand.u32 %v54, 4294901760
  %909 = vmatpush1.msra.mxu0 %v908
  %910 = vmatprep.subr.mxu0 0.0
  %v911 = vand.u32 %v55, 4294901760
  %912 = vmatpush1.msra.mxu0 %v911
  %913 = vmatprep.subr.mxu0 0.0
  %v914 = vand.u32 %v56, 4294901760
  %915 = vmatpush1.msra.mxu0 %v914
  %916 = vmatprep.subr.mxu0 0.0
  %v917 = vand.u32 %v57, 4294901760
  %918 = vmatpush1.msra.mxu0 %v917
  %919 = vmatprep.subr.mxu0 0.0
  %920 = vmatpush1.msra.mxu0 0.0
  %921 = vmatprep.subr.mxu0 0.0
  %922 = vmatpush1.msra.mxu0 0.0
  %923 = vmatprep.subr.mxu0 0.0
  %924 = vmatpush1.msra.mxu0 0.0
  %925 = vmatprep.subr.mxu0 0.0
  %926 = vmatpush1.msra.mxu0 0.0
  %927 = vmatprep.subr.mxu0 0.0
  %928 = vmatpush1.msra.mxu0 0.0
  %929 = vmatprep.subr.mxu0 0.0
  %930 = vmatpush1.msra.mxu0 0.0
  %931 = vmatprep.subr.mxu0 0.0
  %932 = vmatpush1.msra.mxu0 0.0
  %933 = vmatprep.subr.mxu0 0.0
  %934 = vmatpush1.msra.mxu0 0.0
  %935 = vmatprep.subr.mxu0 0.0
  %936 = vmatpush1.msra.mxu0 0.0
  %937 = vmatprep.subr.mxu0 0.0
  %938 = vmatpush1.msra.mxu0 0.0
  %939 = vmatprep.subr.mxu0 0.0
  %940 = vmatpush1.msra.mxu0 0.0
  %941 = vmatprep.subr.mxu0 0.0
  %942 = vmatpush1.msra.mxu0 0.0
  %943 = vmatprep.subr.mxu0 0.0
  %944 = vmatpush1.msra.mxu0 0.0
  %945 = vmatprep.subr.mxu0 0.0
  %946 = vmatpush1.msra.mxu0 0.0
  %947 = vmatprep.subr.mxu0 0.0
  %948 = vmatpush1.msra.mxu0 0.0
  %949 = vmatprep.subr.mxu0 0.0
  %950 = vmatpush1.msra.mxu0 0.0
  %951 = vmatprep.mubr.f32.mxu0 0.0
  %v952 = vand.u32 %v34, 4294901760
  %953 = vmatmul.mubr.f32.gmra.mrb[0].mxu0 %v952
  %v954 = vpop.f32.mrb[0].mxu0
  %v955 = vadd.f32 %v826, %v954
  %v956 = vpop.f32.mrb[0].mxu0
  %957 = vmatprep.mubr.f32.mxu0 0.0
  %v958 = vand.u32 %v35, 4294901760
  %959 = vmatmul.mubr.f32.gmra.mrb[0].mxu0 %v958
  %v960 = vpop.f32.mrb[0].mxu0
  %v961 = vadd.f32 %v832, %v960
  %v962 = vpop.f32.mrb[0].mxu0
  %963 = vmatprep.mubr.f32.mxu0 0.0
  %v964 = vand.u32 %v36, 4294901760
  %965 = vmatmul.mubr.f32.gmra.mrb[0].mxu0 %v964
  %v966 = vpop.f32.mrb[0].mxu0
  %v967 = vadd.f32 %v838, %v966
  %v968 = vpop.f32.mrb[0].mxu0
  %969 = vmatprep.mubr.f32.mxu0 0.0
  %v970 = vand.u32 %v37, 4294901760
  %971 = vmatmul.mubr.f32.gmra.mrb[0].mxu0 %v970
  %v972 = vpop.f32.mrb[0].mxu0
  %v973 = vadd.f32 %v844, %v972
  %v974 = vpop.f32.mrb[0].mxu0
  %975 = vmatprep.mubr.f32.mxu0 0.0
  %v976 = vand.u32 %v38, 4294901760
  %977 = vmatmul.mubr.f32.gmra.mrb[0].mxu0 %v976
  %v978 = vpop.f32.mrb[0].mxu0
  %v979 = vadd.f32 %v850, %v978
  %v980 = vpop.f32.mrb[0].mxu0
  %981 = vmatprep.mubr.f32.mxu0 0.0
  %v982 = vand.u32 %v39, 4294901760
  %983 = vmatmul.mubr.f32.gmra.mrb[0].mxu0 %v982
  %v984 = vpop.f32.mrb[0].mxu0
  %v985 = vadd.f32 %v856, %v984
  %v986 = vpop.f32.mrb[0].mxu0
  %987 = vmatprep.mubr.f32.mxu0 0.0
  %v988 = vand.u32 %v40, 4294901760
  %989 = vmatmul.mubr.f32.gmra.mrb[0].mxu0 %v988
  %v990 = vpop.f32.mrb[0].mxu0
  %v991 = vadd.f32 %v862, %v990
  %v992 = vpop.f32.mrb[0].mxu0
  %993 = vmatprep.mubr.f32.mxu0 0.0
  %v994 = vand.u32 %v41, 4294901760
  %995 = vmatmul.mubr.f32.gmra.mrb[0].mxu0 %v994
  %v996 = vpop.f32.mrb[0].mxu0
  %v997 = vadd.f32 %v868, %v996
  %v998 = vpop.f32.mrb[0].mxu0
  %999 = vdwg.mxu0
  %v1000 = vadd.f32 %v26, %v955
  %v1001 = vadd.f32 %v27, %v961
  %v1002 = vadd.f32 %v28, %v967
  %v1003 = vadd.f32 %v29, %v973
  %v1004 = vadd.f32 %v30, %v979
  %v1005 = vadd.f32 %v31, %v985
  %v1006 = vadd.f32 %v32, %v991
  %v1007 = vadd.f32 %v33, %v997
  %1008 = vst [vmem:[#allocation2] sm:$0xff] %v1000
  %1009 = vst [vmem:[#allocation2 + $0x8] sm:$0xff] %v1001
  %1010 = vst [vmem:[#allocation2 + $0x10] sm:$0xff] %v1002
  %1011 = vst [vmem:[#allocation2 + $0x18] sm:$0xff] %v1003
  %1012 = vst [vmem:[#allocation2 + $0x20] sm:$0xff] %v1004
  %1013 = vst [vmem:[#allocation2 + $0x28] sm:$0xff] %v1005
  %1014 = vst [vmem:[#allocation2 + $0x30] sm:$0xff] %v1006
  %1015 = vst [vmem:[#allocation2 + $0x38] sm:$0xff] %v1007
  // Predicated region
  $region18: #{_lambda_.12} parent=0 // pred_check
    %p1016 = pneg %p14
  $region19: #{_lambda_.12} parent=0 // pred_check_branch
    %1018 = sbr.rel (%p1016) target = $region21
  $region20: #{_lambda_.12} parent=0 // pred_region
    %v1019 = vld [vmem:[#allocation2] sm:$0xff]
    %v1020 = vld [vmem:[#allocation2 + $0x8] sm:$0xff]
    %v1021 = vld [vmem:[#allocation2 + $0x10] sm:$0xff]
    %v1022 = vld [vmem:[#allocation2 + $0x18] sm:$0xff]
    %v1023 = vld [vmem:[#allocation2 + $0x20] sm:$0xff]
    %v1024 = vld [vmem:[#allocation2 + $0x28] sm:$0xff]
    %v1025 = vld [vmem:[#allocation2 + $0x30] sm:$0xff]
    %v1026 = vld [vmem:[#allocation2 + $0x38] sm:$0xff]
    %v1027 = vld [vmem:[%s2] sm:$0x1]
    %v1029 = vlaneseq
    %v1030 = vshrl.u32 %v1029, 7
    %v1031 = vsub.s32 0, %v1030
    %v1032 = vrot.slane %v1027, %v1031
    %v1034 = vadd.f32 %v1019, %v1032
    %v1035 = vadd.f32 %v1020, %v1032
    %v1036 = vadd.f32 %v1021, %v1032
    %v1037 = vadd.f32 %v1022, %v1032
    %v1038 = vadd.f32 %v1023, %v1032
    %v1039 = vadd.f32 %v1024, %v1032
    %v1040 = vadd.f32 %v1025, %v1032
    %v1041 = vadd.f32 %v1026, %v1032
    %v1042 = vmax.f32 %v1034, 0.0
    %v1043 = vmax.f32 %v1035, 0.0
    %v1044 = vmax.f32 %v1036, 0.0
    %v1045 = vmax.f32 %v1037, 0.0
    %v1046 = vmax.f32 %v1038, 0.0
    %v1047 = vmax.f32 %v1039, 0.0
    %v1048 = vmax.f32 %v1040, 0.0
    %v1049 = vmax.f32 %v1041, 0.0
    %1050 = vst [vmem:[%s3] sm:$0xff] %v1042
    %1051 = vst [vmem:[%s3 + $0x8] sm:$0xff] %v1043
    %1052 = vst [vmem:[%s3 + $0x10] sm:$0xff] %v1044
    %1053 = vst [vmem:[%s3 + $0x18] sm:$0xff] %v1045
    %1054 = vst [vmem:[%s3 + $0x20] sm:$0xff] %v1046
    %1055 = vst [vmem:[%s3 + $0x28] sm:$0xff] %v1047
    %1056 = vst [vmem:[%s3 + $0x30] sm:$0xff] %v1048
    %1057 = vst [vmem:[%s3 + $0x38] sm:$0xff] %v1049
  $region21: #{_lambda_.12} parent=0 // pred_fallthru
    _
  // Predicated region
  $region22: #{_lambda_.12} parent=0 // pred_check
    _
  $region23: #{_lambda_.12} parent=0 // pred_check_branch
    %1059 = sbr.rel (0) target = $region25
  $region24: #{_lambda_.12} parent=0 // pred_region
    _
  $region25: #{_lambda_.12} parent=0 // pred_fallthru
    _
  // Predicated region
  $region26: #{_lambda_.12} parent=0 // pred_check
    _
  $region27: #{_lambda_.12} parent=0 // pred_check_branch
    %1061 = sbr.rel (0) target = $region29
  $region28: #{_lambda_.12} parent=0 // pred_region
    _
  $region29: #{_lambda_.12} parent=0 // pred_fallthru
    _

// kernel: _lambda_.13
$region0: #{_lambda_.13}
  #allocation0 [shape = 'u32[]', space=smem, size = 0x4, offset = 0x4, fixed_abs, tag = 'smem constant byte address 0x4 - core index']
  #allocation1 [shape = 'u32[144,128]{1,0:T(1,128)}', space=vmem, size = 0x12000, scoped, tag = 'internal scratch']
  #allocation2 [shape = 'f32[64,128]{1,0:T(8,128)}', space=vmem, size = 0x8000, scoped, tag = 'scratch operand']
  %s0 = inlined_call_operand.vmem [shape: f32[64,128], index: 0, kind: input, shape index: {}]
  %s1 = inlined_call_operand.vmem [shape: f32[128,128], index: 1, kind: input, shape index: {}]
  %s2 = inlined_call_operand.vmem [shape: f32[1,128], index: 2, kind: input, shape index: {}]
  %s3 = inlined_call_operand.vmem [shape: f32[64,128], index: 3, kind: output, shape index: {}]
  %s4 = sld [smem:[#allocation0]]
  $region30: #{_lambda_.13} parent=0
    _
  %s6 = ssub.s32 1, %s4
  %s7 = scalar_select 0, %s6, %s4
  // Predicated region
  $region2: #{_lambda_.13} parent=0 // pred_check
    _
  $region3: #{_lambda_.13} parent=0 // pred_check_branch
    %9 = sbr.rel (0) target = $region5
  $region4: #{_lambda_.13} parent=0 // pred_region
    _
  $region5: #{_lambda_.13} parent=0 // pred_fallthru
    _
  // Predicated region
  $region6: #{_lambda_.13} parent=0 // pred_check
    _
  $region7: #{_lambda_.13} parent=0 // pred_check_branch
    %11 = sbr.rel (0) target = $region9
  $region8: #{_lambda_.13} parent=0 // pred_region
    _
  $region9: #{_lambda_.13} parent=0 // pred_fallthru
    _
  // Predicated region
  $region10: #{_lambda_.13} parent=0 // pred_check
    _
  $region11: #{_lambda_.13} parent=0 // pred_check_branch
    %13 = sbr.rel (0) target = $region13
  $region12: #{_lambda_.13} parent=0 // pred_region
    _
  $region13: #{_lambda_.13} parent=0 // pred_fallthru
    _
  %p14 = scmp.eq.s32.totalorder 0, 0
  // Predicated region
  $region14: #{_lambda_.13} parent=0 // pred_check
    %p15 = pneg %p14
  $region15: #{_lambda_.13} parent=0 // pred_check_branch
    %17 = sbr.rel (%p15) target = $region17
  $region16: #{_lambda_.13} parent=0 // pred_region
    %18 = vst [vmem:[#allocation2] sm:$0xff] 0.0
    %19 = vst [vmem:[#allocation2 + $0x8] sm:$0xff] 0.0
    %20 = vst [vmem:[#allocation2 + $0x10] sm:$0xff] 0.0
    %21 = vst [vmem:[#allocation2 + $0x18] sm:$0xff] 0.0
    %22 = vst [vmem:[#allocation2 + $0x20] sm:$0xff] 0.0
    %23 = vst [vmem:[#allocation2 + $0x28] sm:$0xff] 0.0
    %24 = vst [vmem:[#allocation2 + $0x30] sm:$0xff] 0.0
    %25 = vst [vmem:[#allocation2 + $0x38] sm:$0xff] 0.0
  $region17: #{_lambda_.13} parent=0 // pred_fallthru
    _
  %v26 = vld [vmem:[#allocation2] sm:$0xff]
  %v27 = vld [vmem:[#allocation2 + $0x8] sm:$0xff]
  %v28 = vld [vmem:[#allocation2 + $0x10] sm:$0xff]
  %v29 = vld [vmem:[#allocation2 + $0x18] sm:$0xff]
  %v30 = vld [vmem:[#allocation2 + $0x20] sm:$0xff]
  %v31 = vld [vmem:[#allocation2 + $0x28] sm:$0xff]
  %v32 = vld [vmem:[#allocation2 + $0x30] sm:$0xff]
  %v33 = vld [vmem:[#allocation2 + $0x38] sm:$0xff]
  %v34 = vld [vmem:[%s0] sm:$0xff]
  %v35 = vld [vmem:[%s0 + $0x8] sm:$0xff]
  %v36 = vld [vmem:[%s0 + $0x10] sm:$0xff]
  %v37 = vld [vmem:[%s0 + $0x18] sm:$0xff]
  %v38 = vld [vmem:[%s0 + $0x20] sm:$0xff]
  %v39 = vld [vmem:[%s0 + $0x28] sm:$0xff]
  %v40 = vld [vmem:[%s0 + $0x30] sm:$0xff]
  %v41 = vld [vmem:[%s0 + $0x38] sm:$0xff]
  %v42 = vld [vmem:[%s1] sm:$0xff]
  %v43 = vld [vmem:[%s1 + $0x8] sm:$0xff]
  %v44 = vld [vmem:[%s1 + $0x10] sm:$0xff]
  %v45 = vld [vmem:[%s1 + $0x18] sm:$0xff]
  %v46 = vld [vmem:[%s1 + $0x20] sm:$0xff]
  %v47 = vld [vmem:[%s1 + $0x28] sm:$0xff]
  %v48 = vld [vmem:[%s1 + $0x30] sm:$0xff]
  %v49 = vld [vmem:[%s1 + $0x38] sm:$0xff]
  %v50 = vld [vmem:[%s1 + $0x40] sm:$0xff]
  %v51 = vld [vmem:[%s1 + $0x48] sm:$0xff]
  %v52 = vld [vmem:[%s1 + $0x50] sm:$0xff]
  %v53 = vld [vmem:[%s1 + $0x58] sm:$0xff]
  %v54 = vld [vmem:[%s1 + $0x60] sm:$0xff]
  %v55 = vld [vmem:[%s1 + $0x68] sm:$0xff]
  %v56 = vld [vmem:[%s1 + $0x70] sm:$0xff]
  %v57 = vld [vmem:[%s1 + $0x78] sm:$0xff]
  %58 = vmatprep.subr.mxu0 0.0
  %v59 = vand.u32 %v42, 4294901760
  %60 = vmatpush1.msra.mxu0 %v59
  %61 = vmatprep.subr.mxu0 0.0
  %v62 = vand.u32 %v43, 4294901760
  %63 = vmatpush1.msra.mxu0 %v62
  %64 = vmatprep.subr.mxu0 0.0
  %v65 = vand.u32 %v44, 4294901760
  %66 = vmatpush1.msra.mxu0 %v65
  %67 = vmatprep.subr.mxu0 0.0
  %v68 = vand.u32 %v45, 4294901760
  %69 = vmatpush1.msra.mxu0 %v68
  %70 = vmatprep.subr.mxu0 0.0
  %v71 = vand.u32 %v46, 4294901760
  %72 = vmatpush1.msra.mxu0 %v71
  %73 = vmatprep.subr.mxu0 0.0
  %v74 = vand.u32 %v47, 4294901760
  %75 = vmatpush1.msra.mxu0 %v74
  %76 = vmatprep.subr.mxu0 0.0
  %v77 = vand.u32 %v48, 4294901760
  %78 = vmatpush1.msra.mxu0 %v77
  %79 = vmatprep.subr.mxu0 0.0
  %v80 = vand.u32 %v49, 4294901760
  %81 = vmatpush1.msra.mxu0 %v80
  %82 = vmatprep.subr.mxu0 0.0
  %v83 = vand.u32 %v50, 4294901760
  %84 = vmatpush1.msra.mxu0 %v83
  %85 = vmatprep.subr.mxu0 0.0
  %v86 = vand.u32 %v51, 4294901760
  %87 = vmatpush1.msra.mxu0 %v86
  %88 = vmatprep.subr.mxu0 0.0
  %v89 = vand.u32 %v52, 4294901760
  %90 = vmatpush1.msra.mxu0 %v89
  %91 = vmatprep.subr.mxu0 0.0
  %v92 = vand.u32 %v53, 4294901760
  %93 = vmatpush1.msra.mxu0 %v92
  %94 = vmatprep.subr.mxu0 0.0
  %v95 = vand.u32 %v54, 4294901760
  %96 = vmatpush1.msra.mxu0 %v95
  %97 = vmatprep.subr.mxu0 0.0
  %v98 = vand.u32 %v55, 4294901760
  %99 = vmatpush1.msra.mxu0 %v98
  %100 = vmatprep.subr.mxu0 0.0
  %v101 = vand.u32 %v56, 4294901760
  %102 = vmatpush1.msra.mxu0 %v101
  %103 = vmatprep.subr.mxu0 0.0
  %v104 = vand.u32 %v57, 4294901760
  %105 = vmatpush1.msra.mxu0 %v104
  %106 = vmatprep.subr.mxu0 0.0
  %107 = vmatpush1.msra.mxu0 0.0
  %108 = vmatprep.subr.mxu0 0.0
  %109 = vmatpush1.msra.mxu0 0.0
  %110 = vmatprep.subr.mxu0 0.0
  %111 = vmatpush1.msra.mxu0 0.0
  %112 = vmatprep.subr.mxu0 0.0
  %113 = vmatpush1.msra.mxu0 0.0
  %114 = vmatprep.subr.mxu0 0.0
  %115 = vmatpush1.msra.mxu0 0.0
  %116 = vmatprep.subr.mxu0 0.0
  %117 = vmatpush1.msra.mxu0 0.0
  %118 = vmatprep.subr.mxu0 0.0
  %119 = vmatpush1.msra.mxu0 0.0
  %120 = vmatprep.subr.mxu0 0.0
  %121 = vmatpush1.msra.mxu0 0.0
  %122 = vmatprep.subr.mxu0 0.0
  %123 = vmatpush1.msra.mxu0 0.0
  %124 = vmatprep.subr.mxu0 0.0
  %125 = vmatpush1.msra.mxu0 0.0
  %126 = vmatprep.subr.mxu0 0.0
  %127 = vmatpush1.msra.mxu0 0.0
  %128 = vmatprep.subr.mxu0 0.0
  %129 = vmatpush1.msra.mxu0 0.0
  %130 = vmatprep.subr.mxu0 0.0
  %131 = vmatpush1.msra.mxu0 0.0
  %132 = vmatprep.subr.mxu0 0.0
  %133 = vmatpush1.msra.mxu0 0.0
  %134 = vmatprep.subr.mxu0 0.0
  %135 = vmatpush1.msra.mxu0 0.0
  %136 = vmatprep.subr.mxu0 0.0
  %137 = vmatpush1.msra.mxu0 0.0
  %138 = vmatprep.mubr.f32.mxu0 0.0
  %v139 = vand.u32 %v34, 4294901760
  %v140 = vsub.f32 %v34, %v139
  %v141 = vand.u32 %v140, 4294901760
  %v142 = vsub.f32 %v140, %v141
  %v143 = vand.u32 %v142, 4294901760
  %144 = vmatmul.mubr.f32.gmra.mrb[0].mxu0 %v143
  %v145 = vpop.f32.mrb[0].mxu0
  %v146 = vadd.f32 0.0, %v145
  %v147 = vpop.f32.mrb[0].mxu0
  %148 = vmatprep.mubr.f32.mxu0 0.0
  %v149 = vand.u32 %v35, 4294901760
  %v150 = vsub.f32 %v35, %v149
  %v151 = vand.u32 %v150, 4294901760
  %v152 = vsub.f32 %v150, %v151
  %v153 = vand.u32 %v152, 4294901760
  %154 = vmatmul.mubr.f32.gmra.mrb[0].mxu0 %v153
  %v155 = vpop.f32.mrb[0].mxu0
  %v156 = vadd.f32 0.0, %v155
  %v157 = vpop.f32.mrb[0].mxu0
  %158 = vmatprep.mubr.f32.mxu0 0.0
  %v159 = vand.u32 %v36, 4294901760
  %v160 = vsub.f32 %v36, %v159
  %v161 = vand.u32 %v160, 4294901760
  %v162 = vsub.f32 %v160, %v161
  %v163 = vand.u32 %v162, 4294901760
  %164 = vmatmul.mubr.f32.gmra.mrb[0].mxu0 %v163
  %v165 = vpop.f32.mrb[0].mxu0
  %v166 = vadd.f32 0.0, %v165
  %v167 = vpop.f32.mrb[0].mxu0
  %168 = vmatprep.mubr.f32.mxu0 0.0
  %v169 = vand.u32 %v37, 4294901760
  %v170 = vsub.f32 %v37, %v169
  %v171 = vand.u32 %v170, 4294901760
  %v172 = vsub.f32 %v170, %v171
  %v173 = vand.u32 %v172, 4294901760
  %174 = vmatmul.mubr.f32.gmra.mrb[0].mxu0 %v173
  %v175 = vpop.f32.mrb[0].mxu0
  %v176 = vadd.f32 0.0, %v175
  %v177 = vpop.f32.mrb[0].mxu0
  %178 = vmatprep.mubr.f32.mxu0 0.0
  %v179 = vand.u32 %v38, 4294901760
  %v180 = vsub.f32 %v38, %v179
  %v181 = vand.u32 %v180, 4294901760
  %v182 = vsub.f32 %v180, %v181
  %v183 = vand.u32 %v182, 4294901760
  %184 = vmatmul.mubr.f32.gmra.mrb[0].mxu0 %v183
  %v185 = vpop.f32.mrb[0].mxu0
  %v186 = vadd.f32 0.0, %v185
  %v187 = vpop.f32.mrb[0].mxu0
  %188 = vmatprep.mubr.f32.mxu0 0.0
  %v189 = vand.u32 %v39, 4294901760
  %v190 = vsub.f32 %v39, %v189
  %v191 = vand.u32 %v190, 4294901760
  %v192 = vsub.f32 %v190, %v191
  %v193 = vand.u32 %v192, 4294901760
  %194 = vmatmul.mubr.f32.gmra.mrb[0].mxu0 %v193
  %v195 = vpop.f32.mrb[0].mxu0
  %v196 = vadd.f32 0.0, %v195
  %v197 = vpop.f32.mrb[0].mxu0
  %198 = vmatprep.mubr.f32.mxu0 0.0
  %v199 = vand.u32 %v40, 4294901760
  %v200 = vsub.f32 %v40, %v199
  %v201 = vand.u32 %v200, 4294901760
  %v202 = vsub.f32 %v200, %v201
  %v203 = vand.u32 %v202, 4294901760
  %204 = vmatmul.mubr.f32.gmra.mrb[0].mxu0 %v203
  %v205 = vpop.f32.mrb[0].mxu0
  %v206 = vadd.f32 0.0, %v205
  %v207 = vpop.f32.mrb[0].mxu0
  %208 = vmatprep.mubr.f32.mxu0 0.0
  %v209 = vand.u32 %v41, 4294901760
  %v210 = vsub.f32 %v41, %v209
  %v211 = vand.u32 %v210, 4294901760
  %v212 = vsub.f32 %v210, %v211
  %v213 = vand.u32 %v212, 4294901760
  %214 = vmatmul.mubr.f32.gmra.mrb[0].mxu0 %v213
  %v215 = vpop.f32.mrb[0].mxu0
  %v216 = vadd.f32 0.0, %v215
  %v217 = vpop.f32.mrb[0].mxu0
  %218 = vdwg.mxu0
  %219 = vmatprep.subr.mxu0 0.0
  %v220 = vand.u32 %v42, 4294901760
  %v221 = vsub.f32 %v42, %v220
  %v222 = vand.u32 %v221, 4294901760
  %v223 = vsub.f32 %v221, %v222
  %v224 = vand.u32 %v223, 4294901760
  %225 = vmatpush1.msra.mxu0 %v224
  %226 = vmatprep.subr.mxu0 0.0
  %v227 = vand.u32 %v43, 4294901760
  %v228 = vsub.f32 %v43, %v227
  %v229 = vand.u32 %v228, 4294901760
  %v230 = vsub.f32 %v228, %v229
  %v231 = vand.u32 %v230, 4294901760
  %232 = vmatpush1.msra.mxu0 %v231
  %233 = vmatprep.subr.mxu0 0.0
  %v234 = vand.u32 %v44, 4294901760
  %v235 = vsub.f32 %v44, %v234
  %v236 = vand.u32 %v235, 4294901760
  %v237 = vsub.f32 %v235, %v236
  %v238 = vand.u32 %v237, 4294901760
  %239 = vmatpush1.msra.mxu0 %v238
  %240 = vmatprep.subr.mxu0 0.0
  %v241 = vand.u32 %v45, 4294901760
  %v242 = vsub.f32 %v45, %v241
  %v243 = vand.u32 %v242, 4294901760
  %v244 = vsub.f32 %v242, %v243
  %v245 = vand.u32 %v244, 4294901760
  %246 = vmatpush1.msra.mxu0 %v245
  %247 = vmatprep.subr.mxu0 0.0
  %v248 = vand.u32 %v46, 4294901760
  %v249 = vsub.f32 %v46, %v248
  %v250 = vand.u32 %v249, 4294901760
  %v251 = vsub.f32 %v249, %v250
  %v252 = vand.u32 %v251, 4294901760
  %253 = vmatpush1.msra.mxu0 %v252
  %254 = vmatprep.subr.mxu0 0.0
  %v255 = vand.u32 %v47, 4294901760
  %v256 = vsub.f32 %v47, %v255
  %v257 = vand.u32 %v256, 4294901760
  %v258 = vsub.f32 %v256, %v257
  %v259 = vand.u32 %v258, 4294901760
  %260 = vmatpush1.msra.mxu0 %v259
  %261 = vmatprep.subr.mxu0 0.0
  %v262 = vand.u32 %v48, 4294901760
  %v263 = vsub.f32 %v48, %v262
  %v264 = vand.u32 %v263, 4294901760
  %v265 = vsub.f32 %v263, %v264
  %v266 = vand.u32 %v265, 4294901760
  %267 = vmatpush1.msra.mxu0 %v266
  %268 = vmatprep.subr.mxu0 0.0
  %v269 = vand.u32 %v49, 4294901760
  %v270 = vsub.f32 %v49, %v269
  %v271 = vand.u32 %v270, 4294901760
  %v272 = vsub.f32 %v270, %v271
  %v273 = vand.u32 %v272, 4294901760
  %274 = vmatpush1.msra.mxu0 %v273
  %275 = vmatprep.subr.mxu0 0.0
  %v276 = vand.u32 %v50, 4294901760
  %v277 = vsub.f32 %v50, %v276
  %v278 = vand.u32 %v277, 4294901760
  %v279 = vsub.f32 %v277, %v278
  %v280 = vand.u32 %v279, 4294901760
  %281 = vmatpush1.msra.mxu0 %v280
  %282 = vmatprep.subr.mxu0 0.0
  %v283 = vand.u32 %v51, 4294901760
  %v284 = vsub.f32 %v51, %v283
  %v285 = vand.u32 %v284, 4294901760
  %v286 = vsub.f32 %v284, %v285
  %v287 = vand.u32 %v286, 4294901760
  %288 = vmatpush1.msra.mxu0 %v287
  %289 = vmatprep.subr.mxu0 0.0
  %v290 = vand.u32 %v52, 4294901760
  %v291 = vsub.f32 %v52, %v290
  %v292 = vand.u32 %v291, 4294901760
  %v293 = vsub.f32 %v291, %v292
  %v294 = vand.u32 %v293, 4294901760
  %295 = vmatpush1.msra.mxu0 %v294
  %296 = vmatprep.subr.mxu0 0.0
  %v297 = vand.u32 %v53, 4294901760
  %v298 = vsub.f32 %v53, %v297
  %v299 = vand.u32 %v298, 4294901760
  %v300 = vsub.f32 %v298, %v299
  %v301 = vand.u32 %v300, 4294901760
  %302 = vmatpush1.msra.mxu0 %v301
  %303 = vmatprep.subr.mxu0 0.0
  %v304 = vand.u32 %v54, 4294901760
  %v305 = vsub.f32 %v54, %v304
  %v306 = vand.u32 %v305, 4294901760
  %v307 = vsub.f32 %v305, %v306
  %v308 = vand.u32 %v307, 4294901760
  %309 = vmatpush1.msra.mxu0 %v308
  %310 = vmatprep.subr.mxu0 0.0
  %v311 = vand.u32 %v55, 4294901760
  %v312 = vsub.f32 %v55, %v311
  %v313 = vand.u32 %v312, 4294901760
  %v314 = vsub.f32 %v312, %v313
  %v315 = vand.u32 %v314, 4294901760
  %316 = vmatpush1.msra.mxu0 %v315
  %317 = vmatprep.subr.mxu0 0.0
  %v318 = vand.u32 %v56, 4294901760
  %v319 = vsub.f32 %v56, %v318
  %v320 = vand.u32 %v319, 4294901760
  %v321 = vsub.f32 %v319, %v320
  %v322 = vand.u32 %v321, 4294901760
  %323 = vmatpush1.msra.mxu0 %v322
  %324 = vmatprep.subr.mxu0 0.0
  %v325 = vand.u32 %v57, 4294901760
  %v326 = vsub.f32 %v57, %v325
  %v327 = vand.u32 %v326, 4294901760
  %v328 = vsub.f32 %v326, %v327
  %v329 = vand.u32 %v328, 4294901760
  %330 = vmatpush1.msra.mxu0 %v329
  %331 = vmatprep.subr.mxu0 0.0
  %332 = vmatpush1.msra.mxu0 0.0
  %333 = vmatprep.subr.mxu0 0.0
  %334 = vmatpush1.msra.mxu0 0.0
  %335 = vmatprep.subr.mxu0 0.0
  %336 = vmatpush1.msra.mxu0 0.0
  %337 = vmatprep.subr.mxu0 0.0
  %338 = vmatpush1.msra.mxu0 0.0
  %339 = vmatprep.subr.mxu0 0.0
  %340 = vmatpush1.msra.mxu0 0.0
  %341 = vmatprep.subr.mxu0 0.0
  %342 = vmatpush1.msra.mxu0 0.0
  %343 = vmatprep.subr.mxu0 0.0
  %344 = vmatpush1.msra.mxu0 0.0
  %345 = vmatprep.subr.mxu0 0.0
  %346 = vmatpush1.msra.mxu0 0.0
  %347 = vmatprep.subr.mxu0 0.0
  %348 = vmatpush1.msra.mxu0 0.0
  %349 = vmatprep.subr.mxu0 0.0
  %350 = vmatpush1.msra.mxu0 0.0
  %351 = vmatprep.subr.mxu0 0.0
  %352 = vmatpush1.msra.mxu0 0.0
  %353 = vmatprep.subr.mxu0 0.0
  %354 = vmatpush1.msra.mxu0 0.0
  %355 = vmatprep.subr.mxu0 0.0
  %356 = vmatpush1.msra.mxu0 0.0
  %357 = vmatprep.subr.mxu0 0.0
  %358 = vmatpush1.msra.mxu0 0.0
  %359 = vmatprep.subr.mxu0 0.0
  %360 = vmatpush1.msra.mxu0 0.0
  %361 = vmatprep.subr.mxu0 0.0
  %362 = vmatpush1.msra.mxu0 0.0
  %363 = vmatprep.mubr.f32.mxu0 0.0
  %v364 = vand.u32 %v34, 4294901760
  %365 = vmatmul.mubr.f32.gmra.mrb[0].mxu0 %v364
  %v366 = vpop.f32.mrb[0].mxu0
  %v367 = vadd.f32 %v146, %v366
  %v368 = vpop.f32.mrb[0].mxu0
  %369 = vmatprep.mubr.f32.mxu0 0.0
  %v370 = vand.u32 %v35, 4294901760
  %371 = vmatmul.mubr.f32.gmra.mrb[0].mxu0 %v370
  %v372 = vpop.f32.mrb[0].mxu0
  %v373 = vadd.f32 %v156, %v372
  %v374 = vpop.f32.mrb[0].mxu0
  %375 = vmatprep.mubr.f32.mxu0 0.0
  %v376 = vand.u32 %v36, 4294901760
  %377 = vmatmul.mubr.f32.gmra.mrb[0].mxu0 %v376
  %v378 = vpop.f32.mrb[0].mxu0
  %v379 = vadd.f32 %v166, %v378
  %v380 = vpop.f32.mrb[0].mxu0
  %381 = vmatprep.mubr.f32.mxu0 0.0
  %v382 = vand.u32 %v37, 4294901760
  %383 = vmatmul.mubr.f32.gmra.mrb[0].mxu0 %v382
  %v384 = vpop.f32.mrb[0].mxu0
  %v385 = vadd.f32 %v176, %v384
  %v386 = vpop.f32.mrb[0].mxu0
  %387 = vmatprep.mubr.f32.mxu0 0.0
  %v388 = vand.u32 %v38, 4294901760
  %389 = vmatmul.mubr.f32.gmra.mrb[0].mxu0 %v388
  %v390 = vpop.f32.mrb[0].mxu0
  %v391 = vadd.f32 %v186, %v390
  %v392 = vpop.f32.mrb[0].mxu0
  %393 = vmatprep.mubr.f32.mxu0 0.0
  %v394 = vand.u32 %v39, 4294901760
  %395 = vmatmul.mubr.f32.gmra.mrb[0].mxu0 %v394
  %v396 = vpop.f32.mrb[0].mxu0
  %v397 = vadd.f32 %v196, %v396
  %v398 = vpop.f32.mrb[0].mxu0
  %399 = vmatprep.mubr.f32.mxu0 0.0
  %v400 = vand.u32 %v40, 4294901760
  %401 = vmatmul.mubr.f32.gmra.mrb[0].mxu0 %v400
  %v402 = vpop.f32.mrb[0].mxu0
  %v403 = vadd.f32 %v206, %v402
  %v404 = vpop.f32.mrb[0].mxu0
  %405 = vmatprep.mubr.f32.mxu0 0.0
  %v406 = vand.u32 %v41, 4294901760
  %407 = vmatmul.mubr.f32.gmra.mrb[0].mxu0 %v406
  %v408 = vpop.f32.mrb[0].mxu0
  %v409 = vadd.f32 %v216, %v408
  %v410 = vpop.f32.mrb[0].mxu0
  %411 = vdwg.mxu0
  %412 = vmatprep.subr.mxu0 0.0
  %v413 = vand.u32 %v42, 4294901760
  %v414 = vsub.f32 %v42, %v413
  %415 = vmatpush1.msra.mxu0 %v414
  %416 = vmatprep.subr.mxu0 0.0
  %v417 = vand.u32 %v43, 4294901760
  %v418 = vsub.f32 %v43, %v417
  %419 = vmatpush1.msra.mxu0 %v418
  %420 = vmatprep.subr.mxu0 0.0
  %v421 = vand.u32 %v44, 4294901760
  %v422 = vsub.f32 %v44, %v421
  %423 = vmatpush1.msra.mxu0 %v422
  %424 = vmatprep.subr.mxu0 0.0
  %v425 = vand.u32 %v45, 4294901760
  %v426 = vsub.f32 %v45, %v425
  %427 = vmatpush1.msra.mxu0 %v426
  %428 = vmatprep.subr.mxu0 0.0
  %v429 = vand.u32 %v46, 4294901760
  %v430 = vsub.f32 %v46, %v429
  %431 = vmatpush1.msra.mxu0 %v430
  %432 = vmatprep.subr.mxu0 0.0
  %v433 = vand.u32 %v47, 4294901760
  %v434 = vsub.f32 %v47, %v433
  %435 = vmatpush1.msra.mxu0 %v434
  %436 = vmatprep.subr.mxu0 0.0
  %v437 = vand.u32 %v48, 4294901760
  %v438 = vsub.f32 %v48, %v437
  %439 = vmatpush1.msra.mxu0 %v438
  %440 = vmatprep.subr.mxu0 0.0
  %v441 = vand.u32 %v49, 4294901760
  %v442 = vsub.f32 %v49, %v441
  %443 = vmatpush1.msra.mxu0 %v442
  %444 = vmatprep.subr.mxu0 0.0
  %v445 = vand.u32 %v50, 4294901760
  %v446 = vsub.f32 %v50, %v445
  %447 = vmatpush1.msra.mxu0 %v446
  %448 = vmatprep.subr.mxu0 0.0
  %v449 = vand.u32 %v51, 4294901760
  %v450 = vsub.f32 %v51, %v449
  %451 = vmatpush1.msra.mxu0 %v450
  %452 = vmatprep.subr.mxu0 0.0
  %v453 = vand.u32 %v52, 4294901760
  %v454 = vsub.f32 %v52, %v453
  %455 = vmatpush1.msra.mxu0 %v454
  %456 = vmatprep.subr.mxu0 0.0
  %v457 = vand.u32 %v53, 4294901760
  %v458 = vsub.f32 %v53, %v457
  %459 = vmatpush1.msra.mxu0 %v458
  %460 = vmatprep.subr.mxu0 0.0
  %v461 = vand.u32 %v54, 4294901760
  %v462 = vsub.f32 %v54, %v461
  %463 = vmatpush1.msra.mxu0 %v462
  %464 = vmatprep.subr.mxu0 0.0
  %v465 = vand.u32 %v55, 4294901760
  %v466 = vsub.f32 %v55, %v465
  %467 = vmatpush1.msra.mxu0 %v466
  %468 = vmatprep.subr.mxu0 0.0
  %v469 = vand.u32 %v56, 4294901760
  %v470 = vsub.f32 %v56, %v469
  %471 = vmatpush1.msra.mxu0 %v470
  %472 = vmatprep.subr.mxu0 0.0
  %v473 = vand.u32 %v57, 4294901760
  %v474 = vsub.f32 %v57, %v473
  %475 = vmatpush1.msra.mxu0 %v474
  %476 = vmatprep.subr.mxu0 0.0
  %477 = vmatpush1.msra.mxu0 0.0
  %478 = vmatprep.subr.mxu0 0.0
  %479 = vmatpush1.msra.mxu0 0.0
  %480 = vmatprep.subr.mxu0 0.0
  %481 = vmatpush1.msra.mxu0 0.0
  %482 = vmatprep.subr.mxu0 0.0
  %483 = vmatpush1.msra.mxu0 0.0
  %484 = vmatprep.subr.mxu0 0.0
  %485 = vmatpush1.msra.mxu0 0.0
  %486 = vmatprep.subr.mxu0 0.0
  %487 = vmatpush1.msra.mxu0 0.0
  %488 = vmatprep.subr.mxu0 0.0
  %489 = vmatpush1.msra.mxu0 0.0
  %490 = vmatprep.subr.mxu0 0.0
  %491 = vmatpush1.msra.mxu0 0.0
  %492 = vmatprep.subr.mxu0 0.0
  %493 = vmatpush1.msra.mxu0 0.0
  %494 = vmatprep.subr.mxu0 0.0
  %495 = vmatpush1.msra.mxu0 0.0
  %496 = vmatprep.subr.mxu0 0.0
  %497 = vmatpush1.msra.mxu0 0.0
  %498 = vmatprep.subr.mxu0 0.0
  %499 = vmatpush1.msra.mxu0 0.0
  %500 = vmatprep.subr.mxu0 0.0
  %501 = vmatpush1.msra.mxu0 0.0
  %502 = vmatprep.subr.mxu0 0.0
  %503 = vmatpush1.msra.mxu0 0.0
  %504 = vmatprep.subr.mxu0 0.0
  %505 = vmatpush1.msra.mxu0 0.0
  %506 = vmatprep.subr.mxu0 0.0
  %507 = vmatpush1.msra.mxu0 0.0
  %508 = vmatprep.mubr.f32.mxu0 0.0
  %v509 = vand.u32 %v34, 4294901760
  %v510 = vsub.f32 %v34, %v509
  %511 = vmatmul.mubr.f32.gmra.mrb[0].mxu0 %v510
  %v512 = vpop.f32.mrb[0].mxu0
  %v513 = vadd.f32 %v367, %v512
  %v514 = vpop.f32.mrb[0].mxu0
  %515 = vmatprep.mubr.f32.mxu0 0.0
  %v516 = vand.u32 %v35, 4294901760
  %v517 = vsub.f32 %v35, %v516
  %518 = vmatmul.mubr.f32.gmra.mrb[0].mxu0 %v517
  %v519 = vpop.f32.mrb[0].mxu0
  %v520 = vadd.f32 %v373, %v519
  %v521 = vpop.f32.mrb[0].mxu0
  %522 = vmatprep.mubr.f32.mxu0 0.0
  %v523 = vand.u32 %v36, 4294901760
  %v524 = vsub.f32 %v36, %v523
  %525 = vmatmul.mubr.f32.gmra.mrb[0].mxu0 %v524
  %v526 = vpop.f32.mrb[0].mxu0
  %v527 = vadd.f32 %v379, %v526
  %v528 = vpop.f32.mrb[0].mxu0
  %529 = vmatprep.mubr.f32.mxu0 0.0
  %v530 = vand.u32 %v37, 4294901760
  %v531 = vsub.f32 %v37, %v530
  %532 = vmatmul.mubr.f32.gmra.mrb[0].mxu0 %v531
  %v533 = vpop.f32.mrb[0].mxu0
  %v534 = vadd.f32 %v385, %v533
  %v535 = vpop.f32.mrb[0].mxu0
  %536 = vmatprep.mubr.f32.mxu0 0.0
  %v537 = vand.u32 %v38, 4294901760
  %v538 = vsub.f32 %v38, %v537
  %539 = vmatmul.mubr.f32.gmra.mrb[0].mxu0 %v538
  %v540 = vpop.f32.mrb[0].mxu0
  %v541 = vadd.f32 %v391, %v540
  %v542 = vpop.f32.mrb[0].mxu0
  %543 = vmatprep.mubr.f32.mxu0 0.0
  %v544 = vand.u32 %v39, 4294901760
  %v545 = vsub.f32 %v39, %v544
  %546 = vmatmul.mubr.f32.gmra.mrb[0].mxu0 %v545
  %v547 = vpop.f32.mrb[0].mxu0
  %v548 = vadd.f32 %v397, %v547
  %v549 = vpop.f32.mrb[0].mxu0
  %550 = vmatprep.mubr.f32.mxu0 0.0
  %v551 = vand.u32 %v40, 4294901760
  %v552 = vsub.f32 %v40, %v551
  %553 = vmatmul.mubr.f32.gmra.mrb[0].mxu0 %v552
  %v554 = vpop.f32.mrb[0].mxu0
  %v555 = vadd.f32 %v403, %v554
  %v556 = vpop.f32.mrb[0].mxu0
  %557 = vmatprep.mubr.f32.mxu0 0.0
  %v558 = vand.u32 %v41, 4294901760
  %v559 = vsub.f32 %v41, %v558
  %560 = vmatmul.mubr.f32.gmra.mrb[0].mxu0 %v559
  %v561 = vpop.f32.mrb[0].mxu0
  %v562 = vadd.f32 %v409, %v561
  %v563 = vpop.f32.mrb[0].mxu0
  %564 = vdwg.mxu0
  %565 = vmatprep.subr.mxu0 0.0
  %v566 = vand.u32 %v42, 4294901760
  %567 = vmatpush1.msra.mxu0 %v566
  %568 = vmatprep.subr.mxu0 0.0
  %v569 = vand.u32 %v43, 4294901760
  %570 = vmatpush1.msra.mxu0 %v569
  %571 = vmatprep.subr.mxu0 0.0
  %v572 = vand.u32 %v44, 4294901760
  %573 = vmatpush1.msra.mxu0 %v572
  %574 = vmatprep.subr.mxu0 0.0
  %v575 = vand.u32 %v45, 4294901760
  %576 = vmatpush1.msra.mxu0 %v575
  %577 = vmatprep.subr.mxu0 0.0
  %v578 = vand.u32 %v46, 4294901760
  %579 = vmatpush1.msra.mxu0 %v578
  %580 = vmatprep.subr.mxu0 0.0
  %v581 = vand.u32 %v47, 4294901760
  %582 = vmatpush1.msra.mxu0 %v581
  %583 = vmatprep.subr.mxu0 0.0
  %v584 = vand.u32 %v48, 4294901760
  %585 = vmatpush1.msra.mxu0 %v584
  %586 = vmatprep.subr.mxu0 0.0
  %v587 = vand.u32 %v49, 4294901760
  %588 = vmatpush1.msra.mxu0 %v587
  %589 = vmatprep.subr.mxu0 0.0
  %v590 = vand.u32 %v50, 4294901760
  %591 = vmatpush1.msra.mxu0 %v590
  %592 = vmatprep.subr.mxu0 0.0
  %v593 = vand.u32 %v51, 4294901760
  %594 = vmatpush1.msra.mxu0 %v593
  %595 = vmatprep.subr.mxu0 0.0
  %v596 = vand.u32 %v52, 4294901760
  %597 = vmatpush1.msra.mxu0 %v596
  %598 = vmatprep.subr.mxu0 0.0
  %v599 = vand.u32 %v53, 4294901760
  %600 = vmatpush1.msra.mxu0 %v599
  %601 = vmatprep.subr.mxu0 0.0
  %v602 = vand.u32 %v54, 4294901760
  %603 = vmatpush1.msra.mxu0 %v602
  %604 = vmatprep.subr.mxu0 0.0
  %v605 = vand.u32 %v55, 4294901760
  %606 = vmatpush1.msra.mxu0 %v605
  %607 = vmatprep.subr.mxu0 0.0
  %v608 = vand.u32 %v56, 4294901760
  %609 = vmatpush1.msra.mxu0 %v608
  %610 = vmatprep.subr.mxu0 0.0
  %v611 = vand.u32 %v57, 4294901760
  %612 = vmatpush1.msra.mxu0 %v611
  %613 = vmatprep.subr.mxu0 0.0
  %614 = vmatpush1.msra.mxu0 0.0
  %615 = vmatprep.subr.mxu0 0.0
  %616 = vmatpush1.msra.mxu0 0.0
  %617 = vmatprep.subr.mxu0 0.0
  %618 = vmatpush1.msra.mxu0 0.0
  %619 = vmatprep.subr.mxu0 0.0
  %620 = vmatpush1.msra.mxu0 0.0
  %621 = vmatprep.subr.mxu0 0.0
  %622 = vmatpush1.msra.mxu0 0.0
  %623 = vmatprep.subr.mxu0 0.0
  %624 = vmatpush1.msra.mxu0 0.0
  %625 = vmatprep.subr.mxu0 0.0
  %626 = vmatpush1.msra.mxu0 0.0
  %627 = vmatprep.subr.mxu0 0.0
  %628 = vmatpush1.msra.mxu0 0.0
  %629 = vmatprep.subr.mxu0 0.0
  %630 = vmatpush1.msra.mxu0 0.0
  %631 = vmatprep.subr.mxu0 0.0
  %632 = vmatpush1.msra.mxu0 0.0
  %633 = vmatprep.subr.mxu0 0.0
  %634 = vmatpush1.msra.mxu0 0.0
  %635 = vmatprep.subr.mxu0 0.0
  %636 = vmatpush1.msra.mxu0 0.0
  %637 = vmatprep.subr.mxu0 0.0
  %638 = vmatpush1.msra.mxu0 0.0
  %639 = vmatprep.subr.mxu0 0.0
  %640 = vmatpush1.msra.mxu0 0.0
  %641 = vmatprep.subr.mxu0 0.0
  %642 = vmatpush1.msra.mxu0 0.0
  %643 = vmatprep.subr.mxu0 0.0
  %644 = vmatpush1.msra.mxu0 0.0
  %645 = vmatprep.mubr.f32.mxu0 0.0
  %v646 = vand.u32 %v34, 4294901760
  %v647 = vsub.f32 %v34, %v646
  %v648 = vand.u32 %v647, 4294901760
  %649 = vmatmul.mubr.f32.gmra.mrb[0].mxu0 %v648
  %v650 = vpop.f32.mrb[0].mxu0
  %v651 = vadd.f32 %v513, %v650
  %v652 = vpop.f32.mrb[0].mxu0
  %653 = vmatprep.mubr.f32.mxu0 0.0
  %v654 = vand.u32 %v35, 4294901760
  %v655 = vsub.f32 %v35, %v654
  %v656 = vand.u32 %v655, 4294901760
  %657 = vmatmul.mubr.f32.gmra.mrb[0].mxu0 %v656
  %v658 = vpop.f32.mrb[0].mxu0
  %v659 = vadd.f32 %v520, %v658
  %v660 = vpop.f32.mrb[0].mxu0
  %661 = vmatprep.mubr.f32.mxu0 0.0
  %v662 = vand.u32 %v36, 4294901760
  %v663 = vsub.f32 %v36, %v662
  %v664 = vand.u32 %v663, 4294901760
  %665 = vmatmul.mubr.f32.gmra.mrb[0].mxu0 %v664
  %v666 = vpop.f32.mrb[0].mxu0
  %v667 = vadd.f32 %v527, %v666
  %v668 = vpop.f32.mrb[0].mxu0
  %669 = vmatprep.mubr.f32.mxu0 0.0
  %v670 = vand.u32 %v37, 4294901760
  %v671 = vsub.f32 %v37, %v670
  %v672 = vand.u32 %v671, 4294901760
  %673 = vmatmul.mubr.f32.gmra.mrb[0].mxu0 %v672
  %v674 = vpop.f32.mrb[0].mxu0
  %v675 = vadd.f32 %v534, %v674
  %v676 = vpop.f32.mrb[0].mxu0
  %677 = vmatprep.mubr.f32.mxu0 0.0
  %v678 = vand.u32 %v38, 4294901760
  %v679 = vsub.f32 %v38, %v678
  %v680 = vand.u32 %v679, 4294901760
  %681 = vmatmul.mubr.f32.gmra.mrb[0].mxu0 %v680
  %v682 = vpop.f32.mrb[0].mxu0
  %v683 = vadd.f32 %v541, %v682
  %v684 = vpop.f32.mrb[0].mxu0
  %685 = vmatprep.mubr.f32.mxu0 0.0
  %v686 = vand.u32 %v39, 4294901760
  %v687 = vsub.f32 %v39, %v686
  %v688 = vand.u32 %v687, 4294901760
  %689 = vmatmul.mubr.f32.gmra.mrb[0].mxu0 %v688
  %v690 = vpop.f32.mrb[0].mxu0
  %v691 = vadd.f32 %v548, %v690
  %v692 = vpop.f32.mrb[0].mxu0
  %693 = vmatprep.mubr.f32.mxu0 0.0
  %v694 = vand.u32 %v40, 4294901760
  %v695 = vsub.f32 %v40, %v694
  %v696 = vand.u32 %v695, 4294901760
  %697 = vmatmul.mubr.f32.gmra.mrb[0].mxu0 %v696
  %v698 = vpop.f32.mrb[0].mxu0
  %v699 = vadd.f32 %v555, %v698
  %v700 = vpop.f32.mrb[0].mxu0
  %701 = vmatprep.mubr.f32.mxu0 0.0
  %v702 = vand.u32 %v41, 4294901760
  %v703 = vsub.f32 %v41, %v702
  %v704 = vand.u32 %v703, 4294901760
  %705 = vmatmul.mubr.f32.gmra.mrb[0].mxu0 %v704
  %v706 = vpop.f32.mrb[0].mxu0
  %v707 = vadd.f32 %v562, %v706
  %v708 = vpop.f32.mrb[0].mxu0
  %709 = vdwg.mxu0
  %710 = vmatprep.subr.mxu0 0.0
  %v711 = vand.u32 %v42, 4294901760
  %v712 = vsub.f32 %v42, %v711
  %v713 = vand.u32 %v712, 4294901760
  %714 = vmatpush1.msra.mxu0 %v713
  %715 = vmatprep.subr.mxu0 0.0
  %v716 = vand.u32 %v43, 4294901760
  %v717 = vsub.f32 %v43, %v716
  %v718 = vand.u32 %v717, 4294901760
  %719 = vmatpush1.msra.mxu0 %v718
  %720 = vmatprep.subr.mxu0 0.0
  %v721 = vand.u32 %v44, 4294901760
  %v722 = vsub.f32 %v44, %v721
  %v723 = vand.u32 %v722, 4294901760
  %724 = vmatpush1.msra.mxu0 %v723
  %725 = vmatprep.subr.mxu0 0.0
  %v726 = vand.u32 %v45, 4294901760
  %v727 = vsub.f32 %v45, %v726
  %v728 = vand.u32 %v727, 4294901760
  %729 = vmatpush1.msra.mxu0 %v728
  %730 = vmatprep.subr.mxu0 0.0
  %v731 = vand.u32 %v46, 4294901760
  %v732 = vsub.f32 %v46, %v731
  %v733 = vand.u32 %v732, 4294901760
  %734 = vmatpush1.msra.mxu0 %v733
  %735 = vmatprep.subr.mxu0 0.0
  %v736 = vand.u32 %v47, 4294901760
  %v737 = vsub.f32 %v47, %v736
  %v738 = vand.u32 %v737, 4294901760
  %739 = vmatpush1.msra.mxu0 %v738
  %740 = vmatprep.subr.mxu0 0.0
  %v741 = vand.u32 %v48, 4294901760
  %v742 = vsub.f32 %v48, %v741
  %v743 = vand.u32 %v742, 4294901760
  %744 = vmatpush1.msra.mxu0 %v743
  %745 = vmatprep.subr.mxu0 0.0
  %v746 = vand.u32 %v49, 4294901760
  %v747 = vsub.f32 %v49, %v746
  %v748 = vand.u32 %v747, 4294901760
  %749 = vmatpush1.msra.mxu0 %v748
  %750 = vmatprep.subr.mxu0 0.0
  %v751 = vand.u32 %v50, 4294901760
  %v752 = vsub.f32 %v50, %v751
  %v753 = vand.u32 %v752, 4294901760
  %754 = vmatpush1.msra.mxu0 %v753
  %755 = vmatprep.subr.mxu0 0.0
  %v756 = vand.u32 %v51, 4294901760
  %v757 = vsub.f32 %v51, %v756
  %v758 = vand.u32 %v757, 4294901760
  %759 = vmatpush1.msra.mxu0 %v758
  %760 = vmatprep.subr.mxu0 0.0
  %v761 = vand.u32 %v52, 4294901760
  %v762 = vsub.f32 %v52, %v761
  %v763 = vand.u32 %v762, 4294901760
  %764 = vmatpush1.msra.mxu0 %v763
  %765 = vmatprep.subr.mxu0 0.0
  %v766 = vand.u32 %v53, 4294901760
  %v767 = vsub.f32 %v53, %v766
  %v768 = vand.u32 %v767, 4294901760
  %769 = vmatpush1.msra.mxu0 %v768
  %770 = vmatprep.subr.mxu0 0.0
  %v771 = vand.u32 %v54, 4294901760
  %v772 = vsub.f32 %v54, %v771
  %v773 = vand.u32 %v772, 4294901760
  %774 = vmatpush1.msra.mxu0 %v773
  %775 = vmatprep.subr.mxu0 0.0
  %v776 = vand.u32 %v55, 4294901760
  %v777 = vsub.f32 %v55, %v776
  %v778 = vand.u32 %v777, 4294901760
  %779 = vmatpush1.msra.mxu0 %v778
  %780 = vmatprep.subr.mxu0 0.0
  %v781 = vand.u32 %v56, 4294901760
  %v782 = vsub.f32 %v56, %v781
  %v783 = vand.u32 %v782, 4294901760
  %784 = vmatpush1.msra.mxu0 %v783
  %785 = vmatprep.subr.mxu0 0.0
  %v786 = vand.u32 %v57, 4294901760
  %v787 = vsub.f32 %v57, %v786
  %v788 = vand.u32 %v787, 4294901760
  %789 = vmatpush1.msra.mxu0 %v788
  %790 = vmatprep.subr.mxu0 0.0
  %791 = vmatpush1.msra.mxu0 0.0
  %792 = vmatprep.subr.mxu0 0.0
  %793 = vmatpush1.msra.mxu0 0.0
  %794 = vmatprep.subr.mxu0 0.0
  %795 = vmatpush1.msra.mxu0 0.0
  %796 = vmatprep.subr.mxu0 0.0
  %797 = vmatpush1.msra.mxu0 0.0
  %798 = vmatprep.subr.mxu0 0.0
  %799 = vmatpush1.msra.mxu0 0.0
  %800 = vmatprep.subr.mxu0 0.0
  %801 = vmatpush1.msra.mxu0 0.0
  %802 = vmatprep.subr.mxu0 0.0
  %803 = vmatpush1.msra.mxu0 0.0
  %804 = vmatprep.subr.mxu0 0.0
  %805 = vmatpush1.msra.mxu0 0.0
  %806 = vmatprep.subr.mxu0 0.0
  %807 = vmatpush1.msra.mxu0 0.0
  %808 = vmatprep.subr.mxu0 0.0
  %809 = vmatpush1.msra.mxu0 0.0
  %810 = vmatprep.subr.mxu0 0.0
  %811 = vmatpush1.msra.mxu0 0.0
  %812 = vmatprep.subr.mxu0 0.0
  %813 = vmatpush1.msra.mxu0 0.0
  %814 = vmatprep.subr.mxu0 0.0
  %815 = vmatpush1.msra.mxu0 0.0
  %816 = vmatprep.subr.mxu0 0.0
  %817 = vmatpush1.msra.mxu0 0.0
  %818 = vmatprep.subr.mxu0 0.0
  %819 = vmatpush1.msra.mxu0 0.0
  %820 = vmatprep.subr.mxu0 0.0
  %821 = vmatpush1.msra.mxu0 0.0
  %822 = vmatprep.mubr.f32.mxu0 0.0
  %v823 = vand.u32 %v34, 4294901760
  %824 = vmatmul.mubr.f32.gmra.mrb[0].mxu0 %v823
  %v825 = vpop.f32.mrb[0].mxu0
  %v826 = vadd.f32 %v651, %v825
  %v827 = vpop.f32.mrb[0].mxu0
  %828 = vmatprep.mubr.f32.mxu0 0.0
  %v829 = vand.u32 %v35, 4294901760
  %830 = vmatmul.mubr.f32.gmra.mrb[0].mxu0 %v829
  %v831 = vpop.f32.mrb[0].mxu0
  %v832 = vadd.f32 %v659, %v831
  %v833 = vpop.f32.mrb[0].mxu0
  %834 = vmatprep.mubr.f32.mxu0 0.0
  %v835 = vand.u32 %v36, 4294901760
  %836 = vmatmul.mubr.f32.gmra.mrb[0].mxu0 %v835
  %v837 = vpop.f32.mrb[0].mxu0
  %v838 = vadd.f32 %v667, %v837
  %v839 = vpop.f32.mrb[0].mxu0
  %840 = vmatprep.mubr.f32.mxu0 0.0
  %v841 = vand.u32 %v37, 4294901760
  %842 = vmatmul.mubr.f32.gmra.mrb[0].mxu0 %v841
  %v843 = vpop.f32.mrb[0].mxu0
  %v844 = vadd.f32 %v675, %v843
  %v845 = vpop.f32.mrb[0].mxu0
  %846 = vmatprep.mubr.f32.mxu0 0.0
  %v847 = vand.u32 %v38, 4294901760
  %848 = vmatmul.mubr.f32.gmra.mrb[0].mxu0 %v847
  %v849 = vpop.f32.mrb[0].mxu0
  %v850 = vadd.f32 %v683, %v849
  %v851 = vpop.f32.mrb[0].mxu0
  %852 = vmatprep.mubr.f32.mxu0 0.0
  %v853 = vand.u32 %v39, 4294901760
  %854 = vmatmul.mubr.f32.gmra.mrb[0].mxu0 %v853
  %v855 = vpop.f32.mrb[0].mxu0
  %v856 = vadd.f32 %v691, %v855
  %v857 = vpop.f32.mrb[0].mxu0
  %858 = vmatprep.mubr.f32.mxu0 0.0
  %v859 = vand.u32 %v40, 4294901760
  %860 = vmatmul.mubr.f32.gmra.mrb[0].mxu0 %v859
  %v861 = vpop.f32.mrb[0].mxu0
  %v862 = vadd.f32 %v699, %v861
  %v863 = vpop.f32.mrb[0].mxu0
  %864 = vmatprep.mubr.f32.mxu0 0.0
  %v865 = vand.u32 %v41, 4294901760
  %866 = vmatmul.mubr.f32.gmra.mrb[0].mxu0 %v865
  %v867 = vpop.f32.mrb[0].mxu0
  %v868 = vadd.f32 %v707, %v867
  %v869 = vpop.f32.mrb[0].mxu0
  %870 = vdwg.mxu0
  %871 = vmatprep.subr.mxu0 0.0
  %v872 = vand.u32 %v42, 4294901760
  %873 = vmatpush1.msra.mxu0 %v872
  %874 = vmatprep.subr.mxu0 0.0
  %v875 = vand.u32 %v43, 4294901760
  %876 = vmatpush1.msra.mxu0 %v875
  %877 = vmatprep.subr.mxu0 0.0
  %v878 = vand.u32 %v44, 4294901760
  %879 = vmatpush1.msra.mxu0 %v878
  %880 = vmatprep.subr.mxu0 0.0
  %v881 = vand.u32 %v45, 4294901760
  %882 = vmatpush1.msra.mxu0 %v881
  %883 = vmatprep.subr.mxu0 0.0
  %v884 = vand.u32 %v46, 4294901760
  %885 = vmatpush1.msra.mxu0 %v884
  %886 = vmatprep.subr.mxu0 0.0
  %v887 = vand.u32 %v47, 4294901760
  %888 = vmatpush1.msra.mxu0 %v887
  %889 = vmatprep.subr.mxu0 0.0
  %v890 = vand.u32 %v48, 4294901760
  %891 = vmatpush1.msra.mxu0 %v890
  %892 = vmatprep.subr.mxu0 0.0
  %v893 = vand.u32 %v49, 4294901760
  %894 = vmatpush1.msra.mxu0 %v893
  %895 = vmatprep.subr.mxu0 0.0
  %v896 = vand.u32 %v50, 4294901760
  %897 = vmatpush1.msra.mxu0 %v896
  %898 = vmatprep.subr.mxu0 0.0
  %v899 = vand.u32 %v51, 4294901760
  %900 = vmatpush1.msra.mxu0 %v899
  %901 = vmatprep.subr.mxu0 0.0
  %v902 = vand.u32 %v52, 4294901760
  %903 = vmatpush1.msra.mxu0 %v902
  %904 = vmatprep.subr.mxu0 0.0
  %v905 = vand.u32 %v53, 4294901760
  %906 = vmatpush1.msra.mxu0 %v905
  %907 = vmatprep.subr.mxu0 0.0
  %v908 = vand.u32 %v54, 4294901760
  %909 = vmatpush1.msra.mxu0 %v908
  %910 = vmatprep.subr.mxu0 0.0
  %v911 = vand.u32 %v55, 4294901760
  %912 = vmatpush1.msra.mxu0 %v911
  %913 = vmatprep.subr.mxu0 0.0
  %v914 = vand.u32 %v56, 4294901760
  %915 = vmatpush1.msra.mxu0 %v914
  %916 = vmatprep.subr.mxu0 0.0
  %v917 = vand.u32 %v57, 4294901760
  %918 = vmatpush1.msra.mxu0 %v917
  %919 = vmatprep.subr.mxu0 0.0
  %920 = vmatpush1.msra.mxu0 0.0
  %921 = vmatprep.subr.mxu0 0.0
  %922 = vmatpush1.msra.mxu0 0.0
  %923 = vmatprep.subr.mxu0 0.0
  %924 = vmatpush1.msra.mxu0 0.0
  %925 = vmatprep.subr.mxu0 0.0
  %926 = vmatpush1.msra.mxu0 0.0
  %927 = vmatprep.subr.mxu0 0.0
  %928 = vmatpush1.msra.mxu0 0.0
  %929 = vmatprep.subr.mxu0 0.0
  %930 = vmatpush1.msra.mxu0 0.0
  %931 = vmatprep.subr.mxu0 0.0
  %932 = vmatpush1.msra.mxu0 0.0
  %933 = vmatprep.subr.mxu0 0.0
  %934 = vmatpush1.msra.mxu0 0.0
  %935 = vmatprep.subr.mxu0 0.0
  %936 = vmatpush1.msra.mxu0 0.0
  %937 = vmatprep.subr.mxu0 0.0
  %938 = vmatpush1.msra.mxu0 0.0
  %939 = vmatprep.subr.mxu0 0.0
  %940 = vmatpush1.msra.mxu0 0.0
  %941 = vmatprep.subr.mxu0 0.0
  %942 = vmatpush1.msra.mxu0 0.0
  %943 = vmatprep.subr.mxu0 0.0
  %944 = vmatpush1.msra.mxu0 0.0
  %945 = vmatprep.subr.mxu0 0.0
  %946 = vmatpush1.msra.mxu0 0.0
  %947 = vmatprep.subr.mxu0 0.0
  %948 = vmatpush1.msra.mxu0 0.0
  %949 = vmatprep.subr.mxu0 0.0
  %950 = vmatpush1.msra.mxu0 0.0
  %951 = vmatprep.mubr.f32.mxu0 0.0
  %v952 = vand.u32 %v34, 4294901760
  %953 = vmatmul.mubr.f32.gmra.mrb[0].mxu0 %v952
  %v954 = vpop.f32.mrb[0].mxu0
  %v955 = vadd.f32 %v826, %v954
  %v956 = vpop.f32.mrb[0].mxu0
  %957 = vmatprep.mubr.f32.mxu0 0.0
  %v958 = vand.u32 %v35, 4294901760
  %959 = vmatmul.mubr.f32.gmra.mrb[0].mxu0 %v958
  %v960 = vpop.f32.mrb[0].mxu0
  %v961 = vadd.f32 %v832, %v960
  %v962 = vpop.f32.mrb[0].mxu0
  %963 = vmatprep.mubr.f32.mxu0 0.0
  %v964 = vand.u32 %v36, 4294901760
  %965 = vmatmul.mubr.f32.gmra.mrb[0].mxu0 %v964
  %v966 = vpop.f32.mrb[0].mxu0
  %v967 = vadd.f32 %v838, %v966
  %v968 = vpop.f32.mrb[0].mxu0
  %969 = vmatprep.mubr.f32.mxu0 0.0
  %v970 = vand.u32 %v37, 4294901760
  %971 = vmatmul.mubr.f32.gmra.mrb[0].mxu0 %v970
  %v972 = vpop.f32.mrb[0].mxu0
  %v973 = vadd.f32 %v844, %v972
  %v974 = vpop.f32.mrb[0].mxu0
  %975 = vmatprep.mubr.f32.mxu0 0.0
  %v976 = vand.u32 %v38, 4294901760
  %977 = vmatmul.mubr.f32.gmra.mrb[0].mxu0 %v976
  %v978 = vpop.f32.mrb[0].mxu0
  %v979 = vadd.f32 %v850, %v978
  %v980 = vpop.f32.mrb[0].mxu0
  %981 = vmatprep.mubr.f32.mxu0 0.0
  %v982 = vand.u32 %v39, 4294901760
  %983 = vmatmul.mubr.f32.gmra.mrb[0].mxu0 %v982
  %v984 = vpop.f32.mrb[0].mxu0
  %v985 = vadd.f32 %v856, %v984
  %v986 = vpop.f32.mrb[0].mxu0
  %987 = vmatprep.mubr.f32.mxu0 0.0
  %v988 = vand.u32 %v40, 4294901760
  %989 = vmatmul.mubr.f32.gmra.mrb[0].mxu0 %v988
  %v990 = vpop.f32.mrb[0].mxu0
  %v991 = vadd.f32 %v862, %v990
  %v992 = vpop.f32.mrb[0].mxu0
  %993 = vmatprep.mubr.f32.mxu0 0.0
  %v994 = vand.u32 %v41, 4294901760
  %995 = vmatmul.mubr.f32.gmra.mrb[0].mxu0 %v994
  %v996 = vpop.f32.mrb[0].mxu0
  %v997 = vadd.f32 %v868, %v996
  %v998 = vpop.f32.mrb[0].mxu0
  %999 = vdwg.mxu0
  %v1000 = vadd.f32 %v26, %v955
  %v1001 = vadd.f32 %v27, %v961
  %v1002 = vadd.f32 %v28, %v967
  %v1003 = vadd.f32 %v29, %v973
  %v1004 = vadd.f32 %v30, %v979
  %v1005 = vadd.f32 %v31, %v985
  %v1006 = vadd.f32 %v32, %v991
  %v1007 = vadd.f32 %v33, %v997
  %1008 = vst [vmem:[#allocation2] sm:$0xff] %v1000
  %1009 = vst [vmem:[#allocation2 + $0x8] sm:$0xff] %v1001
  %1010 = vst [vmem:[#allocation2 + $0x10] sm:$0xff] %v1002
  %1011 = vst [vmem:[#allocation2 + $0x18] sm:$0xff] %v1003
  %1012 = vst [vmem:[#allocation2 + $0x20] sm:$0xff] %v1004
  %1013 = vst [vmem:[#allocation2 + $0x28] sm:$0xff] %v1005
  %1014 = vst [vmem:[#allocation2 + $0x30] sm:$0xff] %v1006
  %1015 = vst [vmem:[#allocation2 + $0x38] sm:$0xff] %v1007
  // Predicated region
  $region18: #{_lambda_.13} parent=0 // pred_check
    %p1016 = pneg %p14
  $region19: #{_lambda_.13} parent=0 // pred_check_branch
    %1018 = sbr.rel (%p1016) target = $region21
  $region20: #{_lambda_.13} parent=0 // pred_region
    %v1019 = vld [vmem:[#allocation2] sm:$0xff]
    %v1020 = vld [vmem:[#allocation2 + $0x8] sm:$0xff]
    %v1021 = vld [vmem:[#allocation2 + $0x10] sm:$0xff]
    %v1022 = vld [vmem:[#allocation2 + $0x18] sm:$0xff]
    %v1023 = vld [vmem:[#allocation2 + $0x20] sm:$0xff]
    %v1024 = vld [vmem:[#allocation2 + $0x28] sm:$0xff]
    %v1025 = vld [vmem:[#allocation2 + $0x30] sm:$0xff]
    %v1026 = vld [vmem:[#allocation2 + $0x38] sm:$0xff]
    %v1027 = vld [vmem:[%s2] sm:$0x1]
    %v1029 = vlaneseq
    %v1030 = vshrl.u32 %v1029, 7
    %v1031 = vsub.s32 0, %v1030
    %v1032 = vrot.slane %v1027, %v1031
    %v1034 = vadd.f32 %v1019, %v1032
    %v1035 = vadd.f32 %v1020, %v1032
    %v1036 = vadd.f32 %v1021, %v1032
    %v1037 = vadd.f32 %v1022, %v1032
    %v1038 = vadd.f32 %v1023, %v1032
    %v1039 = vadd.f32 %v1024, %v1032
    %v1040 = vadd.f32 %v1025, %v1032
    %v1041 = vadd.f32 %v1026, %v1032
    %1042 = vst [vmem:[%s3] sm:$0xff] %v1034
    %1043 = vst [vmem:[%s3 + $0x8] sm:$0xff] %v1035
    %1044 = vst [vmem:[%s3 + $0x10] sm:$0xff] %v1036
    %1045 = vst [vmem:[%s3 + $0x18] sm:$0xff] %v1037
    %1046 = vst [vmem:[%s3 + $0x20] sm:$0xff] %v1038
    %1047 = vst [vmem:[%s3 + $0x28] sm:$0xff] %v1039
    %1048 = vst [vmem:[%s3 + $0x30] sm:$0xff] %v1040
    %1049 = vst [vmem:[%s3 + $0x38] sm:$0xff] %v1041
  $region21: #{_lambda_.13} parent=0 // pred_fallthru
    _
  // Predicated region
  $region22: #{_lambda_.13} parent=0 // pred_check
    _
  $region23: #{_lambda_.13} parent=0 // pred_check_branch
    %1051 = sbr.rel (0) target = $region25
  $region24: #{_lambda_.13} parent=0 // pred_region
    _
  $region25: #{_lambda_.13} parent=0 // pred_fallthru
    _
  // Predicated region
  $region26: #{_lambda_.13} parent=0 // pred_check
    _
  $region27: #{_lambda_.13} parent=0 // pred_check_branch
    %1053 = sbr.rel (0) target = $region29
  $region28: #{_lambda_.13} parent=0 // pred_region
    _
  $region29: #{_lambda_.13} parent=0 // pred_fallthru
    _

// kernel: _lambda_.15
$region0: #{_lambda_.15}
  #allocation0 [shape = 'u32[]', space=smem, size = 0x4, offset = 0x4, fixed_abs, tag = 'smem constant byte address 0x4 - core index']
  #allocation1 [shape = 'u32[144,128]{1,0:T(1,128)}', space=vmem, size = 0x12000, scoped, tag = 'internal scratch']
  %s0 = inlined_call_operand.vmem [shape: f32[2,2,16,32], index: 0, kind: input, shape index: {}]
  %s1 = inlined_call_operand.vmem [shape: f32[8,16,32], index: 1, kind: output, shape index: {}]
  %s2 = sld [smem:[#allocation0]]
  $region14: #{_lambda_.15} parent=0
    _
  %s4 = ssub.s32 1, %s2
  %s5 = scalar_select 0, %s4, %s2
  // Predicated region
  $region2: #{_lambda_.15} parent=0 // pred_check
    _
  $region3: #{_lambda_.15} parent=0 // pred_check_branch
    %7 = sbr.rel (0) target = $region5
  $region4: #{_lambda_.15} parent=0 // pred_region
    _
  $region5: #{_lambda_.15} parent=0 // pred_fallthru
    _
  %v8 = vld [vmem:[%s0] sm:$0xff]
  %v9 = vld [vmem:[%s0 + $0x8] sm:$0xff]
  %v10 = vmul.f32 %v8, 0.25
  %v11 = vmul.f32 %v9, 0.25
  %s12 = scalar_lea.vmem %s0, 32
  %v13 = vld [vmem:[%s12] sm:$0xff]
  %v14 = vld [vmem:[%s12 + $0x8] sm:$0xff]
  %v15 = vmul.f32 %v13, -0.0
  %v16 = vmul.f32 %v14, -0.0
  %v17 = vadd.f32 %v10, %v15
  %v18 = vadd.f32 %v11, %v16
  %s19 = scalar_lea.vmem %s0, 16
  %v20 = vld [vmem:[%s19] sm:$0xff]
  %v21 = vld [vmem:[%s19 + $0x8] sm:$0xff]
  %v22 = vmul.f32 %v20, 0.25
  %v23 = vmul.f32 %v21, 0.25
  %v24 = vadd.f32 %v17, %v22
  %v25 = vadd.f32 %v18, %v23
  %s26 = scalar_lea.vmem %s0, 48
  %v27 = vld [vmem:[%s26] sm:$0xff]
  %v28 = vld [vmem:[%s26 + $0x8] sm:$0xff]
  %v29 = vmul.f32 %v27, -0.0
  %v30 = vmul.f32 %v28, -0.0
  %v31 = vadd.f32 %v24, %v29
  %v32 = vadd.f32 %v25, %v30
  %vm33 = vcmask 261120
  %34 = vst.msk [vmem:[%s1] sm:$0xff] %vm33, %v31
  %35 = vst.msk [vmem:[%s1 + $0x8] sm:$0xff] %vm33, %v32
  %v36 = vld [vmem:[%s0] sm:$0xff]
  %v37 = vld [vmem:[%s0 + $0x8] sm:$0xff]
  %v38 = vmul.f32 %v36, 1.5308086e-17
  %v39 = vmul.f32 %v37, 1.5308086e-17
  %v40 = vld [vmem:[%s12] sm:$0xff]
  %v41 = vld [vmem:[%s12 + $0x8] sm:$0xff]
  %v42 = vmul.f32 %v40, -0.25
  %v43 = vmul.f32 %v41, -0.25
  %v44 = vadd.f32 %v38, %v42
  %v45 = vadd.f32 %v39, %v43
  %v46 = vld [vmem:[%s19] sm:$0xff]
  %v47 = vld [vmem:[%s19 + $0x8] sm:$0xff]
  %v48 = vmul.f32 %v46, -0.17677669
  %v49 = vmul.f32 %v47, -0.17677669
  %v50 = vadd.f32 %v44, %v48
  %v51 = vadd.f32 %v45, %v49
  %v52 = vld [vmem:[%s26] sm:$0xff]
  %v53 = vld [vmem:[%s26 + $0x8] sm:$0xff]
  %v54 = vmul.f32 %v52, -0.17677669
  %v55 = vmul.f32 %v53, -0.17677669
  %v56 = vadd.f32 %v50, %v54
  %v57 = vadd.f32 %v51, %v55
  %s58 = scalar_lea.vmem %s1, 16
  %59 = vst.msk [vmem:[%s58] sm:$0xff] %vm33, %v56
  %60 = vst.msk [vmem:[%s58 + $0x8] sm:$0xff] %vm33, %v57
  %v61 = vld [vmem:[%s0] sm:$0xff]
  %v62 = vld [vmem:[%s0 + $0x8] sm:$0xff]
  %v63 = vmul.f32 %v61, -0.25
  %v64 = vmul.f32 %v62, -0.25
  %v65 = vld [vmem:[%s12] sm:$0xff]
  %v66 = vld [vmem:[%s12 + $0x8] sm:$0xff]
  %v67 = vmul.f32 %v65, -3.061617e-17
  %v68 = vmul.f32 %v66, -3.061617e-17
  %v69 = vadd.f32 %v63, %v67
  %v70 = vadd.f32 %v64, %v68
  %v71 = vld [vmem:[%s19] sm:$0xff]
  %v72 = vld [vmem:[%s19 + $0x8] sm:$0xff]
  %v73 = vmul.f32 %v71, -4.5924254e-17
  %v74 = vmul.f32 %v72, -4.5924254e-17
  %v75 = vadd.f32 %v69, %v73
  %v76 = vadd.f32 %v70, %v74
  %v77 = vld [vmem:[%s26] sm:$0xff]
  %v78 = vld [vmem:[%s26 + $0x8] sm:$0xff]
  %v79 = vmul.f32 %v77, 0.25
  %v80 = vmul.f32 %v78, 0.25
  %v81 = vadd.f32 %v75, %v79
  %v82 = vadd.f32 %v76, %v80
  %s83 = scalar_lea.vmem %s1, 32
  %84 = vst.msk [vmem:[%s83] sm:$0xff] %vm33, %v81
  %85 = vst.msk [vmem:[%s83 + $0x8] sm:$0xff] %vm33, %v82
  %v86 = vld [vmem:[%s0] sm:$0xff]
  %v87 = vld [vmem:[%s0 + $0x8] sm:$0xff]
  %v88 = vmul.f32 %v86, -4.5924254e-17
  %v89 = vmul.f32 %v87, -4.5924254e-17
  %v90 = vld [vmem:[%s12] sm:$0xff]
  %v91 = vld [vmem:[%s12 + $0x8] sm:$0xff]
  %v92 = vmul.f32 %v90, 0.25
  %v93 = vmul.f32 %v91, 0.25
  %v94 = vadd.f32 %v88, %v92
  %v95 = vadd.f32 %v89, %v93
  %v96 = vld [vmem:[%s19] sm:$0xff]
  %v97 = vld [vmem:[%s19 + $0x8] sm:$0xff]
  %v98 = vmul.f32 %v96, 0.17677669
  %v99 = vmul.f32 %v97, 0.17677669
  %v100 = vadd.f32 %v94, %v98
  %v101 = vadd.f32 %v95, %v99
  %v102 = vld [vmem:[%s26] sm:$0xff]
  %v103 = vld [vmem:[%s26 + $0x8] sm:$0xff]
  %v104 = vmul.f32 %v102, -0.17677669
  %v105 = vmul.f32 %v103, -0.17677669
  %v106 = vadd.f32 %v100, %v104
  %v107 = vadd.f32 %v101, %v105
  %s108 = scalar_lea.vmem %s1, 48
  %109 = vst.msk [vmem:[%s108] sm:$0xff] %vm33, %v106
  %110 = vst.msk [vmem:[%s108 + $0x8] sm:$0xff] %vm33, %v107
  %v111 = vld [vmem:[%s0] sm:$0xff]
  %v112 = vld [vmem:[%s0 + $0x8] sm:$0xff]
  %v113 = vmul.f32 %v111, 0.25
  %v114 = vmul.f32 %v112, 0.25
  %v115 = vld [vmem:[%s12] sm:$0xff]
  %v116 = vld [vmem:[%s12 + $0x8] sm:$0xff]
  %v117 = vmul.f32 %v115, 6.123234e-17
  %v118 = vmul.f32 %v116, 6.123234e-17
  %v119 = vadd.f32 %v113, %v117
  %v120 = vadd.f32 %v114, %v118
  %v121 = vld [vmem:[%s19] sm:$0xff]
  %v122 = vld [vmem:[%s19 + $0x8] sm:$0xff]
  %v123 = vmul.f32 %v121, -0.25
  %v124 = vmul.f32 %v122, -0.25
  %v125 = vadd.f32 %v119, %v123
  %v126 = vadd.f32 %v120, %v124
  %v127 = vld [vmem:[%s26] sm:$0xff]
  %v128 = vld [vmem:[%s26 + $0x8] sm:$0xff]
  %v129 = vmul.f32 %v127, -9.184851e-17
  %v130 = vmul.f32 %v128, -9.184851e-17
  %v131 = vadd.f32 %v125, %v129
  %v132 = vadd.f32 %v126, %v130
  %s133 = scalar_lea.vmem %s1, 64
  %134 = vst.msk [vmem:[%s133] sm:$0xff] %vm33, %v131
  %135 = vst.msk [vmem:[%s133 + $0x8] sm:$0xff] %vm33, %v132
  %v136 = vld [vmem:[%s0] sm:$0xff]
  %v137 = vld [vmem:[%s0 + $0x8] sm:$0xff]
  %v138 = vmul.f32 %v136, 7.6540425e-17
  %v139 = vmul.f32 %v137, 7.6540425e-17
  %v140 = vld [vmem:[%s12] sm:$0xff]
  %v141 = vld [vmem:[%s12 + $0x8] sm:$0xff]
  %v142 = vmul.f32 %v140, -0.25
  %v143 = vmul.f32 %v141, -0.25
  %v144 = vadd.f32 %v138, %v142
  %v145 = vadd.f32 %v139, %v143
  %v146 = vld [vmem:[%s19] sm:$0xff]
  %v147 = vld [vmem:[%s19 + $0x8] sm:$0xff]
  %v148 = vmul.f32 %v146, 0.17677669
  %v149 = vmul.f32 %v147, 0.17677669
  %v150 = vadd.f32 %v144, %v148
  %v151 = vadd.f32 %v145, %v149
  %v152 = vld [vmem:[%s26] sm:$0xff]
  %v153 = vld [vmem:[%s26 + $0x8] sm:$0xff]
  %v154 = vmul.f32 %v152, 0.17677669
  %v155 = vmul.f32 %v153, 0.17677669
  %v156 = vadd.f32 %v150, %v154
  %v157 = vadd.f32 %v151, %v155
  %s158 = scalar_lea.vmem %s1, 80
  %159 = vst.msk [vmem:[%s158] sm:$0xff] %vm33, %v156
  %160 = vst.msk [vmem:[%s158 + $0x8] sm:$0xff] %vm33, %v157
  %v161 = vld [vmem:[%s0] sm:$0xff]
  %v162 = vld [vmem:[%s0 + $0x8] sm:$0xff]
  %v163 = vmul.f32 %v161, -0.25
  %v164 = vmul.f32 %v162, -0.25
  %v165 = vld [vmem:[%s12] sm:$0xff]
  %v166 = vld [vmem:[%s12 + $0x8] sm:$0xff]
  %v167 = vmul.f32 %v165, -9.184851e-17
  %v168 = vmul.f32 %v166, -9.184851e-17
  %v169 = vadd.f32 %v163, %v167
  %v170 = vadd.f32 %v164, %v168
  %v171 = vld [vmem:[%s19] sm:$0xff]
  %v172 = vld [vmem:[%s19 + $0x8] sm:$0xff]
  %v173 = vmul.f32 %v171, 1.3777277e-16
  %v174 = vmul.f32 %v172, 1.3777277e-16
  %v175 = vadd.f32 %v169, %v173
  %v176 = vadd.f32 %v170, %v174
  %v177 = vld [vmem:[%s26] sm:$0xff]
  %v178 = vld [vmem:[%s26 + $0x8] sm:$0xff]
  %v179 = vmul.f32 %v177, -0.25
  %v180 = vmul.f32 %v178, -0.25
  %v181 = vadd.f32 %v175, %v179
  %v182 = vadd.f32 %v176, %v180
  %s183 = scalar_lea.vmem %s1, 96
  %184 = vst.msk [vmem:[%s183] sm:$0xff] %vm33, %v181
  %185 = vst.msk [vmem:[%s183 + $0x8] sm:$0xff] %vm33, %v182
  %v186 = vld [vmem:[%s0] sm:$0xff]
  %v187 = vld [vmem:[%s0 + $0x8] sm:$0xff]
  %v188 = vmul.f32 %v186, -1.07156596e-16
  %v189 = vmul.f32 %v187, -1.07156596e-16
  %v190 = vld [vmem:[%s12] sm:$0xff]
  %v191 = vld [vmem:[%s12 + $0x8] sm:$0xff]
  %v192 = vmul.f32 %v190, 0.25
  %v193 = vmul.f32 %v191, 0.25
  %v194 = vadd.f32 %v188, %v192
  %v195 = vadd.f32 %v189, %v193
  %v196 = vld [vmem:[%s19] sm:$0xff]
  %v197 = vld [vmem:[%s19 + $0x8] sm:$0xff]
  %v198 = vmul.f32 %v196, -0.17677669
  %v199 = vmul.f32 %v197, -0.17677669
  %v200 = vadd.f32 %v194, %v198
  %v201 = vadd.f32 %v195, %v199
  %v202 = vld [vmem:[%s26] sm:$0xff]
  %v203 = vld [vmem:[%s26 + $0x8] sm:$0xff]
  %v204 = vmul.f32 %v202, 0.17677669
  %v205 = vmul.f32 %v203, 0.17677669
  %v206 = vadd.f32 %v200, %v204
  %v207 = vadd.f32 %v201, %v205
  %s208 = scalar_lea.vmem %s1, 112
  %209 = vst.msk [vmem:[%s208] sm:$0xff] %vm33, %v206
  %210 = vst.msk [vmem:[%s208 + $0x8] sm:$0xff] %vm33, %v207
  // Predicated region
  $region6: #{_lambda_.15} parent=0 // pred_check
    _
  $region7: #{_lambda_.15} parent=0 // pred_check_branch
    %212 = sbr.rel (0) target = $region9
  $region8: #{_lambda_.15} parent=0 // pred_region
    _
  $region9: #{_lambda_.15} parent=0 // pred_fallthru
    _
  // Predicated region
  $region10: #{_lambda_.15} parent=0 // pred_check
    _
  $region11: #{_lambda_.15} parent=0 // pred_check_branch
    %214 = sbr.rel (0) target = $region13
  $region12: #{_lambda_.15} parent=0 // pred_region
    _
  $region13: #{_lambda_.15} parent=0 // pred_fallthru
    _

</llo_original>
